<compile_context>
chip_gen: v7x
topology: tpu7x:2x2x1
jax: 0.10.0
libtpu: 0.0.40
codegen_flags: <defaults>
</compile_context>

<pallas_src>
import functools

import jax
import jax.numpy as jnp
from jax import lax
from jax.experimental import pallas as pl
from jax.experimental.pallas import tpu as pltpu

# ----------------------------- model / demo configuration -----------------------------
VOCAB, EMB, HID, GEMB, NLAYER = 32, 16, 32, 11, 5
B, T = 4, 8
G, NODES_PER_G, NODE_FEAT = 4, 4, 8
N = G * NODES_PER_G

BP = 8                      # batch padded to 8 sublanes
GP_GRAPHS = 8               # graph count padded to 8 (mean-pool rows)
GW = 32                     # graph-emb (11) and GNN hidden (22) padded to 32 lanes
NP = N                      # padded node count (16, multiple of 8) = graph-slab lane width
HEAD_PAD = 128              # lane-dense width of the MLP head (100 -> 128, 1 -> 128)

assert 4 * HID == HEAD_PAD          # LSTM gate width == head lane width (shared bias slab)
assert VOCAB % 8 == 0 and HID % 8 == 0 and NP % 8 == 0 and NODE_FEAT <= NP


# ----------------------------- fused hybrid kernel -----------------------------

def _hybrid_kernel(ids_ref, graph_ref, lstm_ref, aff_ref, headw_ref, gin_ref, out_ref,
                   *, seq_len, hidden, vocab, num_layer, bp, n_nodes, n_graphs, head_pad):
    f32, bf16 = jnp.float32, jnp.bfloat16
    T, H, Bp, V = seq_len, hidden, bp, vocab
    NPd, Gp, P = n_nodes, n_graphs, head_pad
    GWd = gin_ref.shape[1]                       # padded GIN lane width (32)

    def mm(a, b):                                # bf16 MXU matmul, f32 accumulate
        return jnp.dot(a.astype(bf16), b.astype(bf16), preferred_element_type=f32)

    # ---------------- integer metadata (one int32 column, one DMA) ----------------
    tok = ids_ref[0:T * Bp, :]                               # (T*Bp, 1) token ids, time-major
    tlen = ids_ref[T * Bp:T * Bp + Bp, :]                    # (Bp, 1)
    gid = ids_ref[T * Bp + Bp:T * Bp + 2 * Bp, :]            # (Bp, 1)  text[:,0] - 7
    lmax = ids_ref[T * Bp + 2 * Bp:T * Bp + 2 * Bp + 1, :]   # (1, 1)   max(text_len)

    # ---------------- GIN graph model ----------------
    # TODO(synk): the GNN class definition is not in the provided snippet; this is a
    # faithful simplified GIN (node encoder + num_layer MLP layers, eps=0, mean pooling).
    nf = graph_ref[0:NPd, :]                                 # (N, N)   node features (padded)
    ipa = graph_ref[NPd:2 * NPd, :]                          # (N, N)   I + A
    pool = graph_ref[2 * NPd:2 * NPd + Gp, :]                # (Gp, N)  mean-pool matrix

    enc_w = gin_ref[0:NPd, :]
    enc_b = gin_ref[NPd:NPd + 1, :].astype(f32)
    h = mm(nf, enc_w) + enc_b                                # (N, GW)
    base = NPd + 8
    lstride = 2 * GWd + 16
    for l in range(num_layer):                               # static -> fully unrolled
        off = base + l * lstride
        w1 = gin_ref[off:off + GWd, :]
        b1 = gin_ref[off + GWd:off + GWd + 1, :].astype(f32)
        w2 = gin_ref[off + GWd + 8:off + 2 * GWd + 8, :]
        b2 = gin_ref[off + 2 * GWd + 8:off + 2 * GWd + 9, :].astype(f32)
        agg = mm(ipa, h)                                     # (I + A) @ h   (eps = 0)
        z = jnp.maximum(mm(agg, w1) + b1, 0.0)
        hn = mm(z, w2) + b2
        if l < num_layer - 1:
            hn = jnp.maximum(hn, 0.0)
        h = hn
    g_emb = mm(pool, h)                                      # (Gp, GW)

    # g_emb[text[:,0] - 7] gather as a one-hot matmul
    giota = lax.broadcasted_iota(jnp.int32, (Bp, Gp), 1)
    g_sel = mm((gid == giota).astype(f32), g_emb)            # (Bp, GW), cols >= GEMB are 0

    # ---------------- 2-layer LSTM ----------------
    emb_wih1 = lstm_ref[0:V, :]                              # embedding @ W_ih1 fold, (V, 4H)
    whh1 = lstm_ref[V:V + H, :]                              # (H, 4H)
    w2cat = lstm_ref[V + H:V + 3 * H, :]                     # [W_ih2; W_hh2], (2H, 4H)
    bb1 = aff_ref[0:1, :]                                    # f32 biases (b_ih + b_hh folded)
    bb2 = aff_ref[8:9, :]

    # token one-hot -> embedding -> gate projection for ALL T steps in one matmul
    viota = lax.broadcasted_iota(jnp.int32, (T * Bp, V), 1)
    xp = mm((tok == viota).astype(f32), emb_wih1) + bb1      # (T*Bp, 4H), off the recurrence

    # per-lane gate constants: sigmoid(z)=0.5*tanh(0.5z)+0.5 for i/f/o, tanh for g
    lane = lax.broadcasted_iota(jnp.int32, (1, 4 * H), 1)
    is_g = (lane >= 2 * H) & (lane < 3 * H)
    a_gate = jnp.where(is_g, 1.0, 0.5).astype(f32)
    c_gate = jnp.where(is_g, 0.0, 0.5).astype(f32)

    def cell(gates, c):                                      # one EUP tanh for all 4 gates
        y = a_gate * jnp.tanh(a_gate * gates) + c_gate
        i = y[:, 0:H]; f = y[:, H:2 * H]; g = y[:, 2 * H:3 * H]; o = y[:, 3 * H:4 * H]
        c_new = f * c + i * g
        return o * jnp.tanh(c_new), c_new

    zeros = jnp.zeros((Bp, H), f32)
    h1 = zeros; c1 = zeros; h2 = zeros; c2 = zeros; out_last = zeros
    for t in range(T):                                       # static -> fully unrolled
        h1, c1 = cell(xp[t * Bp:(t + 1) * Bp, :] + mm(h1, whh1), c1)
        h2, c2 = cell(mm(jnp.concatenate([h1, h2], axis=1), w2cat) + bb2, c2)
        sel = (lmax == (t + 1)).astype(f32)                  # capture h2 at step max(len)-1
        out_last = sel * h2 + (1.0 - sel) * out_last

    # pad_packed_sequence + output[:, -1, :]: rows shorter than max(len) read zero padding
    row_mask = (tlen == lmax).astype(f32)                    # (Bp, 1), int compare
    out_lstm = row_mask * out_last                           # (Bp, H)

    # ---------------- MLP head (BN folded to affine, dropout = identity) ----------------
    w1cat = headw_ref[0:H + GWd, :]                          # concat-layout first layer weight
    w2h = headw_ref[H + GWd:H + GWd + P, :]
    w3h = headw_ref[H + GWd + P:H + GWd + 2 * P, :]
    hb1 = aff_ref[16:17, :]; hs1 = aff_ref[24:25, :]; ht1 = aff_ref[32:33, :]
    hb2 = aff_ref[40:41, :]; hs2 = aff_ref[48:49, :]; ht2 = aff_ref[56:57, :]
    hb3 = aff_ref[64:65, :]

    cat = jnp.concatenate([out_lstm, g_sel], axis=1)         # (Bp, H + GW)
    hh = jnp.maximum(mm(cat, w1cat) + hb1, 0.0)
    hh = hh * hs1 + ht1
    hh = jnp.maximum(mm(hh, w2h) + hb2, 0.0)
    hh = hh * hs2 + ht2
    out_ref[...] = mm(hh, w3h) + hb3                         # (Bp, 128); column 0 is real


def fused_forward(ids, graph, params):
    kernel = functools.partial(
        _hybrid_kernel, seq_len=T, hidden=HID, vocab=VOCAB, num_layer=NLAYER,
        bp=BP, n_nodes=NP, n_graphs=GP_GRAPHS, head_pad=HEAD_PAD)
    vmem = pl.BlockSpec(memory_space=pltpu.MemorySpace.VMEM)
    return pl.pallas_call(
        kernel,
        out_shape=jax.ShapeDtypeStruct((BP, HEAD_PAD), jnp.float32),
        in_specs=[vmem] * 6,
        out_specs=vmem,
    )(ids, graph, params["lstm_slab"], params["aff_slab"],
      params["headw_slab"], params["gin_slab"])


# ----------------------------- parameters (packed slabs) -----------------------------

def init_params(key):
    keys = jax.random.split(key, 32)

    def nrm(k, shape, scale=0.1):
        return scale * jax.random.normal(k, shape, dtype=jnp.float32)

    H, V, L, P = HID, VOCAB, NLAYER, HEAD_PAD

    # canonical (f32) parameters
    embedding = nrm(keys[0], (V, EMB))
    wih1 = nrm(keys[1], (EMB, 4 * H)); whh1 = nrm(keys[2], (H, 4 * H)); b1 = nrm(keys[3], (1, 4 * H))
    wih2 = nrm(keys[4], (H, 4 * H));   whh2 = nrm(keys[5], (H, 4 * H)); b2 = nrm(keys[6], (1, 4 * H))

    enc_w = nrm(keys[7], (NODE_FEAT, GEMB)); enc_b = nrm(keys[8], (1, GEMB))
    g_w1 = nrm(keys[9], (L, GEMB, 2 * GEMB)); g_b1 = nrm(keys[10], (L, 1, 2 * GEMB))
    g_w2 = nrm(keys[11], (L, 2 * GEMB, GEMB)); g_b2 = nrm(keys[12], (L, 1, GEMB))

    in_dim = H + GEMB
    h_w1 = nrm(keys[13], (in_dim, 100)); h_b1 = nrm(keys[14], (1, 100))
    h_w2 = nrm(keys[15], (100, 100));    h_b2 = nrm(keys[16], (1, 100))
    h_w3 = nrm(keys[17], (100, 1));      h_b3 = nrm(keys[18], (1, 1))
    eps = 1e-5
    aff = []
    for (gk, bk, mk, vk) in [(19, 20, 21, 22), (23, 24, 25, 26)]:
        gamma = 1.0 + nrm(keys[gk], (1, 100), 0.05)
        beta = nrm(keys[bk], (1, 100), 0.05)
        mean = nrm(keys[mk], (1, 100), 0.05)
        var = 1.0 + 0.1 * jnp.abs(jax.random.normal(keys[vk], (1, 100), dtype=jnp.float32))
        s = gamma / jnp.sqrt(var + eps)          # BatchNorm1d(eval) folded to affine
        aff.append((s, beta - mean * s))
    (s1, t1), (s2, t2) = aff

    def pad2(a, r, c, val=0.0):
        return jnp.pad(a, ((0, r - a.shape[0]), (0, c - a.shape[1])), constant_values=val)

    # LSTM weight slab (bf16, 128 lanes): [embedding@Wih1 ; Whh1 ; [Wih2;Whh2]]
    lstm_slab = jnp.concatenate(
        [embedding @ wih1, whh1, jnp.concatenate([wih2, whh2], axis=0)],
        axis=0).astype(jnp.bfloat16)                                        # (V+3H, 4H)

    # f32 bias/affine slab: 9 params, each in its own 8-row block (aligned slices)
    def blk8(a, val=0.0):
        return jnp.pad(pad2(a, 1, P, val), ((0, 7), (0, 0)))
    aff_slab = jnp.concatenate(
        [blk8(b1), blk8(b2), blk8(h_b1), blk8(s1, 1.0), blk8(t1),
         blk8(h_b2), blk8(s2, 1.0), blk8(t2), blk8(h_b3)], axis=0)          # (72, 128)

    # head weight slab (bf16): [W1 in concat layout ; W2 ; W3], all 128 lanes
    w1cat = jnp.zeros((H + GW, P), jnp.float32)
    w1cat = w1cat.at[0:H, 0:100].set(h_w1[:H])                 # LSTM half of the concat
    w1cat = w1cat.at[H:H + GEMB, 0:100].set(h_w1[H:])          # graph-embedding half
    headw_slab = jnp.concatenate(
        [w1cat, pad2(h_w2, P, P), pad2(h_w3, P, P)], axis=0).astype(jnp.bfloat16)

    # GIN weight slab (bf16, GW lanes), all blocks on 8-row boundaries
    parts = [pad2(enc_w, NP, GW), pad2(enc_b, 8, GW)]
    for l in range(L):
        parts += [pad2(g_w1[l], GW, GW), pad2(g_b1[l], 8, GW),
                  pad2(g_w2[l], GW, GW), pad2(g_b2[l], 8, GW)]
    gin_slab = jnp.concatenate(parts, axis=0).astype(jnp.bfloat16)

    return {"lstm_slab": lstm_slab, "aff_slab": aff_slab,
            "headw_slab": headw_slab, "gin_slab": gin_slab}


# ----------------------------- forward glue -----------------------------

def hybridmodel_forward(params, text, text_len, node_feat, adj, pool):
    # pack all integer metadata into ONE int32 column (token ids time-major,
    # per-row lengths, graph ids, max length) -> a single small DMA
    text_p = jnp.zeros((BP, T), jnp.int32).at[:B, :].set(text.astype(jnp.int32))
    tlen_p = jnp.zeros((BP,), jnp.int32).at[:B].set(text_len.astype(jnp.int32))
    tok = jnp.transpose(text_p, (1, 0)).reshape(T * BP, 1)        # row index = t*BP + b
    gid = (text_p[:, 0] - 7).reshape(BP, 1)                       # g_emb[text[:,0] - 7]
    lmax = jnp.broadcast_to(jnp.max(tlen_p), (BP, 1))
    ids = jnp.concatenate([tok, tlen_p.reshape(BP, 1), gid, lmax], axis=0)   # (T*BP+3*BP, 1)

    # pack graph data: node features, (I + A), mean-pool matrix -> one bf16 slab
    ipa = adj + jnp.eye(adj.shape[0], dtype=adj.dtype)
    def pad2(a, r, c):
        return jnp.pad(a, ((0, r - a.shape[0]), (0, c - a.shape[1])))
    graph = jnp.concatenate([pad2(node_feat, NP, NP), pad2(ipa, NP, NP),
                             pad2(pool, GP_GRAPHS, NP)], axis=0).astype(jnp.bfloat16)

    out_pad = fused_forward(ids, graph, params)                   # (BP, 128)
    return out_pad[:B, 0]                                         # (B,)


if __name__ == "__main__":
    key = jax.random.PRNGKey(0)
    k_param, k_text, k_nf, k_adj = jax.random.split(key, 4)

    params = init_params(k_param)

    # first token encodes graph id + 7, matching `g_emb[text[:, 0] - 7]`
    rest = jax.random.randint(k_text, (B, T - 1), 0, VOCAB, dtype=jnp.int32)
    first = (jnp.arange(B, dtype=jnp.int32) % G) + 7
    text = jnp.concatenate([first[:, None], rest], axis=1).astype(jnp.int32)
    text_len = jnp.array([T, T - 2, T, T - 3], dtype=jnp.int32)

    node_feat = jax.random.normal(k_nf, (N, NODE_FEAT), dtype=jnp.float32)
    a = (jax.random.uniform(k_adj, (N, N)) > 0.5).astype(jnp.float32)
    a = jnp.triu(a, 1)
    a = a + a.T
    block_mask = jnp.kron(jnp.eye(G), jnp.ones((NODES_PER_G, NODES_PER_G)))
    adj = (a * block_mask).astype(jnp.float32)
    pool = (jnp.kron(jnp.eye(G), jnp.ones((1, NODES_PER_G))) / NODES_PER_G).astype(jnp.float32)

    fwd = jax.jit(hybridmodel_forward)
    y = fwd(params, text, text_len, node_feat, adj, pool)
    jax.block_until_ready(y)
    assert y.shape == (B,) and y.dtype == jnp.float32
    print("KERNEL_OK")
</pallas_src>

<mosaic_0001>
module attributes {stable_mosaic.version = 11 : i64} {
  func.func @_hybrid_kernel(%arg0: memref<88x1xi32, #tpu.memory_space<vmem>>, %arg1: memref<40x16xbf16, #tpu.memory_space<vmem>>, %arg2: memref<128x128xbf16, #tpu.memory_space<vmem>>, %arg3: memref<72x128xf32, #tpu.memory_space<vmem>>, %arg4: memref<320x128xbf16, #tpu.memory_space<vmem>>, %arg5: memref<424x32xbf16, #tpu.memory_space<vmem>>, %arg6: memref<8x128xf32, #tpu.memory_space<vmem>>) attributes {dimension_semantics = [], scalar_prefetch = 0 : i64, scratch_operands = 0 : i64, tpu.core_type = #tpu.core_type<tc>} {
    %c0 = arith.constant 0 : index
    %c0_0 = arith.constant 0 : index
    %0 = vector.load %arg0[%c0, %c0_0] : memref<88x1xi32, #tpu.memory_space<vmem>>, vector<64x1xi32>
    %c64 = arith.constant 64 : index
    %c0_1 = arith.constant 0 : index
    %1 = vector.load %arg0[%c64, %c0_1] : memref<88x1xi32, #tpu.memory_space<vmem>>, vector<8x1xi32>
    %c72 = arith.constant 72 : index
    %c0_2 = arith.constant 0 : index
    %2 = vector.load %arg0[%c72, %c0_2] : memref<88x1xi32, #tpu.memory_space<vmem>>, vector<8x1xi32>
    %c80 = arith.constant 80 : index
    %c0_3 = arith.constant 0 : index
    %3 = vector.load %arg0[%c80, %c0_3] : memref<88x1xi32, #tpu.memory_space<vmem>>, vector<1x1xi32>
    %c0_4 = arith.constant 0 : index
    %c0_5 = arith.constant 0 : index
    %4 = vector.load %arg1[%c0_4, %c0_5] : memref<40x16xbf16, #tpu.memory_space<vmem>>, vector<16x16xbf16>
    %c16 = arith.constant 16 : index
    %c0_6 = arith.constant 0 : index
    %5 = vector.load %arg1[%c16, %c0_6] : memref<40x16xbf16, #tpu.memory_space<vmem>>, vector<16x16xbf16>
    %c32 = arith.constant 32 : index
    %c0_7 = arith.constant 0 : index
    %6 = vector.load %arg1[%c32, %c0_7] : memref<40x16xbf16, #tpu.memory_space<vmem>>, vector<8x16xbf16>
    %c0_8 = arith.constant 0 : index
    %c0_9 = arith.constant 0 : index
    %7 = vector.load %arg5[%c0_8, %c0_9] : memref<424x32xbf16, #tpu.memory_space<vmem>>, vector<16x32xbf16>
    %c16_10 = arith.constant 16 : index
    %c0_11 = arith.constant 0 : index
    %8 = vector.load %arg5[%c16_10, %c0_11] : memref<424x32xbf16, #tpu.memory_space<vmem>>, vector<1x32xbf16>
    %9 = arith.extf %8 : vector<1x32xbf16> to vector<1x32xf32>
    %cst = arith.constant dense<0.000000e+00> : vector<16x32xf32>
    %10 = tpu.matmul %4, %7, %cst {dimension_numbers = #tpu.dot_dimension_numbers<[1], [0], [0], [1], [0, 0, 1, 1], [], []>} : vector<16x16xbf16>, vector<16x32xbf16>, vector<16x32xf32> -> vector<16x32xf32>
    %11 = vector.broadcast %9 : vector<1x32xf32> to vector<16x32xf32>
    %12 = arith.addf %10, %11 : vector<16x32xf32>
    %c24 = arith.constant 24 : index
    %c0_12 = arith.constant 0 : index
    %13 = vector.load %arg5[%c24, %c0_12] : memref<424x32xbf16, #tpu.memory_space<vmem>>, vector<32x32xbf16>
    %c56 = arith.constant 56 : index
    %c0_13 = arith.constant 0 : index
    %14 = vector.load %arg5[%c56, %c0_13] : memref<424x32xbf16, #tpu.memory_space<vmem>>, vector<1x32xbf16>
    %15 = arith.extf %14 : vector<1x32xbf16> to vector<1x32xf32>
    %c64_14 = arith.constant 64 : index
    %c0_15 = arith.constant 0 : index
    %16 = vector.load %arg5[%c64_14, %c0_15] : memref<424x32xbf16, #tpu.memory_space<vmem>>, vector<32x32xbf16>
    %c96 = arith.constant 96 : index
    %c0_16 = arith.constant 0 : index
    %17 = vector.load %arg5[%c96, %c0_16] : memref<424x32xbf16, #tpu.memory_space<vmem>>, vector<1x32xbf16>
    %18 = arith.extf %17 : vector<1x32xbf16> to vector<1x32xf32>
    %19 = arith.truncf %12 : vector<16x32xf32> to vector<16x32xbf16>
    %cst_17 = arith.constant dense<0.000000e+00> : vector<16x32xf32>
    %20 = tpu.matmul %5, %19, %cst_17 {dimension_numbers = #tpu.dot_dimension_numbers<[1], [0], [0], [1], [0, 0, 1, 1], [], []>} : vector<16x16xbf16>, vector<16x32xbf16>, vector<16x32xf32> -> vector<16x32xf32>
    %21 = arith.truncf %20 : vector<16x32xf32> to vector<16x32xbf16>
    %cst_18 = arith.constant dense<0.000000e+00> : vector<16x32xf32>
    %22 = tpu.matmul %21, %13, %cst_18 {dimension_numbers = #tpu.dot_dimension_numbers<[1], [0], [0], [1], [0, 0, 1, 1], [], []>} : vector<16x32xbf16>, vector<32x32xbf16>, vector<16x32xf32> -> vector<16x32xf32>
    %23 = vector.broadcast %15 : vector<1x32xf32> to vector<16x32xf32>
    %24 = arith.addf %22, %23 : vector<16x32xf32>
    %cst_19 = arith.constant 0.000000e+00 : f32
    %25 = vector.broadcast %cst_19 : f32 to vector<16x32xf32>
    %26 = arith.maximumf %24, %25 : vector<16x32xf32>
    %27 = arith.truncf %26 : vector<16x32xf32> to vector<16x32xbf16>
    %cst_20 = arith.constant dense<0.000000e+00> : vector<16x32xf32>
    %28 = tpu.matmul %27, %16, %cst_20 {dimension_numbers = #tpu.dot_dimension_numbers<[1], [0], [0], [1], [0, 0, 1, 1], [], []>} : vector<16x32xbf16>, vector<32x32xbf16>, vector<16x32xf32> -> vector<16x32xf32>
    %29 = vector.broadcast %18 : vector<1x32xf32> to vector<16x32xf32>
    %30 = arith.addf %28, %29 : vector<16x32xf32>
    %cst_21 = arith.constant 0.000000e+00 : f32
    %31 = vector.broadcast %cst_21 : f32 to vector<16x32xf32>
    %32 = arith.maximumf %30, %31 : vector<16x32xf32>
    %c104 = arith.constant 104 : index
    %c0_22 = arith.constant 0 : index
    %33 = vector.load %arg5[%c104, %c0_22] : memref<424x32xbf16, #tpu.memory_space<vmem>>, vector<32x32xbf16>
    %c136 = arith.constant 136 : index
    %c0_23 = arith.constant 0 : index
    %34 = vector.load %arg5[%c136, %c0_23] : memref<424x32xbf16, #tpu.memory_space<vmem>>, vector<1x32xbf16>
    %35 = arith.extf %34 : vector<1x32xbf16> to vector<1x32xf32>
    %c144 = arith.constant 144 : index
    %c0_24 = arith.constant 0 : index
    %36 = vector.load %arg5[%c144, %c0_24] : memref<424x32xbf16, #tpu.memory_space<vmem>>, vector<32x32xbf16>
    %c176 = arith.constant 176 : index
    %c0_25 = arith.constant 0 : index
    %37 = vector.load %arg5[%c176, %c0_25] : memref<424x32xbf16, #tpu.memory_space<vmem>>, vector<1x32xbf16>
    %38 = arith.extf %37 : vector<1x32xbf16> to vector<1x32xf32>
    %39 = arith.truncf %32 : vector<16x32xf32> to vector<16x32xbf16>
    %cst_26 = arith.constant dense<0.000000e+00> : vector<16x32xf32>
    %40 = tpu.matmul %5, %39, %cst_26 {dimension_numbers = #tpu.dot_dimension_numbers<[1], [0], [0], [1], [0, 0, 1, 1], [], []>} : vector<16x16xbf16>, vector<16x32xbf16>, vector<16x32xf32> -> vector<16x32xf32>
    %41 = arith.truncf %40 : vector<16x32xf32> to vector<16x32xbf16>
    %cst_27 = arith.constant dense<0.000000e+00> : vector<16x32xf32>
    %42 = tpu.matmul %41, %33, %cst_27 {dimension_numbers = #tpu.dot_dimension_numbers<[1], [0], [0], [1], [0, 0, 1, 1], [], []>} : vector<16x32xbf16>, vector<32x32xbf16>, vector<16x32xf32> -> vector<16x32xf32>
    %43 = vector.broadcast %35 : vector<1x32xf32> to vector<16x32xf32>
    %44 = arith.addf %42, %43 : vector<16x32xf32>
    %cst_28 = arith.constant 0.000000e+00 : f32
    %45 = vector.broadcast %cst_28 : f32 to vector<16x32xf32>
    %46 = arith.maximumf %44, %45 : vector<16x32xf32>
    %47 = arith.truncf %46 : vector<16x32xf32> to vector<16x32xbf16>
    %cst_29 = arith.constant dense<0.000000e+00> : vector<16x32xf32>
    %48 = tpu.matmul %47, %36, %cst_29 {dimension_numbers = #tpu.dot_dimension_numbers<[1], [0], [0], [1], [0, 0, 1, 1], [], []>} : vector<16x32xbf16>, vector<32x32xbf16>, vector<16x32xf32> -> vector<16x32xf32>
    %49 = vector.broadcast %38 : vector<1x32xf32> to vector<16x32xf32>
    %50 = arith.addf %48, %49 : vector<16x32xf32>
    %cst_30 = arith.constant 0.000000e+00 : f32
    %51 = vector.broadcast %cst_30 : f32 to vector<16x32xf32>
    %52 = arith.maximumf %50, %51 : vector<16x32xf32>
    %c184 = arith.constant 184 : index
    %c0_31 = arith.constant 0 : index
    %53 = vector.load %arg5[%c184, %c0_31] : memref<424x32xbf16, #tpu.memory_space<vmem>>, vector<32x32xbf16>
    %c216 = arith.constant 216 : index
    %c0_32 = arith.constant 0 : index
    %54 = vector.load %arg5[%c216, %c0_32] : memref<424x32xbf16, #tpu.memory_space<vmem>>, vector<1x32xbf16>
    %55 = arith.extf %54 : vector<1x32xbf16> to vector<1x32xf32>
    %c224 = arith.constant 224 : index
    %c0_33 = arith.constant 0 : index
    %56 = vector.load %arg5[%c224, %c0_33] : memref<424x32xbf16, #tpu.memory_space<vmem>>, vector<32x32xbf16>
    %c256 = arith.constant 256 : index
    %c0_34 = arith.constant 0 : index
    %57 = vector.load %arg5[%c256, %c0_34] : memref<424x32xbf16, #tpu.memory_space<vmem>>, vector<1x32xbf16>
    %58 = arith.extf %57 : vector<1x32xbf16> to vector<1x32xf32>
    %59 = arith.truncf %52 : vector<16x32xf32> to vector<16x32xbf16>
    %cst_35 = arith.constant dense<0.000000e+00> : vector<16x32xf32>
    %60 = tpu.matmul %5, %59, %cst_35 {dimension_numbers = #tpu.dot_dimension_numbers<[1], [0], [0], [1], [0, 0, 1, 1], [], []>} : vector<16x16xbf16>, vector<16x32xbf16>, vector<16x32xf32> -> vector<16x32xf32>
    %61 = arith.truncf %60 : vector<16x32xf32> to vector<16x32xbf16>
    %cst_36 = arith.constant dense<0.000000e+00> : vector<16x32xf32>
    %62 = tpu.matmul %61, %53, %cst_36 {dimension_numbers = #tpu.dot_dimension_numbers<[1], [0], [0], [1], [0, 0, 1, 1], [], []>} : vector<16x32xbf16>, vector<32x32xbf16>, vector<16x32xf32> -> vector<16x32xf32>
    %63 = vector.broadcast %55 : vector<1x32xf32> to vector<16x32xf32>
    %64 = arith.addf %62, %63 : vector<16x32xf32>
    %cst_37 = arith.constant 0.000000e+00 : f32
    %65 = vector.broadcast %cst_37 : f32 to vector<16x32xf32>
    %66 = arith.maximumf %64, %65 : vector<16x32xf32>
    %67 = arith.truncf %66 : vector<16x32xf32> to vector<16x32xbf16>
    %cst_38 = arith.constant dense<0.000000e+00> : vector<16x32xf32>
    %68 = tpu.matmul %67, %56, %cst_38 {dimension_numbers = #tpu.dot_dimension_numbers<[1], [0], [0], [1], [0, 0, 1, 1], [], []>} : vector<16x32xbf16>, vector<32x32xbf16>, vector<16x32xf32> -> vector<16x32xf32>
    %69 = vector.broadcast %58 : vector<1x32xf32> to vector<16x32xf32>
    %70 = arith.addf %68, %69 : vector<16x32xf32>
    %cst_39 = arith.constant 0.000000e+00 : f32
    %71 = vector.broadcast %cst_39 : f32 to vector<16x32xf32>
    %72 = arith.maximumf %70, %71 : vector<16x32xf32>
    %c264 = arith.constant 264 : index
    %c0_40 = arith.constant 0 : index
    %73 = vector.load %arg5[%c264, %c0_40] : memref<424x32xbf16, #tpu.memory_space<vmem>>, vector<32x32xbf16>
    %c296 = arith.constant 296 : index
    %c0_41 = arith.constant 0 : index
    %74 = vector.load %arg5[%c296, %c0_41] : memref<424x32xbf16, #tpu.memory_space<vmem>>, vector<1x32xbf16>
    %75 = arith.extf %74 : vector<1x32xbf16> to vector<1x32xf32>
    %c304 = arith.constant 304 : index
    %c0_42 = arith.constant 0 : index
    %76 = vector.load %arg5[%c304, %c0_42] : memref<424x32xbf16, #tpu.memory_space<vmem>>, vector<32x32xbf16>
    %c336 = arith.constant 336 : index
    %c0_43 = arith.constant 0 : index
    %77 = vector.load %arg5[%c336, %c0_43] : memref<424x32xbf16, #tpu.memory_space<vmem>>, vector<1x32xbf16>
    %78 = arith.extf %77 : vector<1x32xbf16> to vector<1x32xf32>
    %79 = arith.truncf %72 : vector<16x32xf32> to vector<16x32xbf16>
    %cst_44 = arith.constant dense<0.000000e+00> : vector<16x32xf32>
    %80 = tpu.matmul %5, %79, %cst_44 {dimension_numbers = #tpu.dot_dimension_numbers<[1], [0], [0], [1], [0, 0, 1, 1], [], []>} : vector<16x16xbf16>, vector<16x32xbf16>, vector<16x32xf32> -> vector<16x32xf32>
    %81 = arith.truncf %80 : vector<16x32xf32> to vector<16x32xbf16>
    %cst_45 = arith.constant dense<0.000000e+00> : vector<16x32xf32>
    %82 = tpu.matmul %81, %73, %cst_45 {dimension_numbers = #tpu.dot_dimension_numbers<[1], [0], [0], [1], [0, 0, 1, 1], [], []>} : vector<16x32xbf16>, vector<32x32xbf16>, vector<16x32xf32> -> vector<16x32xf32>
    %83 = vector.broadcast %75 : vector<1x32xf32> to vector<16x32xf32>
    %84 = arith.addf %82, %83 : vector<16x32xf32>
    %cst_46 = arith.constant 0.000000e+00 : f32
    %85 = vector.broadcast %cst_46 : f32 to vector<16x32xf32>
    %86 = arith.maximumf %84, %85 : vector<16x32xf32>
    %87 = arith.truncf %86 : vector<16x32xf32> to vector<16x32xbf16>
    %cst_47 = arith.constant dense<0.000000e+00> : vector<16x32xf32>
    %88 = tpu.matmul %87, %76, %cst_47 {dimension_numbers = #tpu.dot_dimension_numbers<[1], [0], [0], [1], [0, 0, 1, 1], [], []>} : vector<16x32xbf16>, vector<32x32xbf16>, vector<16x32xf32> -> vector<16x32xf32>
    %89 = vector.broadcast %78 : vector<1x32xf32> to vector<16x32xf32>
    %90 = arith.addf %88, %89 : vector<16x32xf32>
    %cst_48 = arith.constant 0.000000e+00 : f32
    %91 = vector.broadcast %cst_48 : f32 to vector<16x32xf32>
    %92 = arith.maximumf %90, %91 : vector<16x32xf32>
    %c344 = arith.constant 344 : index
    %c0_49 = arith.constant 0 : index
    %93 = vector.load %arg5[%c344, %c0_49] : memref<424x32xbf16, #tpu.memory_space<vmem>>, vector<32x32xbf16>
    %c376 = arith.constant 376 : index
    %c0_50 = arith.constant 0 : index
    %94 = vector.load %arg5[%c376, %c0_50] : memref<424x32xbf16, #tpu.memory_space<vmem>>, vector<1x32xbf16>
    %95 = arith.extf %94 : vector<1x32xbf16> to vector<1x32xf32>
    %c384 = arith.constant 384 : index
    %c0_51 = arith.constant 0 : index
    %96 = vector.load %arg5[%c384, %c0_51] : memref<424x32xbf16, #tpu.memory_space<vmem>>, vector<32x32xbf16>
    %c416 = arith.constant 416 : index
    %c0_52 = arith.constant 0 : index
    %97 = vector.load %arg5[%c416, %c0_52] : memref<424x32xbf16, #tpu.memory_space<vmem>>, vector<1x32xbf16>
    %98 = arith.extf %97 : vector<1x32xbf16> to vector<1x32xf32>
    %99 = arith.truncf %92 : vector<16x32xf32> to vector<16x32xbf16>
    %cst_53 = arith.constant dense<0.000000e+00> : vector<16x32xf32>
    %100 = tpu.matmul %5, %99, %cst_53 {dimension_numbers = #tpu.dot_dimension_numbers<[1], [0], [0], [1], [0, 0, 1, 1], [], []>} : vector<16x16xbf16>, vector<16x32xbf16>, vector<16x32xf32> -> vector<16x32xf32>
    %101 = arith.truncf %100 : vector<16x32xf32> to vector<16x32xbf16>
    %cst_54 = arith.constant dense<0.000000e+00> : vector<16x32xf32>
    %102 = tpu.matmul %101, %93, %cst_54 {dimension_numbers = #tpu.dot_dimension_numbers<[1], [0], [0], [1], [0, 0, 1, 1], [], []>} : vector<16x32xbf16>, vector<32x32xbf16>, vector<16x32xf32> -> vector<16x32xf32>
    %103 = vector.broadcast %95 : vector<1x32xf32> to vector<16x32xf32>
    %104 = arith.addf %102, %103 : vector<16x32xf32>
    %cst_55 = arith.constant 0.000000e+00 : f32
    %105 = vector.broadcast %cst_55 : f32 to vector<16x32xf32>
    %106 = arith.maximumf %104, %105 : vector<16x32xf32>
    %107 = arith.truncf %106 : vector<16x32xf32> to vector<16x32xbf16>
    %cst_56 = arith.constant dense<0.000000e+00> : vector<16x32xf32>
    %108 = tpu.matmul %107, %96, %cst_56 {dimension_numbers = #tpu.dot_dimension_numbers<[1], [0], [0], [1], [0, 0, 1, 1], [], []>} : vector<16x32xbf16>, vector<32x32xbf16>, vector<16x32xf32> -> vector<16x32xf32>
    %109 = vector.broadcast %98 : vector<1x32xf32> to vector<16x32xf32>
    %110 = arith.addf %108, %109 : vector<16x32xf32>
    %111 = arith.truncf %110 : vector<16x32xf32> to vector<16x32xbf16>
    %cst_57 = arith.constant dense<0.000000e+00> : vector<8x32xf32>
    %112 = tpu.matmul %6, %111, %cst_57 {dimension_numbers = #tpu.dot_dimension_numbers<[1], [0], [0], [1], [0, 0, 1, 1], [], []>} : vector<8x16xbf16>, vector<16x32xbf16>, vector<8x32xf32> -> vector<8x32xf32>
    %113 = tpu.iota {dimensions = array<i32: 1>} : vector<8x8xi32>
    %114 = vector.broadcast %2 : vector<8x1xi32> to vector<8x8xi32>
    %115 = arith.cmpi eq, %114, %113 : vector<8x8xi32>
    %116 = arith.extui %115 : vector<8x8xi1> to vector<8x8xi32>
    %117 = arith.sitofp %116 : vector<8x8xi32> to vector<8x8xf32>
    %118 = arith.truncf %117 : vector<8x8xf32> to vector<8x8xbf16>
    %119 = arith.truncf %112 : vector<8x32xf32> to vector<8x32xbf16>
    %cst_58 = arith.constant dense<0.000000e+00> : vector<8x32xf32>
    %120 = tpu.matmul %118, %119, %cst_58 {dimension_numbers = #tpu.dot_dimension_numbers<[1], [0], [0], [1], [0, 0, 1, 1], [], []>} : vector<8x8xbf16>, vector<8x32xbf16>, vector<8x32xf32> -> vector<8x32xf32>
    %c0_59 = arith.constant 0 : index
    %c0_60 = arith.constant 0 : index
    %121 = vector.load %arg2[%c0_59, %c0_60] : memref<128x128xbf16, #tpu.memory_space<vmem>>, vector<32x128xbf16>
    %c32_61 = arith.constant 32 : index
    %c0_62 = arith.constant 0 : index
    %122 = vector.load %arg2[%c32_61, %c0_62] : memref<128x128xbf16, #tpu.memory_space<vmem>>, vector<32x128xbf16>
    %c64_63 = arith.constant 64 : index
    %c0_64 = arith.constant 0 : index
    %123 = vector.load %arg2[%c64_63, %c0_64] : memref<128x128xbf16, #tpu.memory_space<vmem>>, vector<64x128xbf16>
    %c0_65 = arith.constant 0 : index
    %c0_66 = arith.constant 0 : index
    %124 = vector.load %arg3[%c0_65, %c0_66] : memref<72x128xf32, #tpu.memory_space<vmem>>, vector<1x128xf32>
    %c8 = arith.constant 8 : index
    %c0_67 = arith.constant 0 : index
    %125 = vector.load %arg3[%c8, %c0_67] : memref<72x128xf32, #tpu.memory_space<vmem>>, vector<1x128xf32>
    %126 = tpu.iota {dimensions = array<i32: 1>} : vector<64x32xi32>
    %127 = vector.broadcast %0 : vector<64x1xi32> to vector<64x32xi32>
    %128 = arith.cmpi eq, %127, %126 : vector<64x32xi32>
    %129 = arith.extui %128 : vector<64x32xi1> to vector<64x32xi32>
    %130 = arith.sitofp %129 : vector<64x32xi32> to vector<64x32xf32>
    %131 = arith.truncf %130 : vector<64x32xf32> to vector<64x32xbf16>
    %cst_68 = arith.constant dense<0.000000e+00> : vector<64x128xf32>
    %132 = tpu.matmul %131, %121, %cst_68 {dimension_numbers = #tpu.dot_dimension_numbers<[1], [0], [0], [1], [0, 0, 1, 1], [], []>} : vector<64x32xbf16>, vector<32x128xbf16>, vector<64x128xf32> -> vector<64x128xf32>
    %133 = vector.broadcast %124 : vector<1x128xf32> to vector<64x128xf32>
    %134 = arith.addf %132, %133 : vector<64x128xf32>
    %135 = tpu.iota {dimensions = array<i32: 1>} : vector<1x128xi32>
    %c64_i32 = arith.constant 64 : i32
    %136 = vector.broadcast %c64_i32 : i32 to vector<1x128xi32>
    %137 = arith.cmpi sge, %135, %136 : vector<1x128xi32>
    %c96_i32 = arith.constant 96 : i32
    %138 = vector.broadcast %c96_i32 : i32 to vector<1x128xi32>
    %139 = arith.cmpi slt, %135, %138 : vector<1x128xi32>
    %140 = arith.andi %137, %139 : vector<1x128xi1>
    %cst_69 = arith.constant 1.000000e+00 : f32
    %cst_70 = arith.constant 5.000000e-01 : f32
    %141 = vector.broadcast %cst_69 : f32 to vector<1x128xf32>
    %142 = vector.broadcast %cst_70 : f32 to vector<1x128xf32>
    %143 = arith.select %140, %141, %142 : vector<1x128xi1>, vector<1x128xf32>
    %cst_71 = arith.constant 0.000000e+00 : f32
    %cst_72 = arith.constant 5.000000e-01 : f32
    %144 = vector.broadcast %cst_71 : f32 to vector<1x128xf32>
    %145 = vector.broadcast %cst_72 : f32 to vector<1x128xf32>
    %146 = arith.select %140, %144, %145 : vector<1x128xi1>, vector<1x128xf32>
    %cst_73 = arith.constant 0.000000e+00 : f32
    %147 = vector.broadcast %cst_73 : f32 to vector<8x32xf32>
    %148 = vector.extract_strided_slice %134 {offsets = [0, 0], sizes = [8, 128], strides = [1, 1]} : vector<64x128xf32> to vector<8x128xf32>
    %149 = arith.truncf %147 : vector<8x32xf32> to vector<8x32xbf16>
    %cst_74 = arith.constant dense<0.000000e+00> : vector<8x128xf32>
    %150 = tpu.matmul %149, %122, %cst_74 {dimension_numbers = #tpu.dot_dimension_numbers<[1], [0], [0], [1], [0, 0, 1, 1], [], []>} : vector<8x32xbf16>, vector<32x128xbf16>, vector<8x128xf32> -> vector<8x128xf32>
    %151 = arith.addf %148, %150 : vector<8x128xf32>
    %152 = vector.broadcast %143 : vector<1x128xf32> to vector<8x128xf32>
    %153 = arith.mulf %152, %151 : vector<8x128xf32>
    %154 = math.tanh %153 : vector<8x128xf32>
    %155 = vector.broadcast %143 : vector<1x128xf32> to vector<8x128xf32>
    %156 = arith.mulf %155, %154 : vector<8x128xf32>
    %157 = vector.broadcast %146 : vector<1x128xf32> to vector<8x128xf32>
    %158 = arith.addf %156, %157 : vector<8x128xf32>
    %159 = vector.extract_strided_slice %158 {offsets = [0, 0], sizes = [8, 32], strides = [1, 1]} : vector<8x128xf32> to vector<8x32xf32>
    %160 = vector.extract_strided_slice %158 {offsets = [0, 32], sizes = [8, 32], strides = [1, 1]} : vector<8x128xf32> to vector<8x32xf32>
    %161 = vector.extract_strided_slice %158 {offsets = [0, 64], sizes = [8, 32], strides = [1, 1]} : vector<8x128xf32> to vector<8x32xf32>
    %162 = vector.extract_strided_slice %158 {offsets = [0, 96], sizes = [8, 32], strides = [1, 1]} : vector<8x128xf32> to vector<8x32xf32>
    %163 = arith.mulf %160, %147 : vector<8x32xf32>
    %164 = arith.mulf %159, %161 : vector<8x32xf32>
    %165 = arith.addf %163, %164 : vector<8x32xf32>
    %166 = math.tanh %165 : vector<8x32xf32>
    %167 = arith.mulf %162, %166 : vector<8x32xf32>
    %168 = tpu.concatenate %167, %147 in 1 : vector<8x32xf32>, vector<8x32xf32> -> vector<8x64xf32>
    %169 = arith.truncf %168 : vector<8x64xf32> to vector<8x64xbf16>
    %cst_75 = arith.constant dense<0.000000e+00> : vector<8x128xf32>
    %170 = tpu.matmul %169, %123, %cst_75 {dimension_numbers = #tpu.dot_dimension_numbers<[1], [0], [0], [1], [0, 0, 1, 1], [], []>} : vector<8x64xbf16>, vector<64x128xbf16>, vector<8x128xf32> -> vector<8x128xf32>
    %171 = vector.broadcast %125 : vector<1x128xf32> to vector<8x128xf32>
    %172 = arith.addf %170, %171 : vector<8x128xf32>
    %173 = vector.broadcast %143 : vector<1x128xf32> to vector<8x128xf32>
    %174 = arith.mulf %173, %172 : vector<8x128xf32>
    %175 = math.tanh %174 : vector<8x128xf32>
    %176 = vector.broadcast %143 : vector<1x128xf32> to vector<8x128xf32>
    %177 = arith.mulf %176, %175 : vector<8x128xf32>
    %178 = vector.broadcast %146 : vector<1x128xf32> to vector<8x128xf32>
    %179 = arith.addf %177, %178 : vector<8x128xf32>
    %180 = vector.extract_strided_slice %179 {offsets = [0, 0], sizes = [8, 32], strides = [1, 1]} : vector<8x128xf32> to vector<8x32xf32>
    %181 = vector.extract_strided_slice %179 {offsets = [0, 32], sizes = [8, 32], strides = [1, 1]} : vector<8x128xf32> to vector<8x32xf32>
    %182 = vector.extract_strided_slice %179 {offsets = [0, 64], sizes = [8, 32], strides = [1, 1]} : vector<8x128xf32> to vector<8x32xf32>
    %183 = vector.extract_strided_slice %179 {offsets = [0, 96], sizes = [8, 32], strides = [1, 1]} : vector<8x128xf32> to vector<8x32xf32>
    %184 = arith.mulf %181, %147 : vector<8x32xf32>
    %185 = arith.mulf %180, %182 : vector<8x32xf32>
    %186 = arith.addf %184, %185 : vector<8x32xf32>
    %187 = math.tanh %186 : vector<8x32xf32>
    %188 = arith.mulf %183, %187 : vector<8x32xf32>
    %c1_i32 = arith.constant 1 : i32
    %189 = vector.broadcast %c1_i32 : i32 to vector<1x1xi32>
    %190 = arith.cmpi eq, %3, %189 : vector<1x1xi32>
    %191 = arith.extui %190 : vector<1x1xi1> to vector<1x1xi32>
    %192 = arith.sitofp %191 : vector<1x1xi32> to vector<1x1xf32>
    %193 = vector.broadcast %192 : vector<1x1xf32> to vector<8x32xf32>
    %194 = arith.mulf %193, %188 : vector<8x32xf32>
    %cst_76 = arith.constant 1.000000e+00 : f32
    %195 = vector.broadcast %cst_76 : f32 to vector<1x1xf32>
    %196 = arith.subf %195, %192 : vector<1x1xf32>
    %197 = vector.broadcast %196 : vector<1x1xf32> to vector<8x32xf32>
    %198 = arith.mulf %197, %147 : vector<8x32xf32>
    %199 = arith.addf %194, %198 : vector<8x32xf32>
    %200 = vector.extract_strided_slice %134 {offsets = [8, 0], sizes = [8, 128], strides = [1, 1]} : vector<64x128xf32> to vector<8x128xf32>
    %201 = arith.truncf %167 : vector<8x32xf32> to vector<8x32xbf16>
    %cst_77 = arith.constant dense<0.000000e+00> : vector<8x128xf32>
    %202 = tpu.matmul %201, %122, %cst_77 {dimension_numbers = #tpu.dot_dimension_numbers<[1], [0], [0], [1], [0, 0, 1, 1], [], []>} : vector<8x32xbf16>, vector<32x128xbf16>, vector<8x128xf32> -> vector<8x128xf32>
    %203 = arith.addf %200, %202 : vector<8x128xf32>
    %204 = vector.broadcast %143 : vector<1x128xf32> to vector<8x128xf32>
    %205 = arith.mulf %204, %203 : vector<8x128xf32>
    %206 = math.tanh %205 : vector<8x128xf32>
    %207 = vector.broadcast %143 : vector<1x128xf32> to vector<8x128xf32>
    %208 = arith.mulf %207, %206 : vector<8x128xf32>
    %209 = vector.broadcast %146 : vector<1x128xf32> to vector<8x128xf32>
    %210 = arith.addf %208, %209 : vector<8x128xf32>
    %211 = vector.extract_strided_slice %210 {offsets = [0, 0], sizes = [8, 32], strides = [1, 1]} : vector<8x128xf32> to vector<8x32xf32>
    %212 = vector.extract_strided_slice %210 {offsets = [0, 32], sizes = [8, 32], strides = [1, 1]} : vector<8x128xf32> to vector<8x32xf32>
    %213 = vector.extract_strided_slice %210 {offsets = [0, 64], sizes = [8, 32], strides = [1, 1]} : vector<8x128xf32> to vector<8x32xf32>
    %214 = vector.extract_strided_slice %210 {offsets = [0, 96], sizes = [8, 32], strides = [1, 1]} : vector<8x128xf32> to vector<8x32xf32>
    %215 = arith.mulf %212, %165 : vector<8x32xf32>
    %216 = arith.mulf %211, %213 : vector<8x32xf32>
    %217 = arith.addf %215, %216 : vector<8x32xf32>
    %218 = math.tanh %217 : vector<8x32xf32>
    %219 = arith.mulf %214, %218 : vector<8x32xf32>
    %220 = tpu.concatenate %219, %188 in 1 : vector<8x32xf32>, vector<8x32xf32> -> vector<8x64xf32>
    %221 = arith.truncf %220 : vector<8x64xf32> to vector<8x64xbf16>
    %cst_78 = arith.constant dense<0.000000e+00> : vector<8x128xf32>
    %222 = tpu.matmul %221, %123, %cst_78 {dimension_numbers = #tpu.dot_dimension_numbers<[1], [0], [0], [1], [0, 0, 1, 1], [], []>} : vector<8x64xbf16>, vector<64x128xbf16>, vector<8x128xf32> -> vector<8x128xf32>
    %223 = vector.broadcast %125 : vector<1x128xf32> to vector<8x128xf32>
    %224 = arith.addf %222, %223 : vector<8x128xf32>
    %225 = vector.broadcast %143 : vector<1x128xf32> to vector<8x128xf32>
    %226 = arith.mulf %225, %224 : vector<8x128xf32>
    %227 = math.tanh %226 : vector<8x128xf32>
    %228 = vector.broadcast %143 : vector<1x128xf32> to vector<8x128xf32>
    %229 = arith.mulf %228, %227 : vector<8x128xf32>
    %230 = vector.broadcast %146 : vector<1x128xf32> to vector<8x128xf32>
    %231 = arith.addf %229, %230 : vector<8x128xf32>
    %232 = vector.extract_strided_slice %231 {offsets = [0, 0], sizes = [8, 32], strides = [1, 1]} : vector<8x128xf32> to vector<8x32xf32>
    %233 = vector.extract_strided_slice %231 {offsets = [0, 32], sizes = [8, 32], strides = [1, 1]} : vector<8x128xf32> to vector<8x32xf32>
    %234 = vector.extract_strided_slice %231 {offsets = [0, 64], sizes = [8, 32], strides = [1, 1]} : vector<8x128xf32> to vector<8x32xf32>
    %235 = vector.extract_strided_slice %231 {offsets = [0, 96], sizes = [8, 32], strides = [1, 1]} : vector<8x128xf32> to vector<8x32xf32>
    %236 = arith.mulf %233, %186 : vector<8x32xf32>
    %237 = arith.mulf %232, %234 : vector<8x32xf32>
    %238 = arith.addf %236, %237 : vector<8x32xf32>
    %239 = math.tanh %238 : vector<8x32xf32>
    %240 = arith.mulf %235, %239 : vector<8x32xf32>
    %c2_i32 = arith.constant 2 : i32
    %241 = vector.broadcast %c2_i32 : i32 to vector<1x1xi32>
    %242 = arith.cmpi eq, %3, %241 : vector<1x1xi32>
    %243 = arith.extui %242 : vector<1x1xi1> to vector<1x1xi32>
    %244 = arith.sitofp %243 : vector<1x1xi32> to vector<1x1xf32>
    %245 = vector.broadcast %244 : vector<1x1xf32> to vector<8x32xf32>
    %246 = arith.mulf %245, %240 : vector<8x32xf32>
    %cst_79 = arith.constant 1.000000e+00 : f32
    %247 = vector.broadcast %cst_79 : f32 to vector<1x1xf32>
    %248 = arith.subf %247, %244 : vector<1x1xf32>
    %249 = vector.broadcast %248 : vector<1x1xf32> to vector<8x32xf32>
    %250 = arith.mulf %249, %199 : vector<8x32xf32>
    %251 = arith.addf %246, %250 : vector<8x32xf32>
    %252 = vector.extract_strided_slice %134 {offsets = [16, 0], sizes = [8, 128], strides = [1, 1]} : vector<64x128xf32> to vector<8x128xf32>
    %253 = arith.truncf %219 : vector<8x32xf32> to vector<8x32xbf16>
    %cst_80 = arith.constant dense<0.000000e+00> : vector<8x128xf32>
    %254 = tpu.matmul %253, %122, %cst_80 {dimension_numbers = #tpu.dot_dimension_numbers<[1], [0], [0], [1], [0, 0, 1, 1], [], []>} : vector<8x32xbf16>, vector<32x128xbf16>, vector<8x128xf32> -> vector<8x128xf32>
    %255 = arith.addf %252, %254 : vector<8x128xf32>
    %256 = vector.broadcast %143 : vector<1x128xf32> to vector<8x128xf32>
    %257 = arith.mulf %256, %255 : vector<8x128xf32>
    %258 = math.tanh %257 : vector<8x128xf32>
    %259 = vector.broadcast %143 : vector<1x128xf32> to vector<8x128xf32>
    %260 = arith.mulf %259, %258 : vector<8x128xf32>
    %261 = vector.broadcast %146 : vector<1x128xf32> to vector<8x128xf32>
    %262 = arith.addf %260, %261 : vector<8x128xf32>
    %263 = vector.extract_strided_slice %262 {offsets = [0, 0], sizes = [8, 32], strides = [1, 1]} : vector<8x128xf32> to vector<8x32xf32>
    %264 = vector.extract_strided_slice %262 {offsets = [0, 32], sizes = [8, 32], strides = [1, 1]} : vector<8x128xf32> to vector<8x32xf32>
    %265 = vector.extract_strided_slice %262 {offsets = [0, 64], sizes = [8, 32], strides = [1, 1]} : vector<8x128xf32> to vector<8x32xf32>
    %266 = vector.extract_strided_slice %262 {offsets = [0, 96], sizes = [8, 32], strides = [1, 1]} : vector<8x128xf32> to vector<8x32xf32>
    %267 = arith.mulf %264, %217 : vector<8x32xf32>
    %268 = arith.mulf %263, %265 : vector<8x32xf32>
    %269 = arith.addf %267, %268 : vector<8x32xf32>
    %270 = math.tanh %269 : vector<8x32xf32>
    %271 = arith.mulf %266, %270 : vector<8x32xf32>
    %272 = tpu.concatenate %271, %240 in 1 : vector<8x32xf32>, vector<8x32xf32> -> vector<8x64xf32>
    %273 = arith.truncf %272 : vector<8x64xf32> to vector<8x64xbf16>
    %cst_81 = arith.constant dense<0.000000e+00> : vector<8x128xf32>
    %274 = tpu.matmul %273, %123, %cst_81 {dimension_numbers = #tpu.dot_dimension_numbers<[1], [0], [0], [1], [0, 0, 1, 1], [], []>} : vector<8x64xbf16>, vector<64x128xbf16>, vector<8x128xf32> -> vector<8x128xf32>
    %275 = vector.broadcast %125 : vector<1x128xf32> to vector<8x128xf32>
    %276 = arith.addf %274, %275 : vector<8x128xf32>
    %277 = vector.broadcast %143 : vector<1x128xf32> to vector<8x128xf32>
    %278 = arith.mulf %277, %276 : vector<8x128xf32>
    %279 = math.tanh %278 : vector<8x128xf32>
    %280 = vector.broadcast %143 : vector<1x128xf32> to vector<8x128xf32>
    %281 = arith.mulf %280, %279 : vector<8x128xf32>
    %282 = vector.broadcast %146 : vector<1x128xf32> to vector<8x128xf32>
    %283 = arith.addf %281, %282 : vector<8x128xf32>
    %284 = vector.extract_strided_slice %283 {offsets = [0, 0], sizes = [8, 32], strides = [1, 1]} : vector<8x128xf32> to vector<8x32xf32>
    %285 = vector.extract_strided_slice %283 {offsets = [0, 32], sizes = [8, 32], strides = [1, 1]} : vector<8x128xf32> to vector<8x32xf32>
    %286 = vector.extract_strided_slice %283 {offsets = [0, 64], sizes = [8, 32], strides = [1, 1]} : vector<8x128xf32> to vector<8x32xf32>
    %287 = vector.extract_strided_slice %283 {offsets = [0, 96], sizes = [8, 32], strides = [1, 1]} : vector<8x128xf32> to vector<8x32xf32>
    %288 = arith.mulf %285, %238 : vector<8x32xf32>
    %289 = arith.mulf %284, %286 : vector<8x32xf32>
    %290 = arith.addf %288, %289 : vector<8x32xf32>
    %291 = math.tanh %290 : vector<8x32xf32>
    %292 = arith.mulf %287, %291 : vector<8x32xf32>
    %c3_i32 = arith.constant 3 : i32
    %293 = vector.broadcast %c3_i32 : i32 to vector<1x1xi32>
    %294 = arith.cmpi eq, %3, %293 : vector<1x1xi32>
    %295 = arith.extui %294 : vector<1x1xi1> to vector<1x1xi32>
    %296 = arith.sitofp %295 : vector<1x1xi32> to vector<1x1xf32>
    %297 = vector.broadcast %296 : vector<1x1xf32> to vector<8x32xf32>
    %298 = arith.mulf %297, %292 : vector<8x32xf32>
    %cst_82 = arith.constant 1.000000e+00 : f32
    %299 = vector.broadcast %cst_82 : f32 to vector<1x1xf32>
    %300 = arith.subf %299, %296 : vector<1x1xf32>
    %301 = vector.broadcast %300 : vector<1x1xf32> to vector<8x32xf32>
    %302 = arith.mulf %301, %251 : vector<8x32xf32>
    %303 = arith.addf %298, %302 : vector<8x32xf32>
    %304 = vector.extract_strided_slice %134 {offsets = [24, 0], sizes = [8, 128], strides = [1, 1]} : vector<64x128xf32> to vector<8x128xf32>
    %305 = arith.truncf %271 : vector<8x32xf32> to vector<8x32xbf16>
    %cst_83 = arith.constant dense<0.000000e+00> : vector<8x128xf32>
    %306 = tpu.matmul %305, %122, %cst_83 {dimension_numbers = #tpu.dot_dimension_numbers<[1], [0], [0], [1], [0, 0, 1, 1], [], []>} : vector<8x32xbf16>, vector<32x128xbf16>, vector<8x128xf32> -> vector<8x128xf32>
    %307 = arith.addf %304, %306 : vector<8x128xf32>
    %308 = vector.broadcast %143 : vector<1x128xf32> to vector<8x128xf32>
    %309 = arith.mulf %308, %307 : vector<8x128xf32>
    %310 = math.tanh %309 : vector<8x128xf32>
    %311 = vector.broadcast %143 : vector<1x128xf32> to vector<8x128xf32>
    %312 = arith.mulf %311, %310 : vector<8x128xf32>
    %313 = vector.broadcast %146 : vector<1x128xf32> to vector<8x128xf32>
    %314 = arith.addf %312, %313 : vector<8x128xf32>
    %315 = vector.extract_strided_slice %314 {offsets = [0, 0], sizes = [8, 32], strides = [1, 1]} : vector<8x128xf32> to vector<8x32xf32>
    %316 = vector.extract_strided_slice %314 {offsets = [0, 32], sizes = [8, 32], strides = [1, 1]} : vector<8x128xf32> to vector<8x32xf32>
    %317 = vector.extract_strided_slice %314 {offsets = [0, 64], sizes = [8, 32], strides = [1, 1]} : vector<8x128xf32> to vector<8x32xf32>
    %318 = vector.extract_strided_slice %314 {offsets = [0, 96], sizes = [8, 32], strides = [1, 1]} : vector<8x128xf32> to vector<8x32xf32>
    %319 = arith.mulf %316, %269 : vector<8x32xf32>
    %320 = arith.mulf %315, %317 : vector<8x32xf32>
    %321 = arith.addf %319, %320 : vector<8x32xf32>
    %322 = math.tanh %321 : vector<8x32xf32>
    %323 = arith.mulf %318, %322 : vector<8x32xf32>
    %324 = tpu.concatenate %323, %292 in 1 : vector<8x32xf32>, vector<8x32xf32> -> vector<8x64xf32>
    %325 = arith.truncf %324 : vector<8x64xf32> to vector<8x64xbf16>
    %cst_84 = arith.constant dense<0.000000e+00> : vector<8x128xf32>
    %326 = tpu.matmul %325, %123, %cst_84 {dimension_numbers = #tpu.dot_dimension_numbers<[1], [0], [0], [1], [0, 0, 1, 1], [], []>} : vector<8x64xbf16>, vector<64x128xbf16>, vector<8x128xf32> -> vector<8x128xf32>
    %327 = vector.broadcast %125 : vector<1x128xf32> to vector<8x128xf32>
    %328 = arith.addf %326, %327 : vector<8x128xf32>
    %329 = vector.broadcast %143 : vector<1x128xf32> to vector<8x128xf32>
    %330 = arith.mulf %329, %328 : vector<8x128xf32>
    %331 = math.tanh %330 : vector<8x128xf32>
    %332 = vector.broadcast %143 : vector<1x128xf32> to vector<8x128xf32>
    %333 = arith.mulf %332, %331 : vector<8x128xf32>
    %334 = vector.broadcast %146 : vector<1x128xf32> to vector<8x128xf32>
    %335 = arith.addf %333, %334 : vector<8x128xf32>
    %336 = vector.extract_strided_slice %335 {offsets = [0, 0], sizes = [8, 32], strides = [1, 1]} : vector<8x128xf32> to vector<8x32xf32>
    %337 = vector.extract_strided_slice %335 {offsets = [0, 32], sizes = [8, 32], strides = [1, 1]} : vector<8x128xf32> to vector<8x32xf32>
    %338 = vector.extract_strided_slice %335 {offsets = [0, 64], sizes = [8, 32], strides = [1, 1]} : vector<8x128xf32> to vector<8x32xf32>
    %339 = vector.extract_strided_slice %335 {offsets = [0, 96], sizes = [8, 32], strides = [1, 1]} : vector<8x128xf32> to vector<8x32xf32>
    %340 = arith.mulf %337, %290 : vector<8x32xf32>
    %341 = arith.mulf %336, %338 : vector<8x32xf32>
    %342 = arith.addf %340, %341 : vector<8x32xf32>
    %343 = math.tanh %342 : vector<8x32xf32>
    %344 = arith.mulf %339, %343 : vector<8x32xf32>
    %c4_i32 = arith.constant 4 : i32
    %345 = vector.broadcast %c4_i32 : i32 to vector<1x1xi32>
    %346 = arith.cmpi eq, %3, %345 : vector<1x1xi32>
    %347 = arith.extui %346 : vector<1x1xi1> to vector<1x1xi32>
    %348 = arith.sitofp %347 : vector<1x1xi32> to vector<1x1xf32>
    %349 = vector.broadcast %348 : vector<1x1xf32> to vector<8x32xf32>
    %350 = arith.mulf %349, %344 : vector<8x32xf32>
    %cst_85 = arith.constant 1.000000e+00 : f32
    %351 = vector.broadcast %cst_85 : f32 to vector<1x1xf32>
    %352 = arith.subf %351, %348 : vector<1x1xf32>
    %353 = vector.broadcast %352 : vector<1x1xf32> to vector<8x32xf32>
    %354 = arith.mulf %353, %303 : vector<8x32xf32>
    %355 = arith.addf %350, %354 : vector<8x32xf32>
    %356 = vector.extract_strided_slice %134 {offsets = [32, 0], sizes = [8, 128], strides = [1, 1]} : vector<64x128xf32> to vector<8x128xf32>
    %357 = arith.truncf %323 : vector<8x32xf32> to vector<8x32xbf16>
    %cst_86 = arith.constant dense<0.000000e+00> : vector<8x128xf32>
    %358 = tpu.matmul %357, %122, %cst_86 {dimension_numbers = #tpu.dot_dimension_numbers<[1], [0], [0], [1], [0, 0, 1, 1], [], []>} : vector<8x32xbf16>, vector<32x128xbf16>, vector<8x128xf32> -> vector<8x128xf32>
    %359 = arith.addf %356, %358 : vector<8x128xf32>
    %360 = vector.broadcast %143 : vector<1x128xf32> to vector<8x128xf32>
    %361 = arith.mulf %360, %359 : vector<8x128xf32>
    %362 = math.tanh %361 : vector<8x128xf32>
    %363 = vector.broadcast %143 : vector<1x128xf32> to vector<8x128xf32>
    %364 = arith.mulf %363, %362 : vector<8x128xf32>
    %365 = vector.broadcast %146 : vector<1x128xf32> to vector<8x128xf32>
    %366 = arith.addf %364, %365 : vector<8x128xf32>
    %367 = vector.extract_strided_slice %366 {offsets = [0, 0], sizes = [8, 32], strides = [1, 1]} : vector<8x128xf32> to vector<8x32xf32>
    %368 = vector.extract_strided_slice %366 {offsets = [0, 32], sizes = [8, 32], strides = [1, 1]} : vector<8x128xf32> to vector<8x32xf32>
    %369 = vector.extract_strided_slice %366 {offsets = [0, 64], sizes = [8, 32], strides = [1, 1]} : vector<8x128xf32> to vector<8x32xf32>
    %370 = vector.extract_strided_slice %366 {offsets = [0, 96], sizes = [8, 32], strides = [1, 1]} : vector<8x128xf32> to vector<8x32xf32>
    %371 = arith.mulf %368, %321 : vector<8x32xf32>
    %372 = arith.mulf %367, %369 : vector<8x32xf32>
    %373 = arith.addf %371, %372 : vector<8x32xf32>
    %374 = math.tanh %373 : vector<8x32xf32>
    %375 = arith.mulf %370, %374 : vector<8x32xf32>
    %376 = tpu.concatenate %375, %344 in 1 : vector<8x32xf32>, vector<8x32xf32> -> vector<8x64xf32>
    %377 = arith.truncf %376 : vector<8x64xf32> to vector<8x64xbf16>
    %cst_87 = arith.constant dense<0.000000e+00> : vector<8x128xf32>
    %378 = tpu.matmul %377, %123, %cst_87 {dimension_numbers = #tpu.dot_dimension_numbers<[1], [0], [0], [1], [0, 0, 1, 1], [], []>} : vector<8x64xbf16>, vector<64x128xbf16>, vector<8x128xf32> -> vector<8x128xf32>
    %379 = vector.broadcast %125 : vector<1x128xf32> to vector<8x128xf32>
    %380 = arith.addf %378, %379 : vector<8x128xf32>
    %381 = vector.broadcast %143 : vector<1x128xf32> to vector<8x128xf32>
    %382 = arith.mulf %381, %380 : vector<8x128xf32>
    %383 = math.tanh %382 : vector<8x128xf32>
    %384 = vector.broadcast %143 : vector<1x128xf32> to vector<8x128xf32>
    %385 = arith.mulf %384, %383 : vector<8x128xf32>
    %386 = vector.broadcast %146 : vector<1x128xf32> to vector<8x128xf32>
    %387 = arith.addf %385, %386 : vector<8x128xf32>
    %388 = vector.extract_strided_slice %387 {offsets = [0, 0], sizes = [8, 32], strides = [1, 1]} : vector<8x128xf32> to vector<8x32xf32>
    %389 = vector.extract_strided_slice %387 {offsets = [0, 32], sizes = [8, 32], strides = [1, 1]} : vector<8x128xf32> to vector<8x32xf32>
    %390 = vector.extract_strided_slice %387 {offsets = [0, 64], sizes = [8, 32], strides = [1, 1]} : vector<8x128xf32> to vector<8x32xf32>
    %391 = vector.extract_strided_slice %387 {offsets = [0, 96], sizes = [8, 32], strides = [1, 1]} : vector<8x128xf32> to vector<8x32xf32>
    %392 = arith.mulf %389, %342 : vector<8x32xf32>
    %393 = arith.mulf %388, %390 : vector<8x32xf32>
    %394 = arith.addf %392, %393 : vector<8x32xf32>
    %395 = math.tanh %394 : vector<8x32xf32>
    %396 = arith.mulf %391, %395 : vector<8x32xf32>
    %c5_i32 = arith.constant 5 : i32
    %397 = vector.broadcast %c5_i32 : i32 to vector<1x1xi32>
    %398 = arith.cmpi eq, %3, %397 : vector<1x1xi32>
    %399 = arith.extui %398 : vector<1x1xi1> to vector<1x1xi32>
    %400 = arith.sitofp %399 : vector<1x1xi32> to vector<1x1xf32>
    %401 = vector.broadcast %400 : vector<1x1xf32> to vector<8x32xf32>
    %402 = arith.mulf %401, %396 : vector<8x32xf32>
    %cst_88 = arith.constant 1.000000e+00 : f32
    %403 = vector.broadcast %cst_88 : f32 to vector<1x1xf32>
    %404 = arith.subf %403, %400 : vector<1x1xf32>
    %405 = vector.broadcast %404 : vector<1x1xf32> to vector<8x32xf32>
    %406 = arith.mulf %405, %355 : vector<8x32xf32>
    %407 = arith.addf %402, %406 : vector<8x32xf32>
    %408 = vector.extract_strided_slice %134 {offsets = [40, 0], sizes = [8, 128], strides = [1, 1]} : vector<64x128xf32> to vector<8x128xf32>
    %409 = arith.truncf %375 : vector<8x32xf32> to vector<8x32xbf16>
    %cst_89 = arith.constant dense<0.000000e+00> : vector<8x128xf32>
    %410 = tpu.matmul %409, %122, %cst_89 {dimension_numbers = #tpu.dot_dimension_numbers<[1], [0], [0], [1], [0, 0, 1, 1], [], []>} : vector<8x32xbf16>, vector<32x128xbf16>, vector<8x128xf32> -> vector<8x128xf32>
    %411 = arith.addf %408, %410 : vector<8x128xf32>
    %412 = vector.broadcast %143 : vector<1x128xf32> to vector<8x128xf32>
    %413 = arith.mulf %412, %411 : vector<8x128xf32>
    %414 = math.tanh %413 : vector<8x128xf32>
    %415 = vector.broadcast %143 : vector<1x128xf32> to vector<8x128xf32>
    %416 = arith.mulf %415, %414 : vector<8x128xf32>
    %417 = vector.broadcast %146 : vector<1x128xf32> to vector<8x128xf32>
    %418 = arith.addf %416, %417 : vector<8x128xf32>
    %419 = vector.extract_strided_slice %418 {offsets = [0, 0], sizes = [8, 32], strides = [1, 1]} : vector<8x128xf32> to vector<8x32xf32>
    %420 = vector.extract_strided_slice %418 {offsets = [0, 32], sizes = [8, 32], strides = [1, 1]} : vector<8x128xf32> to vector<8x32xf32>
    %421 = vector.extract_strided_slice %418 {offsets = [0, 64], sizes = [8, 32], strides = [1, 1]} : vector<8x128xf32> to vector<8x32xf32>
    %422 = vector.extract_strided_slice %418 {offsets = [0, 96], sizes = [8, 32], strides = [1, 1]} : vector<8x128xf32> to vector<8x32xf32>
    %423 = arith.mulf %420, %373 : vector<8x32xf32>
    %424 = arith.mulf %419, %421 : vector<8x32xf32>
    %425 = arith.addf %423, %424 : vector<8x32xf32>
    %426 = math.tanh %425 : vector<8x32xf32>
    %427 = arith.mulf %422, %426 : vector<8x32xf32>
    %428 = tpu.concatenate %427, %396 in 1 : vector<8x32xf32>, vector<8x32xf32> -> vector<8x64xf32>
    %429 = arith.truncf %428 : vector<8x64xf32> to vector<8x64xbf16>
    %cst_90 = arith.constant dense<0.000000e+00> : vector<8x128xf32>
    %430 = tpu.matmul %429, %123, %cst_90 {dimension_numbers = #tpu.dot_dimension_numbers<[1], [0], [0], [1], [0, 0, 1, 1], [], []>} : vector<8x64xbf16>, vector<64x128xbf16>, vector<8x128xf32> -> vector<8x128xf32>
    %431 = vector.broadcast %125 : vector<1x128xf32> to vector<8x128xf32>
    %432 = arith.addf %430, %431 : vector<8x128xf32>
    %433 = vector.broadcast %143 : vector<1x128xf32> to vector<8x128xf32>
    %434 = arith.mulf %433, %432 : vector<8x128xf32>
    %435 = math.tanh %434 : vector<8x128xf32>
    %436 = vector.broadcast %143 : vector<1x128xf32> to vector<8x128xf32>
    %437 = arith.mulf %436, %435 : vector<8x128xf32>
    %438 = vector.broadcast %146 : vector<1x128xf32> to vector<8x128xf32>
    %439 = arith.addf %437, %438 : vector<8x128xf32>
    %440 = vector.extract_strided_slice %439 {offsets = [0, 0], sizes = [8, 32], strides = [1, 1]} : vector<8x128xf32> to vector<8x32xf32>
    %441 = vector.extract_strided_slice %439 {offsets = [0, 32], sizes = [8, 32], strides = [1, 1]} : vector<8x128xf32> to vector<8x32xf32>
    %442 = vector.extract_strided_slice %439 {offsets = [0, 64], sizes = [8, 32], strides = [1, 1]} : vector<8x128xf32> to vector<8x32xf32>
    %443 = vector.extract_strided_slice %439 {offsets = [0, 96], sizes = [8, 32], strides = [1, 1]} : vector<8x128xf32> to vector<8x32xf32>
    %444 = arith.mulf %441, %394 : vector<8x32xf32>
    %445 = arith.mulf %440, %442 : vector<8x32xf32>
    %446 = arith.addf %444, %445 : vector<8x32xf32>
    %447 = math.tanh %446 : vector<8x32xf32>
    %448 = arith.mulf %443, %447 : vector<8x32xf32>
    %c6_i32 = arith.constant 6 : i32
    %449 = vector.broadcast %c6_i32 : i32 to vector<1x1xi32>
    %450 = arith.cmpi eq, %3, %449 : vector<1x1xi32>
    %451 = arith.extui %450 : vector<1x1xi1> to vector<1x1xi32>
    %452 = arith.sitofp %451 : vector<1x1xi32> to vector<1x1xf32>
    %453 = vector.broadcast %452 : vector<1x1xf32> to vector<8x32xf32>
    %454 = arith.mulf %453, %448 : vector<8x32xf32>
    %cst_91 = arith.constant 1.000000e+00 : f32
    %455 = vector.broadcast %cst_91 : f32 to vector<1x1xf32>
    %456 = arith.subf %455, %452 : vector<1x1xf32>
    %457 = vector.broadcast %456 : vector<1x1xf32> to vector<8x32xf32>
    %458 = arith.mulf %457, %407 : vector<8x32xf32>
    %459 = arith.addf %454, %458 : vector<8x32xf32>
    %460 = vector.extract_strided_slice %134 {offsets = [48, 0], sizes = [8, 128], strides = [1, 1]} : vector<64x128xf32> to vector<8x128xf32>
    %461 = arith.truncf %427 : vector<8x32xf32> to vector<8x32xbf16>
    %cst_92 = arith.constant dense<0.000000e+00> : vector<8x128xf32>
    %462 = tpu.matmul %461, %122, %cst_92 {dimension_numbers = #tpu.dot_dimension_numbers<[1], [0], [0], [1], [0, 0, 1, 1], [], []>} : vector<8x32xbf16>, vector<32x128xbf16>, vector<8x128xf32> -> vector<8x128xf32>
    %463 = arith.addf %460, %462 : vector<8x128xf32>
    %464 = vector.broadcast %143 : vector<1x128xf32> to vector<8x128xf32>
    %465 = arith.mulf %464, %463 : vector<8x128xf32>
    %466 = math.tanh %465 : vector<8x128xf32>
    %467 = vector.broadcast %143 : vector<1x128xf32> to vector<8x128xf32>
    %468 = arith.mulf %467, %466 : vector<8x128xf32>
    %469 = vector.broadcast %146 : vector<1x128xf32> to vector<8x128xf32>
    %470 = arith.addf %468, %469 : vector<8x128xf32>
    %471 = vector.extract_strided_slice %470 {offsets = [0, 0], sizes = [8, 32], strides = [1, 1]} : vector<8x128xf32> to vector<8x32xf32>
    %472 = vector.extract_strided_slice %470 {offsets = [0, 32], sizes = [8, 32], strides = [1, 1]} : vector<8x128xf32> to vector<8x32xf32>
    %473 = vector.extract_strided_slice %470 {offsets = [0, 64], sizes = [8, 32], strides = [1, 1]} : vector<8x128xf32> to vector<8x32xf32>
    %474 = vector.extract_strided_slice %470 {offsets = [0, 96], sizes = [8, 32], strides = [1, 1]} : vector<8x128xf32> to vector<8x32xf32>
    %475 = arith.mulf %472, %425 : vector<8x32xf32>
    %476 = arith.mulf %471, %473 : vector<8x32xf32>
    %477 = arith.addf %475, %476 : vector<8x32xf32>
    %478 = math.tanh %477 : vector<8x32xf32>
    %479 = arith.mulf %474, %478 : vector<8x32xf32>
    %480 = tpu.concatenate %479, %448 in 1 : vector<8x32xf32>, vector<8x32xf32> -> vector<8x64xf32>
    %481 = arith.truncf %480 : vector<8x64xf32> to vector<8x64xbf16>
    %cst_93 = arith.constant dense<0.000000e+00> : vector<8x128xf32>
    %482 = tpu.matmul %481, %123, %cst_93 {dimension_numbers = #tpu.dot_dimension_numbers<[1], [0], [0], [1], [0, 0, 1, 1], [], []>} : vector<8x64xbf16>, vector<64x128xbf16>, vector<8x128xf32> -> vector<8x128xf32>
    %483 = vector.broadcast %125 : vector<1x128xf32> to vector<8x128xf32>
    %484 = arith.addf %482, %483 : vector<8x128xf32>
    %485 = vector.broadcast %143 : vector<1x128xf32> to vector<8x128xf32>
    %486 = arith.mulf %485, %484 : vector<8x128xf32>
    %487 = math.tanh %486 : vector<8x128xf32>
    %488 = vector.broadcast %143 : vector<1x128xf32> to vector<8x128xf32>
    %489 = arith.mulf %488, %487 : vector<8x128xf32>
    %490 = vector.broadcast %146 : vector<1x128xf32> to vector<8x128xf32>
    %491 = arith.addf %489, %490 : vector<8x128xf32>
    %492 = vector.extract_strided_slice %491 {offsets = [0, 0], sizes = [8, 32], strides = [1, 1]} : vector<8x128xf32> to vector<8x32xf32>
    %493 = vector.extract_strided_slice %491 {offsets = [0, 32], sizes = [8, 32], strides = [1, 1]} : vector<8x128xf32> to vector<8x32xf32>
    %494 = vector.extract_strided_slice %491 {offsets = [0, 64], sizes = [8, 32], strides = [1, 1]} : vector<8x128xf32> to vector<8x32xf32>
    %495 = vector.extract_strided_slice %491 {offsets = [0, 96], sizes = [8, 32], strides = [1, 1]} : vector<8x128xf32> to vector<8x32xf32>
    %496 = arith.mulf %493, %446 : vector<8x32xf32>
    %497 = arith.mulf %492, %494 : vector<8x32xf32>
    %498 = arith.addf %496, %497 : vector<8x32xf32>
    %499 = math.tanh %498 : vector<8x32xf32>
    %500 = arith.mulf %495, %499 : vector<8x32xf32>
    %c7_i32 = arith.constant 7 : i32
    %501 = vector.broadcast %c7_i32 : i32 to vector<1x1xi32>
    %502 = arith.cmpi eq, %3, %501 : vector<1x1xi32>
    %503 = arith.extui %502 : vector<1x1xi1> to vector<1x1xi32>
    %504 = arith.sitofp %503 : vector<1x1xi32> to vector<1x1xf32>
    %505 = vector.broadcast %504 : vector<1x1xf32> to vector<8x32xf32>
    %506 = arith.mulf %505, %500 : vector<8x32xf32>
    %cst_94 = arith.constant 1.000000e+00 : f32
    %507 = vector.broadcast %cst_94 : f32 to vector<1x1xf32>
    %508 = arith.subf %507, %504 : vector<1x1xf32>
    %509 = vector.broadcast %508 : vector<1x1xf32> to vector<8x32xf32>
    %510 = arith.mulf %509, %459 : vector<8x32xf32>
    %511 = arith.addf %506, %510 : vector<8x32xf32>
    %512 = vector.extract_strided_slice %134 {offsets = [56, 0], sizes = [8, 128], strides = [1, 1]} : vector<64x128xf32> to vector<8x128xf32>
    %513 = arith.truncf %479 : vector<8x32xf32> to vector<8x32xbf16>
    %cst_95 = arith.constant dense<0.000000e+00> : vector<8x128xf32>
    %514 = tpu.matmul %513, %122, %cst_95 {dimension_numbers = #tpu.dot_dimension_numbers<[1], [0], [0], [1], [0, 0, 1, 1], [], []>} : vector<8x32xbf16>, vector<32x128xbf16>, vector<8x128xf32> -> vector<8x128xf32>
    %515 = arith.addf %512, %514 : vector<8x128xf32>
    %516 = vector.broadcast %143 : vector<1x128xf32> to vector<8x128xf32>
    %517 = arith.mulf %516, %515 : vector<8x128xf32>
    %518 = math.tanh %517 : vector<8x128xf32>
    %519 = vector.broadcast %143 : vector<1x128xf32> to vector<8x128xf32>
    %520 = arith.mulf %519, %518 : vector<8x128xf32>
    %521 = vector.broadcast %146 : vector<1x128xf32> to vector<8x128xf32>
    %522 = arith.addf %520, %521 : vector<8x128xf32>
    %523 = vector.extract_strided_slice %522 {offsets = [0, 0], sizes = [8, 32], strides = [1, 1]} : vector<8x128xf32> to vector<8x32xf32>
    %524 = vector.extract_strided_slice %522 {offsets = [0, 32], sizes = [8, 32], strides = [1, 1]} : vector<8x128xf32> to vector<8x32xf32>
    %525 = vector.extract_strided_slice %522 {offsets = [0, 64], sizes = [8, 32], strides = [1, 1]} : vector<8x128xf32> to vector<8x32xf32>
    %526 = vector.extract_strided_slice %522 {offsets = [0, 96], sizes = [8, 32], strides = [1, 1]} : vector<8x128xf32> to vector<8x32xf32>
    %527 = arith.mulf %524, %477 : vector<8x32xf32>
    %528 = arith.mulf %523, %525 : vector<8x32xf32>
    %529 = arith.addf %527, %528 : vector<8x32xf32>
    %530 = math.tanh %529 : vector<8x32xf32>
    %531 = arith.mulf %526, %530 : vector<8x32xf32>
    %532 = tpu.concatenate %531, %500 in 1 : vector<8x32xf32>, vector<8x32xf32> -> vector<8x64xf32>
    %533 = arith.truncf %532 : vector<8x64xf32> to vector<8x64xbf16>
    %cst_96 = arith.constant dense<0.000000e+00> : vector<8x128xf32>
    %534 = tpu.matmul %533, %123, %cst_96 {dimension_numbers = #tpu.dot_dimension_numbers<[1], [0], [0], [1], [0, 0, 1, 1], [], []>} : vector<8x64xbf16>, vector<64x128xbf16>, vector<8x128xf32> -> vector<8x128xf32>
    %535 = vector.broadcast %125 : vector<1x128xf32> to vector<8x128xf32>
    %536 = arith.addf %534, %535 : vector<8x128xf32>
    %537 = vector.broadcast %143 : vector<1x128xf32> to vector<8x128xf32>
    %538 = arith.mulf %537, %536 : vector<8x128xf32>
    %539 = math.tanh %538 : vector<8x128xf32>
    %540 = vector.broadcast %143 : vector<1x128xf32> to vector<8x128xf32>
    %541 = arith.mulf %540, %539 : vector<8x128xf32>
    %542 = vector.broadcast %146 : vector<1x128xf32> to vector<8x128xf32>
    %543 = arith.addf %541, %542 : vector<8x128xf32>
    %544 = vector.extract_strided_slice %543 {offsets = [0, 0], sizes = [8, 32], strides = [1, 1]} : vector<8x128xf32> to vector<8x32xf32>
    %545 = vector.extract_strided_slice %543 {offsets = [0, 32], sizes = [8, 32], strides = [1, 1]} : vector<8x128xf32> to vector<8x32xf32>
    %546 = vector.extract_strided_slice %543 {offsets = [0, 64], sizes = [8, 32], strides = [1, 1]} : vector<8x128xf32> to vector<8x32xf32>
    %547 = vector.extract_strided_slice %543 {offsets = [0, 96], sizes = [8, 32], strides = [1, 1]} : vector<8x128xf32> to vector<8x32xf32>
    %548 = arith.mulf %545, %498 : vector<8x32xf32>
    %549 = arith.mulf %544, %546 : vector<8x32xf32>
    %550 = arith.addf %548, %549 : vector<8x32xf32>
    %551 = math.tanh %550 : vector<8x32xf32>
    %552 = arith.mulf %547, %551 : vector<8x32xf32>
    %c8_i32 = arith.constant 8 : i32
    %553 = vector.broadcast %c8_i32 : i32 to vector<1x1xi32>
    %554 = arith.cmpi eq, %3, %553 : vector<1x1xi32>
    %555 = arith.extui %554 : vector<1x1xi1> to vector<1x1xi32>
    %556 = arith.sitofp %555 : vector<1x1xi32> to vector<1x1xf32>
    %557 = vector.broadcast %556 : vector<1x1xf32> to vector<8x32xf32>
    %558 = arith.mulf %557, %552 : vector<8x32xf32>
    %cst_97 = arith.constant 1.000000e+00 : f32
    %559 = vector.broadcast %cst_97 : f32 to vector<1x1xf32>
    %560 = arith.subf %559, %556 : vector<1x1xf32>
    %561 = vector.broadcast %560 : vector<1x1xf32> to vector<8x32xf32>
    %562 = arith.mulf %561, %511 : vector<8x32xf32>
    %563 = arith.addf %558, %562 : vector<8x32xf32>
    %564 = vector.broadcast %3 : vector<1x1xi32> to vector<8x1xi32>
    %565 = arith.cmpi eq, %1, %564 : vector<8x1xi32>
    %566 = arith.extui %565 : vector<8x1xi1> to vector<8x1xi32>
    %567 = arith.sitofp %566 : vector<8x1xi32> to vector<8x1xf32>
    %568 = vector.broadcast %567 : vector<8x1xf32> to vector<8x32xf32>
    %569 = arith.mulf %568, %563 : vector<8x32xf32>
    %c0_98 = arith.constant 0 : index
    %c0_99 = arith.constant 0 : index
    %570 = vector.load %arg4[%c0_98, %c0_99] : memref<320x128xbf16, #tpu.memory_space<vmem>>, vector<64x128xbf16>
    %c64_100 = arith.constant 64 : index
    %c0_101 = arith.constant 0 : index
    %571 = vector.load %arg4[%c64_100, %c0_101] : memref<320x128xbf16, #tpu.memory_space<vmem>>, vector<128x128xbf16>
    %c192 = arith.constant 192 : index
    %c0_102 = arith.constant 0 : index
    %572 = vector.load %arg4[%c192, %c0_102] : memref<320x128xbf16, #tpu.memory_space<vmem>>, vector<128x128xbf16>
    %c16_103 = arith.constant 16 : index
    %c0_104 = arith.constant 0 : index
    %573 = vector.load %arg3[%c16_103, %c0_104] : memref<72x128xf32, #tpu.memory_space<vmem>>, vector<1x128xf32>
    %c24_105 = arith.constant 24 : index
    %c0_106 = arith.constant 0 : index
    %574 = vector.load %arg3[%c24_105, %c0_106] : memref<72x128xf32, #tpu.memory_space<vmem>>, vector<1x128xf32>
    %c32_107 = arith.constant 32 : index
    %c0_108 = arith.constant 0 : index
    %575 = vector.load %arg3[%c32_107, %c0_108] : memref<72x128xf32, #tpu.memory_space<vmem>>, vector<1x128xf32>
    %c40 = arith.constant 40 : index
    %c0_109 = arith.constant 0 : index
    %576 = vector.load %arg3[%c40, %c0_109] : memref<72x128xf32, #tpu.memory_space<vmem>>, vector<1x128xf32>
    %c48 = arith.constant 48 : index
    %c0_110 = arith.constant 0 : index
    %577 = vector.load %arg3[%c48, %c0_110] : memref<72x128xf32, #tpu.memory_space<vmem>>, vector<1x128xf32>
    %c56_111 = arith.constant 56 : index
    %c0_112 = arith.constant 0 : index
    %578 = vector.load %arg3[%c56_111, %c0_112] : memref<72x128xf32, #tpu.memory_space<vmem>>, vector<1x128xf32>
    %c64_113 = arith.constant 64 : index
    %c0_114 = arith.constant 0 : index
    %579 = vector.load %arg3[%c64_113, %c0_114] : memref<72x128xf32, #tpu.memory_space<vmem>>, vector<1x128xf32>
    %580 = tpu.concatenate %569, %120 in 1 : vector<8x32xf32>, vector<8x32xf32> -> vector<8x64xf32>
    %581 = arith.truncf %580 : vector<8x64xf32> to vector<8x64xbf16>
    %cst_115 = arith.constant dense<0.000000e+00> : vector<8x128xf32>
    %582 = tpu.matmul %581, %570, %cst_115 {dimension_numbers = #tpu.dot_dimension_numbers<[1], [0], [0], [1], [0, 0, 1, 1], [], []>} : vector<8x64xbf16>, vector<64x128xbf16>, vector<8x128xf32> -> vector<8x128xf32>
    %583 = vector.broadcast %573 : vector<1x128xf32> to vector<8x128xf32>
    %584 = arith.addf %582, %583 : vector<8x128xf32>
    %cst_116 = arith.constant 0.000000e+00 : f32
    %585 = vector.broadcast %cst_116 : f32 to vector<8x128xf32>
    %586 = arith.maximumf %584, %585 : vector<8x128xf32>
    %587 = vector.broadcast %574 : vector<1x128xf32> to vector<8x128xf32>
    %588 = arith.mulf %586, %587 : vector<8x128xf32>
    %589 = vector.broadcast %575 : vector<1x128xf32> to vector<8x128xf32>
    %590 = arith.addf %588, %589 : vector<8x128xf32>
    %591 = arith.truncf %590 : vector<8x128xf32> to vector<8x128xbf16>
    %cst_117 = arith.constant dense<0.000000e+00> : vector<8x128xf32>
    %592 = tpu.matmul %591, %571, %cst_117 {dimension_numbers = #tpu.dot_dimension_numbers<[1], [0], [0], [1], [0, 0, 1, 1], [], []>} : vector<8x128xbf16>, vector<128x128xbf16>, vector<8x128xf32> -> vector<8x128xf32>
    %593 = vector.broadcast %576 : vector<1x128xf32> to vector<8x128xf32>
    %594 = arith.addf %592, %593 : vector<8x128xf32>
    %cst_118 = arith.constant 0.000000e+00 : f32
    %595 = vector.broadcast %cst_118 : f32 to vector<8x128xf32>
    %596 = arith.maximumf %594, %595 : vector<8x128xf32>
    %597 = vector.broadcast %577 : vector<1x128xf32> to vector<8x128xf32>
    %598 = arith.mulf %596, %597 : vector<8x128xf32>
    %599 = vector.broadcast %578 : vector<1x128xf32> to vector<8x128xf32>
    %600 = arith.addf %598, %599 : vector<8x128xf32>
    %601 = arith.truncf %600 : vector<8x128xf32> to vector<8x128xbf16>
    %cst_119 = arith.constant dense<0.000000e+00> : vector<8x128xf32>
    %602 = tpu.matmul %601, %572, %cst_119 {dimension_numbers = #tpu.dot_dimension_numbers<[1], [0], [0], [1], [0, 0, 1, 1], [], []>} : vector<8x128xbf16>, vector<128x128xbf16>, vector<8x128xf32> -> vector<8x128xf32>
    %603 = vector.broadcast %579 : vector<1x128xf32> to vector<8x128xf32>
    %604 = arith.addf %602, %603 : vector<8x128xf32>
    %c0_120 = arith.constant 0 : index
    %c0_121 = arith.constant 0 : index
    %605 = vector.load %arg6[%c0_120, %c0_121] : memref<8x128xf32, #tpu.memory_space<vmem>>, vector<8x128xf32>
    tpu.vector_store %arg6[%c0_120, %c0_121], %604 {strides = array<i32>} : memref<8x128xf32, #tpu.memory_space<vmem>>, vector<8x128xf32>,
    return
  }
}

</mosaic_0001>

<llo_original>
// kernel: hybridmodel_forward.1
$region0: #{hybridmodel_forward.1}
  #allocation0 [shape = 'u32[]', space=smem, size = 0x4, offset = 0x4, fixed_abs, tag = 'smem constant byte address 0x4 - core index']
  #allocation1 [shape = 'u32[144,128]{1,0:T(1,128)}', space=vmem, size = 0x12000, scoped, tag = 'internal scratch']
  %s0 = inlined_call_operand.vmem [shape: s32[88,1], index: 0, kind: input, shape index: {}]
  %s1 = inlined_call_operand.vmem [shape: bf16[40,16], index: 1, kind: input, shape index: {}]
  %s2 = inlined_call_operand.vmem [shape: bf16[128,128], index: 2, kind: input, shape index: {}]
  %s3 = inlined_call_operand.vmem [shape: f32[72,128], index: 3, kind: input, shape index: {}]
  %s4 = inlined_call_operand.vmem [shape: bf16[320,128], index: 4, kind: input, shape index: {}]
  %s5 = inlined_call_operand.vmem [shape: bf16[424,32], index: 5, kind: input, shape index: {}]
  %s6 = inlined_call_operand.vmem [shape: f32[8,128], index: 6, kind: output, shape index: {}]
  %s7 = sld [smem:[#allocation0]]
  $region34: #{hybridmodel_forward.1} parent=0
    _
  %s9 = ssub.s32 1, %s7
  %s10 = scalar_select 0, %s9, %s7
  // Predicated region
  $region2: #{hybridmodel_forward.1} parent=0 // pred_check
    _
  $region3: #{hybridmodel_forward.1} parent=0 // pred_check_branch
    %12 = sbr.rel (0) target = $region5
  $region4: #{hybridmodel_forward.1} parent=0 // pred_region
    _
  $region5: #{hybridmodel_forward.1} parent=0 // pred_fallthru
    _
  // Predicated region
  $region6: #{hybridmodel_forward.1} parent=0 // pred_check
    _
  $region7: #{hybridmodel_forward.1} parent=0 // pred_check_branch
    %14 = sbr.rel (0) target = $region9
  $region8: #{hybridmodel_forward.1} parent=0 // pred_region
    _
  $region9: #{hybridmodel_forward.1} parent=0 // pred_fallthru
    _
  // Predicated region
  $region10: #{hybridmodel_forward.1} parent=0 // pred_check
    _
  $region11: #{hybridmodel_forward.1} parent=0 // pred_check_branch
    %16 = sbr.rel (0) target = $region13
  $region12: #{hybridmodel_forward.1} parent=0 // pred_region
    _
  $region13: #{hybridmodel_forward.1} parent=0 // pred_fallthru
    _
  // Predicated region
  $region14: #{hybridmodel_forward.1} parent=0 // pred_check
    _
  $region15: #{hybridmodel_forward.1} parent=0 // pred_check_branch
    %18 = sbr.rel (0) target = $region17
  $region16: #{hybridmodel_forward.1} parent=0 // pred_region
    _
  $region17: #{hybridmodel_forward.1} parent=0 // pred_fallthru
    _
  // Predicated region
  $region18: #{hybridmodel_forward.1} parent=0 // pred_check
    _
  $region19: #{hybridmodel_forward.1} parent=0 // pred_check_branch
    %20 = sbr.rel (0) target = $region21
  $region20: #{hybridmodel_forward.1} parent=0 // pred_region
    _
  $region21: #{hybridmodel_forward.1} parent=0 // pred_fallthru
    _
  // Predicated region
  $region22: #{hybridmodel_forward.1} parent=0 // pred_check
    _
  $region23: #{hybridmodel_forward.1} parent=0 // pred_check_branch
    %22 = sbr.rel (0) target = $region25
  $region24: #{hybridmodel_forward.1} parent=0 // pred_region
    _
  $region25: #{hybridmodel_forward.1} parent=0 // pred_fallthru
    _
  %v24 = vld [vmem:[%s0] sm:$0xff]
  %v25 = vld [vmem:[%s0 + $0x8] sm:$0xff]
  %v26 = vld [vmem:[%s0 + $0x10] sm:$0xff]
  %v27 = vld [vmem:[%s0 + $0x18] sm:$0xff]
  %v28 = vld [vmem:[%s0 + $0x20] sm:$0xff]
  %v29 = vld [vmem:[%s0 + $0x28] sm:$0xff]
  %v30 = vld [vmem:[%s0 + $0x30] sm:$0xff]
  %v31 = vld [vmem:[%s0 + $0x38] sm:$0xff]
  %v32 = vld [vmem:[%s0 + $0x40] sm:$0xff]
  %v33 = vld [vmem:[%s0 + $0x48] sm:$0xff]
  %v34 = vld [vmem:[%s0 + $0x50] sm:$0x1]
  %v35 = vld [vmem:[%s1] sm:$0xf]
  %v36 = vld [vmem:[%s1 + $0x4] sm:$0xf]
  %v37 = vld [vmem:[%s1 + $0x8] sm:$0xf]
  %v38 = vld [vmem:[%s1 + $0xc] sm:$0xf]
  %v39 = vld [vmem:[%s1 + $0x10] sm:$0xf]
  %v40 = vld [vmem:[%s5] sm:$0xf]
  %v41 = vld [vmem:[%s5 + $0x4] sm:$0xf]
  %v42 = vld [vmem:[%s5 + $0x8] sm:$0x1]
  %v43 = vunpack.c.l.bf16 %v42
  %v44 = vlaneseq
  %v45 = vshrl.u32 %v44, 7
  %v46 = vsub.s32 0, %v45
  %v47 = vrot.slane %v43, %v46
  %v50 = vunpack.c.l.b16 %v35
  %v51 = vunpack.c.l.b16 %v36
  %v52 = vpack.c.b16 %v51, %v50
  %v55 = vunpack.c.l.b16 %v40
  %v56 = vunpack.c.l.b16 %v41
  %v57 = vpack.c.b16 %v56, %v55
  %vm59 = vcmask 130048
  %v61 = vsel %vm59, %v52, 0
  %63 = vmatprep.subr.bf16.mxu0 0
  %64 = vmatpush1.bf16.msra.mxu0 %v57
  %65 = vmatprep.subr.bf16.mxu0 0
  %66 = vmatpush1.bf16.msra.mxu0 0
  %67 = vmatprep.subr.bf16.mxu0 0
  %68 = vmatpush1.bf16.msra.mxu0 0
  %69 = vmatprep.subr.bf16.mxu0 0
  %70 = vmatpush1.bf16.msra.mxu0 0
  %71 = vmatprep.subr.bf16.mxu0 0
  %72 = vmatpush1.bf16.msra.mxu0 0
  %73 = vmatprep.subr.bf16.mxu0 0
  %74 = vmatpush1.bf16.msra.mxu0 0
  %75 = vmatprep.subr.bf16.mxu0 0
  %76 = vmatpush1.bf16.msra.mxu0 0
  %77 = vmatprep.subr.bf16.mxu0 0
  %78 = vmatpush1.bf16.msra.mxu0 0
  %79 = vmatprep.subr.bf16.mxu0 0
  %80 = vmatpush1.bf16.msra.mxu0 0
  %81 = vmatprep.subr.bf16.mxu0 0
  %82 = vmatpush1.bf16.msra.mxu0 0
  %83 = vmatprep.subr.bf16.mxu0 0
  %84 = vmatpush1.bf16.msra.mxu0 0
  %85 = vmatprep.subr.bf16.mxu0 0
  %86 = vmatpush1.bf16.msra.mxu0 0
  %87 = vmatprep.subr.bf16.mxu0 0
  %88 = vmatpush1.bf16.msra.mxu0 0
  %89 = vmatprep.subr.bf16.mxu0 0
  %90 = vmatpush1.bf16.msra.mxu0 0
  %91 = vmatprep.subr.bf16.mxu0 0
  %92 = vmatpush1.bf16.msra.mxu0 0
  %93 = vmatprep.subr.bf16.mxu0 0
  %94 = vmatpush1.bf16.msra.mxu0 0
  %95 = vmatprep.mubr.bf16.mxu0 0
  %96 = vmatmul.mubr.bf16.gmra.mrb[0].mxu0 %v61
  %v97 = vpop.f32.mrb[0].mxu0
  %v98 = vadd.f32 %v47, %v97
  %v99 = vpop.f32.mrb[0].mxu0
  %v100 = vpop.f32.mrb[0].mxu0
  %v101 = vadd.f32 %v47, %v100
  %v102 = vpop.f32.mrb[0].mxu0
  %103 = vdwg.mxu0
  %v104 = vld [vmem:[%s5 + $0xc] sm:$0xf]
  %v105 = vld [vmem:[%s5 + $0x10] sm:$0xf]
  %v106 = vld [vmem:[%s5 + $0x14] sm:$0xf]
  %v107 = vld [vmem:[%s5 + $0x18] sm:$0xf]
  %v108 = vld [vmem:[%s5 + $0x1c] sm:$0x1]
  %v109 = vunpack.c.l.bf16 %v108
  %v110 = vld [vmem:[%s5 + $0x20] sm:$0xf]
  %v111 = vld [vmem:[%s5 + $0x24] sm:$0xf]
  %v112 = vld [vmem:[%s5 + $0x28] sm:$0xf]
  %v113 = vld [vmem:[%s5 + $0x2c] sm:$0xf]
  %v114 = vld [vmem:[%s5 + $0x30] sm:$0x1]
  %v115 = vunpack.c.l.bf16 %v114
  %v116 = vpack.c.bf16 %v101, %v98
  %v119 = vunpack.c.l.b16 %v37
  %v120 = vunpack.c.l.b16 %v38
  %v121 = vpack.c.b16 %v120, %v119
  %v123 = vsel %vm59, %v121, 0
  %125 = vmatprep.subr.bf16.mxu0 0
  %126 = vmatpush1.bf16.msra.mxu0 %v116
  %127 = vmatprep.subr.bf16.mxu0 0
  %128 = vmatpush1.bf16.msra.mxu0 0
  %129 = vmatprep.subr.bf16.mxu0 0
  %130 = vmatpush1.bf16.msra.mxu0 0
  %131 = vmatprep.subr.bf16.mxu0 0
  %132 = vmatpush1.bf16.msra.mxu0 0
  %133 = vmatprep.subr.bf16.mxu0 0
  %134 = vmatpush1.bf16.msra.mxu0 0
  %135 = vmatprep.subr.bf16.mxu0 0
  %136 = vmatpush1.bf16.msra.mxu0 0
  %137 = vmatprep.subr.bf16.mxu0 0
  %138 = vmatpush1.bf16.msra.mxu0 0
  %139 = vmatprep.subr.bf16.mxu0 0
  %140 = vmatpush1.bf16.msra.mxu0 0
  %141 = vmatprep.subr.bf16.mxu0 0
  %142 = vmatpush1.bf16.msra.mxu0 0
  %143 = vmatprep.subr.bf16.mxu0 0
  %144 = vmatpush1.bf16.msra.mxu0 0
  %145 = vmatprep.subr.bf16.mxu0 0
  %146 = vmatpush1.bf16.msra.mxu0 0
  %147 = vmatprep.subr.bf16.mxu0 0
  %148 = vmatpush1.bf16.msra.mxu0 0
  %149 = vmatprep.subr.bf16.mxu0 0
  %150 = vmatpush1.bf16.msra.mxu0 0
  %151 = vmatprep.subr.bf16.mxu0 0
  %152 = vmatpush1.bf16.msra.mxu0 0
  %153 = vmatprep.subr.bf16.mxu0 0
  %154 = vmatpush1.bf16.msra.mxu0 0
  %155 = vmatprep.subr.bf16.mxu0 0
  %156 = vmatpush1.bf16.msra.mxu0 0
  %157 = vmatprep.mubr.bf16.mxu0 0
  %158 = vmatmul.mubr.bf16.gmra.mrb[0].mxu0 %v123
  %v159 = vpop.f32.mrb[0].mxu0
  %v160 = vadd.f32 0.0, %v159
  %v161 = vpop.f32.mrb[0].mxu0
  %v162 = vpop.f32.mrb[0].mxu0
  %v163 = vadd.f32 0.0, %v162
  %v164 = vpop.f32.mrb[0].mxu0
  %165 = vdwg.mxu0
  %v166 = vpack.c.bf16 %v163, %v160
  %v167 = vlaneseq
  %v168 = vshrl.u32 %v167, 7
  %v169 = vsub.s32 0, %v168
  %v170 = vrot.slane %v109, %v169
  %v175 = vunpack.c.l.b16 %v104
  %v176 = vunpack.c.l.b16 %v105
  %v177 = vunpack.c.l.b16 %v106
  %v178 = vunpack.c.l.b16 %v107
  %v179 = vpack.c.b16 %v176, %v175
  %v180 = vpack.c.b16 %v178, %v177
  %vm183 = vcmask 261120
  %v185 = vsel %vm183, %v166, 0
  %187 = vmatprep.subr.bf16.mxu0 0
  %188 = vmatpush1.bf16.msra.mxu0 %v179
  %189 = vmatprep.subr.bf16.mxu0 0
  %190 = vmatpush1.bf16.msra.mxu0 %v180
  %191 = vmatprep.subr.bf16.mxu0 0
  %192 = vmatpush1.bf16.msra.mxu0 0
  %193 = vmatprep.subr.bf16.mxu0 0
  %194 = vmatpush1.bf16.msra.mxu0 0
  %195 = vmatprep.subr.bf16.mxu0 0
  %196 = vmatpush1.bf16.msra.mxu0 0
  %197 = vmatprep.subr.bf16.mxu0 0
  %198 = vmatpush1.bf16.msra.mxu0 0
  %199 = vmatprep.subr.bf16.mxu0 0
  %200 = vmatpush1.bf16.msra.mxu0 0
  %201 = vmatprep.subr.bf16.mxu0 0
  %202 = vmatpush1.bf16.msra.mxu0 0
  %203 = vmatprep.subr.bf16.mxu0 0
  %204 = vmatpush1.bf16.msra.mxu0 0
  %205 = vmatprep.subr.bf16.mxu0 0
  %206 = vmatpush1.bf16.msra.mxu0 0
  %207 = vmatprep.subr.bf16.mxu0 0
  %208 = vmatpush1.bf16.msra.mxu0 0
  %209 = vmatprep.subr.bf16.mxu0 0
  %210 = vmatpush1.bf16.msra.mxu0 0
  %211 = vmatprep.subr.bf16.mxu0 0
  %212 = vmatpush1.bf16.msra.mxu0 0
  %213 = vmatprep.subr.bf16.mxu0 0
  %214 = vmatpush1.bf16.msra.mxu0 0
  %215 = vmatprep.subr.bf16.mxu0 0
  %216 = vmatpush1.bf16.msra.mxu0 0
  %217 = vmatprep.subr.bf16.mxu0 0
  %218 = vmatpush1.bf16.msra.mxu0 0
  %219 = vmatprep.mubr.bf16.mxu0 0
  %220 = vmatmul.mubr.bf16.gmra.mrb[0].mxu0 %v185
  %v221 = vpop.f32.mrb[0].mxu0
  %v222 = vadd.f32 %v170, %v221
  %v223 = vpop.f32.mrb[0].mxu0
  %v224 = vpop.f32.mrb[0].mxu0
  %v225 = vadd.f32 %v170, %v224
  %v226 = vpop.f32.mrb[0].mxu0
  %227 = vdwg.mxu0
  %v228 = vmax.f32 %v222, 0.0
  %v229 = vmax.f32 %v225, 0.0
  %v230 = vpack.c.bf16 %v229, %v228
  %v231 = vlaneseq
  %v232 = vshrl.u32 %v231, 7
  %v233 = vsub.s32 0, %v232
  %v234 = vrot.slane %v115, %v233
  %v239 = vunpack.c.l.b16 %v110
  %v240 = vunpack.c.l.b16 %v111
  %v241 = vunpack.c.l.b16 %v112
  %v242 = vunpack.c.l.b16 %v113
  %v243 = vpack.c.b16 %v240, %v239
  %v244 = vpack.c.b16 %v242, %v241
  %v248 = vsel %vm183, %v230, 0
  %250 = vmatprep.subr.bf16.mxu0 0
  %251 = vmatpush1.bf16.msra.mxu0 %v243
  %252 = vmatprep.subr.bf16.mxu0 0
  %253 = vmatpush1.bf16.msra.mxu0 %v244
  %254 = vmatprep.subr.bf16.mxu0 0
  %255 = vmatpush1.bf16.msra.mxu0 0
  %256 = vmatprep.subr.bf16.mxu0 0
  %257 = vmatpush1.bf16.msra.mxu0 0
  %258 = vmatprep.subr.bf16.mxu0 0
  %259 = vmatpush1.bf16.msra.mxu0 0
  %260 = vmatprep.subr.bf16.mxu0 0
  %261 = vmatpush1.bf16.msra.mxu0 0
  %262 = vmatprep.subr.bf16.mxu0 0
  %263 = vmatpush1.bf16.msra.mxu0 0
  %264 = vmatprep.subr.bf16.mxu0 0
  %265 = vmatpush1.bf16.msra.mxu0 0
  %266 = vmatprep.subr.bf16.mxu0 0
  %267 = vmatpush1.bf16.msra.mxu0 0
  %268 = vmatprep.subr.bf16.mxu0 0
  %269 = vmatpush1.bf16.msra.mxu0 0
  %270 = vmatprep.subr.bf16.mxu0 0
  %271 = vmatpush1.bf16.msra.mxu0 0
  %272 = vmatprep.subr.bf16.mxu0 0
  %273 = vmatpush1.bf16.msra.mxu0 0
  %274 = vmatprep.subr.bf16.mxu0 0
  %275 = vmatpush1.bf16.msra.mxu0 0
  %276 = vmatprep.subr.bf16.mxu0 0
  %277 = vmatpush1.bf16.msra.mxu0 0
  %278 = vmatprep.subr.bf16.mxu0 0
  %279 = vmatpush1.bf16.msra.mxu0 0
  %280 = vmatprep.subr.bf16.mxu0 0
  %281 = vmatpush1.bf16.msra.mxu0 0
  %282 = vmatprep.mubr.bf16.mxu0 0
  %283 = vmatmul.mubr.bf16.gmra.mrb[0].mxu0 %v248
  %v284 = vpop.f32.mrb[0].mxu0
  %v285 = vadd.f32 %v234, %v284
  %v286 = vpop.f32.mrb[0].mxu0
  %v287 = vpop.f32.mrb[0].mxu0
  %v288 = vadd.f32 %v234, %v287
  %v289 = vpop.f32.mrb[0].mxu0
  %290 = vdwg.mxu0
  %v291 = vmax.f32 %v285, 0.0
  %v292 = vmax.f32 %v288, 0.0
  %v293 = vld [vmem:[%s5 + $0x34] sm:$0xf]
  %v294 = vld [vmem:[%s5 + $0x38] sm:$0xf]
  %v295 = vld [vmem:[%s5 + $0x3c] sm:$0xf]
  %v296 = vld [vmem:[%s5 + $0x40] sm:$0xf]
  %v297 = vld [vmem:[%s5 + $0x44] sm:$0x1]
  %v298 = vunpack.c.l.bf16 %v297
  %v299 = vld [vmem:[%s5 + $0x48] sm:$0xf]
  %v300 = vld [vmem:[%s5 + $0x4c] sm:$0xf]
  %v301 = vld [vmem:[%s5 + $0x50] sm:$0xf]
  %v302 = vld [vmem:[%s5 + $0x54] sm:$0xf]
  %v303 = vld [vmem:[%s5 + $0x58] sm:$0x1]
  %v304 = vunpack.c.l.bf16 %v303
  %v305 = vpack.c.bf16 %v292, %v291
  %306 = vmatprep.subr.bf16.mxu0 0
  %307 = vmatpush1.bf16.msra.mxu0 %v305
  %308 = vmatprep.subr.bf16.mxu0 0
  %309 = vmatpush1.bf16.msra.mxu0 0
  %310 = vmatprep.subr.bf16.mxu0 0
  %311 = vmatpush1.bf16.msra.mxu0 0
  %312 = vmatprep.subr.bf16.mxu0 0
  %313 = vmatpush1.bf16.msra.mxu0 0
  %314 = vmatprep.subr.bf16.mxu0 0
  %315 = vmatpush1.bf16.msra.mxu0 0
  %316 = vmatprep.subr.bf16.mxu0 0
  %317 = vmatpush1.bf16.msra.mxu0 0
  %318 = vmatprep.subr.bf16.mxu0 0
  %319 = vmatpush1.bf16.msra.mxu0 0
  %320 = vmatprep.subr.bf16.mxu0 0
  %321 = vmatpush1.bf16.msra.mxu0 0
  %322 = vmatprep.subr.bf16.mxu0 0
  %323 = vmatpush1.bf16.msra.mxu0 0
  %324 = vmatprep.subr.bf16.mxu0 0
  %325 = vmatpush1.bf16.msra.mxu0 0
  %326 = vmatprep.subr.bf16.mxu0 0
  %327 = vmatpush1.bf16.msra.mxu0 0
  %328 = vmatprep.subr.bf16.mxu0 0
  %329 = vmatpush1.bf16.msra.mxu0 0
  %330 = vmatprep.subr.bf16.mxu0 0
  %331 = vmatpush1.bf16.msra.mxu0 0
  %332 = vmatprep.subr.bf16.mxu0 0
  %333 = vmatpush1.bf16.msra.mxu0 0
  %334 = vmatprep.subr.bf16.mxu0 0
  %335 = vmatpush1.bf16.msra.mxu0 0
  %336 = vmatprep.subr.bf16.mxu0 0
  %337 = vmatpush1.bf16.msra.mxu0 0
  %338 = vmatprep.mubr.bf16.mxu0 0
  %339 = vmatmul.mubr.bf16.gmra.mrb[0].mxu0 %v123
  %v340 = vpop.f32.mrb[0].mxu0
  %v341 = vadd.f32 0.0, %v340
  %v342 = vpop.f32.mrb[0].mxu0
  %v343 = vpop.f32.mrb[0].mxu0
  %v344 = vadd.f32 0.0, %v343
  %v345 = vpop.f32.mrb[0].mxu0
  %346 = vdwg.mxu0
  %v347 = vpack.c.bf16 %v344, %v341
  %v348 = vlaneseq
  %v349 = vshrl.u32 %v348, 7
  %v350 = vsub.s32 0, %v349
  %v351 = vrot.slane %v298, %v350
  %v356 = vunpack.c.l.b16 %v293
  %v357 = vunpack.c.l.b16 %v294
  %v358 = vunpack.c.l.b16 %v295
  %v359 = vunpack.c.l.b16 %v296
  %v360 = vpack.c.b16 %v357, %v356
  %v361 = vpack.c.b16 %v359, %v358
  %v365 = vsel %vm183, %v347, 0
  %367 = vmatprep.subr.bf16.mxu0 0
  %368 = vmatpush1.bf16.msra.mxu0 %v360
  %369 = vmatprep.subr.bf16.mxu0 0
  %370 = vmatpush1.bf16.msra.mxu0 %v361
  %371 = vmatprep.subr.bf16.mxu0 0
  %372 = vmatpush1.bf16.msra.mxu0 0
  %373 = vmatprep.subr.bf16.mxu0 0
  %374 = vmatpush1.bf16.msra.mxu0 0
  %375 = vmatprep.subr.bf16.mxu0 0
  %376 = vmatpush1.bf16.msra.mxu0 0
  %377 = vmatprep.subr.bf16.mxu0 0
  %378 = vmatpush1.bf16.msra.mxu0 0
  %379 = vmatprep.subr.bf16.mxu0 0
  %380 = vmatpush1.bf16.msra.mxu0 0
  %381 = vmatprep.subr.bf16.mxu0 0
  %382 = vmatpush1.bf16.msra.mxu0 0
  %383 = vmatprep.subr.bf16.mxu0 0
  %384 = vmatpush1.bf16.msra.mxu0 0
  %385 = vmatprep.subr.bf16.mxu0 0
  %386 = vmatpush1.bf16.msra.mxu0 0
  %387 = vmatprep.subr.bf16.mxu0 0
  %388 = vmatpush1.bf16.msra.mxu0 0
  %389 = vmatprep.subr.bf16.mxu0 0
  %390 = vmatpush1.bf16.msra.mxu0 0
  %391 = vmatprep.subr.bf16.mxu0 0
  %392 = vmatpush1.bf16.msra.mxu0 0
  %393 = vmatprep.subr.bf16.mxu0 0
  %394 = vmatpush1.bf16.msra.mxu0 0
  %395 = vmatprep.subr.bf16.mxu0 0
  %396 = vmatpush1.bf16.msra.mxu0 0
  %397 = vmatprep.subr.bf16.mxu0 0
  %398 = vmatpush1.bf16.msra.mxu0 0
  %399 = vmatprep.mubr.bf16.mxu0 0
  %400 = vmatmul.mubr.bf16.gmra.mrb[0].mxu0 %v365
  %v401 = vpop.f32.mrb[0].mxu0
  %v402 = vadd.f32 %v351, %v401
  %v403 = vpop.f32.mrb[0].mxu0
  %v404 = vpop.f32.mrb[0].mxu0
  %v405 = vadd.f32 %v351, %v404
  %v406 = vpop.f32.mrb[0].mxu0
  %407 = vdwg.mxu0
  %v408 = vmax.f32 %v402, 0.0
  %v409 = vmax.f32 %v405, 0.0
  %v410 = vpack.c.bf16 %v409, %v408
  %v411 = vlaneseq
  %v412 = vshrl.u32 %v411, 7
  %v413 = vsub.s32 0, %v412
  %v414 = vrot.slane %v304, %v413
  %v419 = vunpack.c.l.b16 %v299
  %v420 = vunpack.c.l.b16 %v300
  %v421 = vunpack.c.l.b16 %v301
  %v422 = vunpack.c.l.b16 %v302
  %v423 = vpack.c.b16 %v420, %v419
  %v424 = vpack.c.b16 %v422, %v421
  %v428 = vsel %vm183, %v410, 0
  %430 = vmatprep.subr.bf16.mxu0 0
  %431 = vmatpush1.bf16.msra.mxu0 %v423
  %432 = vmatprep.subr.bf16.mxu0 0
  %433 = vmatpush1.bf16.msra.mxu0 %v424
  %434 = vmatprep.subr.bf16.mxu0 0
  %435 = vmatpush1.bf16.msra.mxu0 0
  %436 = vmatprep.subr.bf16.mxu0 0
  %437 = vmatpush1.bf16.msra.mxu0 0
  %438 = vmatprep.subr.bf16.mxu0 0
  %439 = vmatpush1.bf16.msra.mxu0 0
  %440 = vmatprep.subr.bf16.mxu0 0
  %441 = vmatpush1.bf16.msra.mxu0 0
  %442 = vmatprep.subr.bf16.mxu0 0
  %443 = vmatpush1.bf16.msra.mxu0 0
  %444 = vmatprep.subr.bf16.mxu0 0
  %445 = vmatpush1.bf16.msra.mxu0 0
  %446 = vmatprep.subr.bf16.mxu0 0
  %447 = vmatpush1.bf16.msra.mxu0 0
  %448 = vmatprep.subr.bf16.mxu0 0
  %449 = vmatpush1.bf16.msra.mxu0 0
  %450 = vmatprep.subr.bf16.mxu0 0
  %451 = vmatpush1.bf16.msra.mxu0 0
  %452 = vmatprep.subr.bf16.mxu0 0
  %453 = vmatpush1.bf16.msra.mxu0 0
  %454 = vmatprep.subr.bf16.mxu0 0
  %455 = vmatpush1.bf16.msra.mxu0 0
  %456 = vmatprep.subr.bf16.mxu0 0
  %457 = vmatpush1.bf16.msra.mxu0 0
  %458 = vmatprep.subr.bf16.mxu0 0
  %459 = vmatpush1.bf16.msra.mxu0 0
  %460 = vmatprep.subr.bf16.mxu0 0
  %461 = vmatpush1.bf16.msra.mxu0 0
  %462 = vmatprep.mubr.bf16.mxu0 0
  %463 = vmatmul.mubr.bf16.gmra.mrb[0].mxu0 %v428
  %v464 = vpop.f32.mrb[0].mxu0
  %v465 = vadd.f32 %v414, %v464
  %v466 = vpop.f32.mrb[0].mxu0
  %v467 = vpop.f32.mrb[0].mxu0
  %v468 = vadd.f32 %v414, %v467
  %v469 = vpop.f32.mrb[0].mxu0
  %470 = vdwg.mxu0
  %v471 = vmax.f32 %v465, 0.0
  %v472 = vmax.f32 %v468, 0.0
  %v473 = vld [vmem:[%s5 + $0x5c] sm:$0xf]
  %v474 = vld [vmem:[%s5 + $0x60] sm:$0xf]
  %v475 = vld [vmem:[%s5 + $0x64] sm:$0xf]
  %v476 = vld [vmem:[%s5 + $0x68] sm:$0xf]
  %v477 = vld [vmem:[%s5 + $0x6c] sm:$0x1]
  %v478 = vunpack.c.l.bf16 %v477
  %v479 = vld [vmem:[%s5 + $0x70] sm:$0xf]
  %v480 = vld [vmem:[%s5 + $0x74] sm:$0xf]
  %v481 = vld [vmem:[%s5 + $0x78] sm:$0xf]
  %v482 = vld [vmem:[%s5 + $0x7c] sm:$0xf]
  %v483 = vld [vmem:[%s5 + $0x80] sm:$0x1]
  %v484 = vunpack.c.l.bf16 %v483
  %v485 = vpack.c.bf16 %v472, %v471
  %486 = vmatprep.subr.bf16.mxu0 0
  %487 = vmatpush1.bf16.msra.mxu0 %v485
  %488 = vmatprep.subr.bf16.mxu0 0
  %489 = vmatpush1.bf16.msra.mxu0 0
  %490 = vmatprep.subr.bf16.mxu0 0
  %491 = vmatpush1.bf16.msra.mxu0 0
  %492 = vmatprep.subr.bf16.mxu0 0
  %493 = vmatpush1.bf16.msra.mxu0 0
  %494 = vmatprep.subr.bf16.mxu0 0
  %495 = vmatpush1.bf16.msra.mxu0 0
  %496 = vmatprep.subr.bf16.mxu0 0
  %497 = vmatpush1.bf16.msra.mxu0 0
  %498 = vmatprep.subr.bf16.mxu0 0
  %499 = vmatpush1.bf16.msra.mxu0 0
  %500 = vmatprep.subr.bf16.mxu0 0
  %501 = vmatpush1.bf16.msra.mxu0 0
  %502 = vmatprep.subr.bf16.mxu0 0
  %503 = vmatpush1.bf16.msra.mxu0 0
  %504 = vmatprep.subr.bf16.mxu0 0
  %505 = vmatpush1.bf16.msra.mxu0 0
  %506 = vmatprep.subr.bf16.mxu0 0
  %507 = vmatpush1.bf16.msra.mxu0 0
  %508 = vmatprep.subr.bf16.mxu0 0
  %509 = vmatpush1.bf16.msra.mxu0 0
  %510 = vmatprep.subr.bf16.mxu0 0
  %511 = vmatpush1.bf16.msra.mxu0 0
  %512 = vmatprep.subr.bf16.mxu0 0
  %513 = vmatpush1.bf16.msra.mxu0 0
  %514 = vmatprep.subr.bf16.mxu0 0
  %515 = vmatpush1.bf16.msra.mxu0 0
  %516 = vmatprep.subr.bf16.mxu0 0
  %517 = vmatpush1.bf16.msra.mxu0 0
  %518 = vmatprep.mubr.bf16.mxu0 0
  %519 = vmatmul.mubr.bf16.gmra.mrb[0].mxu0 %v123
  %v520 = vpop.f32.mrb[0].mxu0
  %v521 = vadd.f32 0.0, %v520
  %v522 = vpop.f32.mrb[0].mxu0
  %v523 = vpop.f32.mrb[0].mxu0
  %v524 = vadd.f32 0.0, %v523
  %v525 = vpop.f32.mrb[0].mxu0
  %526 = vdwg.mxu0
  %v527 = vpack.c.bf16 %v524, %v521
  %v528 = vlaneseq
  %v529 = vshrl.u32 %v528, 7
  %v530 = vsub.s32 0, %v529
  %v531 = vrot.slane %v478, %v530
  %v536 = vunpack.c.l.b16 %v473
  %v537 = vunpack.c.l.b16 %v474
  %v538 = vunpack.c.l.b16 %v475
  %v539 = vunpack.c.l.b16 %v476
  %v540 = vpack.c.b16 %v537, %v536
  %v541 = vpack.c.b16 %v539, %v538
  %v545 = vsel %vm183, %v527, 0
  %547 = vmatprep.subr.bf16.mxu0 0
  %548 = vmatpush1.bf16.msra.mxu0 %v540
  %549 = vmatprep.subr.bf16.mxu0 0
  %550 = vmatpush1.bf16.msra.mxu0 %v541
  %551 = vmatprep.subr.bf16.mxu0 0
  %552 = vmatpush1.bf16.msra.mxu0 0
  %553 = vmatprep.subr.bf16.mxu0 0
  %554 = vmatpush1.bf16.msra.mxu0 0
  %555 = vmatprep.subr.bf16.mxu0 0
  %556 = vmatpush1.bf16.msra.mxu0 0
  %557 = vmatprep.subr.bf16.mxu0 0
  %558 = vmatpush1.bf16.msra.mxu0 0
  %559 = vmatprep.subr.bf16.mxu0 0
  %560 = vmatpush1.bf16.msra.mxu0 0
  %561 = vmatprep.subr.bf16.mxu0 0
  %562 = vmatpush1.bf16.msra.mxu0 0
  %563 = vmatprep.subr.bf16.mxu0 0
  %564 = vmatpush1.bf16.msra.mxu0 0
  %565 = vmatprep.subr.bf16.mxu0 0
  %566 = vmatpush1.bf16.msra.mxu0 0
  %567 = vmatprep.subr.bf16.mxu0 0
  %568 = vmatpush1.bf16.msra.mxu0 0
  %569 = vmatprep.subr.bf16.mxu0 0
  %570 = vmatpush1.bf16.msra.mxu0 0
  %571 = vmatprep.subr.bf16.mxu0 0
  %572 = vmatpush1.bf16.msra.mxu0 0
  %573 = vmatprep.subr.bf16.mxu0 0
  %574 = vmatpush1.bf16.msra.mxu0 0
  %575 = vmatprep.subr.bf16.mxu0 0
  %576 = vmatpush1.bf16.msra.mxu0 0
  %577 = vmatprep.subr.bf16.mxu0 0
  %578 = vmatpush1.bf16.msra.mxu0 0
  %579 = vmatprep.mubr.bf16.mxu0 0
  %580 = vmatmul.mubr.bf16.gmra.mrb[0].mxu0 %v545
  %v581 = vpop.f32.mrb[0].mxu0
  %v582 = vadd.f32 %v531, %v581
  %v583 = vpop.f32.mrb[0].mxu0
  %v584 = vpop.f32.mrb[0].mxu0
  %v585 = vadd.f32 %v531, %v584
  %v586 = vpop.f32.mrb[0].mxu0
  %587 = vdwg.mxu0
  %v588 = vmax.f32 %v582, 0.0
  %v589 = vmax.f32 %v585, 0.0
  %v590 = vpack.c.bf16 %v589, %v588
  %v591 = vlaneseq
  %v592 = vshrl.u32 %v591, 7
  %v593 = vsub.s32 0, %v592
  %v594 = vrot.slane %v484, %v593
  %v599 = vunpack.c.l.b16 %v479
  %v600 = vunpack.c.l.b16 %v480
  %v601 = vunpack.c.l.b16 %v481
  %v602 = vunpack.c.l.b16 %v482
  %v603 = vpack.c.b16 %v600, %v599
  %v604 = vpack.c.b16 %v602, %v601
  %v608 = vsel %vm183, %v590, 0
  %610 = vmatprep.subr.bf16.mxu0 0
  %611 = vmatpush1.bf16.msra.mxu0 %v603
  %612 = vmatprep.subr.bf16.mxu0 0
  %613 = vmatpush1.bf16.msra.mxu0 %v604
  %614 = vmatprep.subr.bf16.mxu0 0
  %615 = vmatpush1.bf16.msra.mxu0 0
  %616 = vmatprep.subr.bf16.mxu0 0
  %617 = vmatpush1.bf16.msra.mxu0 0
  %618 = vmatprep.subr.bf16.mxu0 0
  %619 = vmatpush1.bf16.msra.mxu0 0
  %620 = vmatprep.subr.bf16.mxu0 0
  %621 = vmatpush1.bf16.msra.mxu0 0
  %622 = vmatprep.subr.bf16.mxu0 0
  %623 = vmatpush1.bf16.msra.mxu0 0
  %624 = vmatprep.subr.bf16.mxu0 0
  %625 = vmatpush1.bf16.msra.mxu0 0
  %626 = vmatprep.subr.bf16.mxu0 0
  %627 = vmatpush1.bf16.msra.mxu0 0
  %628 = vmatprep.subr.bf16.mxu0 0
  %629 = vmatpush1.bf16.msra.mxu0 0
  %630 = vmatprep.subr.bf16.mxu0 0
  %631 = vmatpush1.bf16.msra.mxu0 0
  %632 = vmatprep.subr.bf16.mxu0 0
  %633 = vmatpush1.bf16.msra.mxu0 0
  %634 = vmatprep.subr.bf16.mxu0 0
  %635 = vmatpush1.bf16.msra.mxu0 0
  %636 = vmatprep.subr.bf16.mxu0 0
  %637 = vmatpush1.bf16.msra.mxu0 0
  %638 = vmatprep.subr.bf16.mxu0 0
  %639 = vmatpush1.bf16.msra.mxu0 0
  %640 = vmatprep.subr.bf16.mxu0 0
  %641 = vmatpush1.bf16.msra.mxu0 0
  %642 = vmatprep.mubr.bf16.mxu0 0
  %643 = vmatmul.mubr.bf16.gmra.mrb[0].mxu0 %v608
  %v644 = vpop.f32.mrb[0].mxu0
  %v645 = vadd.f32 %v594, %v644
  %v646 = vpop.f32.mrb[0].mxu0
  %v647 = vpop.f32.mrb[0].mxu0
  %v648 = vadd.f32 %v594, %v647
  %v649 = vpop.f32.mrb[0].mxu0
  %650 = vdwg.mxu0
  %v651 = vmax.f32 %v645, 0.0
  %v652 = vmax.f32 %v648, 0.0
  %v653 = vld [vmem:[%s5 + $0x84] sm:$0xf]
  %v654 = vld [vmem:[%s5 + $0x88] sm:$0xf]
  %v655 = vld [vmem:[%s5 + $0x8c] sm:$0xf]
  %v656 = vld [vmem:[%s5 + $0x90] sm:$0xf]
  %v657 = vld [vmem:[%s5 + $0x94] sm:$0x1]
  %v658 = vunpack.c.l.bf16 %v657
  %v659 = vld [vmem:[%s5 + $0x98] sm:$0xf]
  %v660 = vld [vmem:[%s5 + $0x9c] sm:$0xf]
  %v661 = vld [vmem:[%s5 + $0xa0] sm:$0xf]
  %v662 = vld [vmem:[%s5 + $0xa4] sm:$0xf]
  %v663 = vld [vmem:[%s5 + $0xa8] sm:$0x1]
  %v664 = vunpack.c.l.bf16 %v663
  %v665 = vpack.c.bf16 %v652, %v651
  %666 = vmatprep.subr.bf16.mxu0 0
  %667 = vmatpush1.bf16.msra.mxu0 %v665
  %668 = vmatprep.subr.bf16.mxu0 0
  %669 = vmatpush1.bf16.msra.mxu0 0
  %670 = vmatprep.subr.bf16.mxu0 0
  %671 = vmatpush1.bf16.msra.mxu0 0
  %672 = vmatprep.subr.bf16.mxu0 0
  %673 = vmatpush1.bf16.msra.mxu0 0
  %674 = vmatprep.subr.bf16.mxu0 0
  %675 = vmatpush1.bf16.msra.mxu0 0
  %676 = vmatprep.subr.bf16.mxu0 0
  %677 = vmatpush1.bf16.msra.mxu0 0
  %678 = vmatprep.subr.bf16.mxu0 0
  %679 = vmatpush1.bf16.msra.mxu0 0
  %680 = vmatprep.subr.bf16.mxu0 0
  %681 = vmatpush1.bf16.msra.mxu0 0
  %682 = vmatprep.subr.bf16.mxu0 0
  %683 = vmatpush1.bf16.msra.mxu0 0
  %684 = vmatprep.subr.bf16.mxu0 0
  %685 = vmatpush1.bf16.msra.mxu0 0
  %686 = vmatprep.subr.bf16.mxu0 0
  %687 = vmatpush1.bf16.msra.mxu0 0
  %688 = vmatprep.subr.bf16.mxu0 0
  %689 = vmatpush1.bf16.msra.mxu0 0
  %690 = vmatprep.subr.bf16.mxu0 0
  %691 = vmatpush1.bf16.msra.mxu0 0
  %692 = vmatprep.subr.bf16.mxu0 0
  %693 = vmatpush1.bf16.msra.mxu0 0
  %694 = vmatprep.subr.bf16.mxu0 0
  %695 = vmatpush1.bf16.msra.mxu0 0
  %696 = vmatprep.subr.bf16.mxu0 0
  %697 = vmatpush1.bf16.msra.mxu0 0
  %698 = vmatprep.mubr.bf16.mxu0 0
  %699 = vmatmul.mubr.bf16.gmra.mrb[0].mxu0 %v123
  %v700 = vpop.f32.mrb[0].mxu0
  %v701 = vadd.f32 0.0, %v700
  %v702 = vpop.f32.mrb[0].mxu0
  %v703 = vpop.f32.mrb[0].mxu0
  %v704 = vadd.f32 0.0, %v703
  %v705 = vpop.f32.mrb[0].mxu0
  %706 = vdwg.mxu0
  %v707 = vpack.c.bf16 %v704, %v701
  %v708 = vlaneseq
  %v709 = vshrl.u32 %v708, 7
  %v710 = vsub.s32 0, %v709
  %v711 = vrot.slane %v658, %v710
  %v716 = vunpack.c.l.b16 %v653
  %v717 = vunpack.c.l.b16 %v654
  %v718 = vunpack.c.l.b16 %v655
  %v719 = vunpack.c.l.b16 %v656
  %v720 = vpack.c.b16 %v717, %v716
  %v721 = vpack.c.b16 %v719, %v718
  %v725 = vsel %vm183, %v707, 0
  %727 = vmatprep.subr.bf16.mxu0 0
  %728 = vmatpush1.bf16.msra.mxu0 %v720
  %729 = vmatprep.subr.bf16.mxu0 0
  %730 = vmatpush1.bf16.msra.mxu0 %v721
  %731 = vmatprep.subr.bf16.mxu0 0
  %732 = vmatpush1.bf16.msra.mxu0 0
  %733 = vmatprep.subr.bf16.mxu0 0
  %734 = vmatpush1.bf16.msra.mxu0 0
  %735 = vmatprep.subr.bf16.mxu0 0
  %736 = vmatpush1.bf16.msra.mxu0 0
  %737 = vmatprep.subr.bf16.mxu0 0
  %738 = vmatpush1.bf16.msra.mxu0 0
  %739 = vmatprep.subr.bf16.mxu0 0
  %740 = vmatpush1.bf16.msra.mxu0 0
  %741 = vmatprep.subr.bf16.mxu0 0
  %742 = vmatpush1.bf16.msra.mxu0 0
  %743 = vmatprep.subr.bf16.mxu0 0
  %744 = vmatpush1.bf16.msra.mxu0 0
  %745 = vmatprep.subr.bf16.mxu0 0
  %746 = vmatpush1.bf16.msra.mxu0 0
  %747 = vmatprep.subr.bf16.mxu0 0
  %748 = vmatpush1.bf16.msra.mxu0 0
  %749 = vmatprep.subr.bf16.mxu0 0
  %750 = vmatpush1.bf16.msra.mxu0 0
  %751 = vmatprep.subr.bf16.mxu0 0
  %752 = vmatpush1.bf16.msra.mxu0 0
  %753 = vmatprep.subr.bf16.mxu0 0
  %754 = vmatpush1.bf16.msra.mxu0 0
  %755 = vmatprep.subr.bf16.mxu0 0
  %756 = vmatpush1.bf16.msra.mxu0 0
  %757 = vmatprep.subr.bf16.mxu0 0
  %758 = vmatpush1.bf16.msra.mxu0 0
  %759 = vmatprep.mubr.bf16.mxu0 0
  %760 = vmatmul.mubr.bf16.gmra.mrb[0].mxu0 %v725
  %v761 = vpop.f32.mrb[0].mxu0
  %v762 = vadd.f32 %v711, %v761
  %v763 = vpop.f32.mrb[0].mxu0
  %v764 = vpop.f32.mrb[0].mxu0
  %v765 = vadd.f32 %v711, %v764
  %v766 = vpop.f32.mrb[0].mxu0
  %767 = vdwg.mxu0
  %v768 = vmax.f32 %v762, 0.0
  %v769 = vmax.f32 %v765, 0.0
  %v770 = vpack.c.bf16 %v769, %v768
  %v771 = vlaneseq
  %v772 = vshrl.u32 %v771, 7
  %v773 = vsub.s32 0, %v772
  %v774 = vrot.slane %v664, %v773
  %v779 = vunpack.c.l.b16 %v659
  %v780 = vunpack.c.l.b16 %v660
  %v781 = vunpack.c.l.b16 %v661
  %v782 = vunpack.c.l.b16 %v662
  %v783 = vpack.c.b16 %v780, %v779
  %v784 = vpack.c.b16 %v782, %v781
  %v788 = vsel %vm183, %v770, 0
  %790 = vmatprep.subr.bf16.mxu0 0
  %791 = vmatpush1.bf16.msra.mxu0 %v783
  %792 = vmatprep.subr.bf16.mxu0 0
  %793 = vmatpush1.bf16.msra.mxu0 %v784
  %794 = vmatprep.subr.bf16.mxu0 0
  %795 = vmatpush1.bf16.msra.mxu0 0
  %796 = vmatprep.subr.bf16.mxu0 0
  %797 = vmatpush1.bf16.msra.mxu0 0
  %798 = vmatprep.subr.bf16.mxu0 0
  %799 = vmatpush1.bf16.msra.mxu0 0
  %800 = vmatprep.subr.bf16.mxu0 0
  %801 = vmatpush1.bf16.msra.mxu0 0
  %802 = vmatprep.subr.bf16.mxu0 0
  %803 = vmatpush1.bf16.msra.mxu0 0
  %804 = vmatprep.subr.bf16.mxu0 0
  %805 = vmatpush1.bf16.msra.mxu0 0
  %806 = vmatprep.subr.bf16.mxu0 0
  %807 = vmatpush1.bf16.msra.mxu0 0
  %808 = vmatprep.subr.bf16.mxu0 0
  %809 = vmatpush1.bf16.msra.mxu0 0
  %810 = vmatprep.subr.bf16.mxu0 0
  %811 = vmatpush1.bf16.msra.mxu0 0
  %812 = vmatprep.subr.bf16.mxu0 0
  %813 = vmatpush1.bf16.msra.mxu0 0
  %814 = vmatprep.subr.bf16.mxu0 0
  %815 = vmatpush1.bf16.msra.mxu0 0
  %816 = vmatprep.subr.bf16.mxu0 0
  %817 = vmatpush1.bf16.msra.mxu0 0
  %818 = vmatprep.subr.bf16.mxu0 0
  %819 = vmatpush1.bf16.msra.mxu0 0
  %820 = vmatprep.subr.bf16.mxu0 0
  %821 = vmatpush1.bf16.msra.mxu0 0
  %822 = vmatprep.mubr.bf16.mxu0 0
  %823 = vmatmul.mubr.bf16.gmra.mrb[0].mxu0 %v788
  %v824 = vpop.f32.mrb[0].mxu0
  %v825 = vadd.f32 %v774, %v824
  %v826 = vpop.f32.mrb[0].mxu0
  %v827 = vpop.f32.mrb[0].mxu0
  %v828 = vadd.f32 %v774, %v827
  %v829 = vpop.f32.mrb[0].mxu0
  %830 = vdwg.mxu0
  %v831 = vmax.f32 %v825, 0.0
  %v832 = vmax.f32 %v828, 0.0
  %v833 = vld [vmem:[%s5 + $0xac] sm:$0xf]
  %v834 = vld [vmem:[%s5 + $0xb0] sm:$0xf]
  %v835 = vld [vmem:[%s5 + $0xb4] sm:$0xf]
  %v836 = vld [vmem:[%s5 + $0xb8] sm:$0xf]
  %v837 = vld [vmem:[%s5 + $0xbc] sm:$0x1]
  %v838 = vunpack.c.l.bf16 %v837
  %v839 = vld [vmem:[%s5 + $0xc0] sm:$0xf]
  %v840 = vld [vmem:[%s5 + $0xc4] sm:$0xf]
  %v841 = vld [vmem:[%s5 + $0xc8] sm:$0xf]
  %v842 = vld [vmem:[%s5 + $0xcc] sm:$0xf]
  %v843 = vld [vmem:[%s5 + $0xd0] sm:$0x1]
  %v844 = vunpack.c.l.bf16 %v843
  %v845 = vpack.c.bf16 %v832, %v831
  %846 = vmatprep.subr.bf16.mxu0 0
  %847 = vmatpush1.bf16.msra.mxu0 %v845
  %848 = vmatprep.subr.bf16.mxu0 0
  %849 = vmatpush1.bf16.msra.mxu0 0
  %850 = vmatprep.subr.bf16.mxu0 0
  %851 = vmatpush1.bf16.msra.mxu0 0
  %852 = vmatprep.subr.bf16.mxu0 0
  %853 = vmatpush1.bf16.msra.mxu0 0
  %854 = vmatprep.subr.bf16.mxu0 0
  %855 = vmatpush1.bf16.msra.mxu0 0
  %856 = vmatprep.subr.bf16.mxu0 0
  %857 = vmatpush1.bf16.msra.mxu0 0
  %858 = vmatprep.subr.bf16.mxu0 0
  %859 = vmatpush1.bf16.msra.mxu0 0
  %860 = vmatprep.subr.bf16.mxu0 0
  %861 = vmatpush1.bf16.msra.mxu0 0
  %862 = vmatprep.subr.bf16.mxu0 0
  %863 = vmatpush1.bf16.msra.mxu0 0
  %864 = vmatprep.subr.bf16.mxu0 0
  %865 = vmatpush1.bf16.msra.mxu0 0
  %866 = vmatprep.subr.bf16.mxu0 0
  %867 = vmatpush1.bf16.msra.mxu0 0
  %868 = vmatprep.subr.bf16.mxu0 0
  %869 = vmatpush1.bf16.msra.mxu0 0
  %870 = vmatprep.subr.bf16.mxu0 0
  %871 = vmatpush1.bf16.msra.mxu0 0
  %872 = vmatprep.subr.bf16.mxu0 0
  %873 = vmatpush1.bf16.msra.mxu0 0
  %874 = vmatprep.subr.bf16.mxu0 0
  %875 = vmatpush1.bf16.msra.mxu0 0
  %876 = vmatprep.subr.bf16.mxu0 0
  %877 = vmatpush1.bf16.msra.mxu0 0
  %878 = vmatprep.mubr.bf16.mxu0 0
  %879 = vmatmul.mubr.bf16.gmra.mrb[0].mxu0 %v123
  %v880 = vpop.f32.mrb[0].mxu0
  %v881 = vadd.f32 0.0, %v880
  %v882 = vpop.f32.mrb[0].mxu0
  %v883 = vpop.f32.mrb[0].mxu0
  %v884 = vadd.f32 0.0, %v883
  %v885 = vpop.f32.mrb[0].mxu0
  %886 = vdwg.mxu0
  %v887 = vpack.c.bf16 %v884, %v881
  %v888 = vlaneseq
  %v889 = vshrl.u32 %v888, 7
  %v890 = vsub.s32 0, %v889
  %v891 = vrot.slane %v838, %v890
  %v896 = vunpack.c.l.b16 %v833
  %v897 = vunpack.c.l.b16 %v834
  %v898 = vunpack.c.l.b16 %v835
  %v899 = vunpack.c.l.b16 %v836
  %v900 = vpack.c.b16 %v897, %v896
  %v901 = vpack.c.b16 %v899, %v898
  %v905 = vsel %vm183, %v887, 0
  %907 = vmatprep.subr.bf16.mxu0 0
  %908 = vmatpush1.bf16.msra.mxu0 %v900
  %909 = vmatprep.subr.bf16.mxu0 0
  %910 = vmatpush1.bf16.msra.mxu0 %v901
  %911 = vmatprep.subr.bf16.mxu0 0
  %912 = vmatpush1.bf16.msra.mxu0 0
  %913 = vmatprep.subr.bf16.mxu0 0
  %914 = vmatpush1.bf16.msra.mxu0 0
  %915 = vmatprep.subr.bf16.mxu0 0
  %916 = vmatpush1.bf16.msra.mxu0 0
  %917 = vmatprep.subr.bf16.mxu0 0
  %918 = vmatpush1.bf16.msra.mxu0 0
  %919 = vmatprep.subr.bf16.mxu0 0
  %920 = vmatpush1.bf16.msra.mxu0 0
  %921 = vmatprep.subr.bf16.mxu0 0
  %922 = vmatpush1.bf16.msra.mxu0 0
  %923 = vmatprep.subr.bf16.mxu0 0
  %924 = vmatpush1.bf16.msra.mxu0 0
  %925 = vmatprep.subr.bf16.mxu0 0
  %926 = vmatpush1.bf16.msra.mxu0 0
  %927 = vmatprep.subr.bf16.mxu0 0
  %928 = vmatpush1.bf16.msra.mxu0 0
  %929 = vmatprep.subr.bf16.mxu0 0
  %930 = vmatpush1.bf16.msra.mxu0 0
  %931 = vmatprep.subr.bf16.mxu0 0
  %932 = vmatpush1.bf16.msra.mxu0 0
  %933 = vmatprep.subr.bf16.mxu0 0
  %934 = vmatpush1.bf16.msra.mxu0 0
  %935 = vmatprep.subr.bf16.mxu0 0
  %936 = vmatpush1.bf16.msra.mxu0 0
  %937 = vmatprep.subr.bf16.mxu0 0
  %938 = vmatpush1.bf16.msra.mxu0 0
  %939 = vmatprep.mubr.bf16.mxu0 0
  %940 = vmatmul.mubr.bf16.gmra.mrb[0].mxu0 %v905
  %v941 = vpop.f32.mrb[0].mxu0
  %v942 = vadd.f32 %v891, %v941
  %v943 = vpop.f32.mrb[0].mxu0
  %v944 = vpop.f32.mrb[0].mxu0
  %v945 = vadd.f32 %v891, %v944
  %v946 = vpop.f32.mrb[0].mxu0
  %947 = vdwg.mxu0
  %v948 = vmax.f32 %v942, 0.0
  %v949 = vmax.f32 %v945, 0.0
  %v950 = vpack.c.bf16 %v949, %v948
  %v951 = vlaneseq
  %v952 = vshrl.u32 %v951, 7
  %v953 = vsub.s32 0, %v952
  %v954 = vrot.slane %v844, %v953
  %v959 = vunpack.c.l.b16 %v839
  %v960 = vunpack.c.l.b16 %v840
  %v961 = vunpack.c.l.b16 %v841
  %v962 = vunpack.c.l.b16 %v842
  %v963 = vpack.c.b16 %v960, %v959
  %v964 = vpack.c.b16 %v962, %v961
  %v968 = vsel %vm183, %v950, 0
  %970 = vmatprep.subr.bf16.mxu0 0
  %971 = vmatpush1.bf16.msra.mxu0 %v963
  %972 = vmatprep.subr.bf16.mxu0 0
  %973 = vmatpush1.bf16.msra.mxu0 %v964
  %974 = vmatprep.subr.bf16.mxu0 0
  %975 = vmatpush1.bf16.msra.mxu0 0
  %976 = vmatprep.subr.bf16.mxu0 0
  %977 = vmatpush1.bf16.msra.mxu0 0
  %978 = vmatprep.subr.bf16.mxu0 0
  %979 = vmatpush1.bf16.msra.mxu0 0
  %980 = vmatprep.subr.bf16.mxu0 0
  %981 = vmatpush1.bf16.msra.mxu0 0
  %982 = vmatprep.subr.bf16.mxu0 0
  %983 = vmatpush1.bf16.msra.mxu0 0
  %984 = vmatprep.subr.bf16.mxu0 0
  %985 = vmatpush1.bf16.msra.mxu0 0
  %986 = vmatprep.subr.bf16.mxu0 0
  %987 = vmatpush1.bf16.msra.mxu0 0
  %988 = vmatprep.subr.bf16.mxu0 0
  %989 = vmatpush1.bf16.msra.mxu0 0
  %990 = vmatprep.subr.bf16.mxu0 0
  %991 = vmatpush1.bf16.msra.mxu0 0
  %992 = vmatprep.subr.bf16.mxu0 0
  %993 = vmatpush1.bf16.msra.mxu0 0
  %994 = vmatprep.subr.bf16.mxu0 0
  %995 = vmatpush1.bf16.msra.mxu0 0
  %996 = vmatprep.subr.bf16.mxu0 0
  %997 = vmatpush1.bf16.msra.mxu0 0
  %998 = vmatprep.subr.bf16.mxu0 0
  %999 = vmatpush1.bf16.msra.mxu0 0
  %1000 = vmatprep.subr.bf16.mxu0 0
  %1001 = vmatpush1.bf16.msra.mxu0 0
  %1002 = vmatprep.mubr.bf16.mxu0 0
  %1003 = vmatmul.mubr.bf16.gmra.mrb[0].mxu0 %v968
  %v1004 = vpop.f32.mrb[0].mxu0
  %v1005 = vadd.f32 %v954, %v1004
  %v1006 = vpop.f32.mrb[0].mxu0
  %v1007 = vpop.f32.mrb[0].mxu0
  %v1008 = vadd.f32 %v954, %v1007
  %v1009 = vpop.f32.mrb[0].mxu0
  %1010 = vdwg.mxu0
  %v1011 = vpack.c.bf16 %v1008, %v1005
  %v1013 = vsel %vm59, %v39, 0
  %1015 = vmatprep.subr.bf16.mxu0 0
  %1016 = vmatpush1.bf16.msra.mxu0 %v1011
  %1017 = vmatprep.subr.bf16.mxu0 0
  %1018 = vmatpush1.bf16.msra.mxu0 0
  %1019 = vmatprep.subr.bf16.mxu0 0
  %1020 = vmatpush1.bf16.msra.mxu0 0
  %1021 = vmatprep.subr.bf16.mxu0 0
  %1022 = vmatpush1.bf16.msra.mxu0 0
  %1023 = vmatprep.subr.bf16.mxu0 0
  %1024 = vmatpush1.bf16.msra.mxu0 0
  %1025 = vmatprep.subr.bf16.mxu0 0
  %1026 = vmatpush1.bf16.msra.mxu0 0
  %1027 = vmatprep.subr.bf16.mxu0 0
  %1028 = vmatpush1.bf16.msra.mxu0 0
  %1029 = vmatprep.subr.bf16.mxu0 0
  %1030 = vmatpush1.bf16.msra.mxu0 0
  %1031 = vmatprep.subr.bf16.mxu0 0
  %1032 = vmatpush1.bf16.msra.mxu0 0
  %1033 = vmatprep.subr.bf16.mxu0 0
  %1034 = vmatpush1.bf16.msra.mxu0 0
  %1035 = vmatprep.subr.bf16.mxu0 0
  %1036 = vmatpush1.bf16.msra.mxu0 0
  %1037 = vmatprep.subr.bf16.mxu0 0
  %1038 = vmatpush1.bf16.msra.mxu0 0
  %1039 = vmatprep.subr.bf16.mxu0 0
  %1040 = vmatpush1.bf16.msra.mxu0 0
  %1041 = vmatprep.subr.bf16.mxu0 0
  %1042 = vmatpush1.bf16.msra.mxu0 0
  %1043 = vmatprep.subr.bf16.mxu0 0
  %1044 = vmatpush1.bf16.msra.mxu0 0
  %1045 = vmatprep.subr.bf16.mxu0 0
  %1046 = vmatpush1.bf16.msra.mxu0 0
  %1047 = vmatprep.mubr.bf16.mxu0 0
  %1048 = vmatmul.mubr.bf16.gmra.mrb[0].mxu0 %v1013
  %v1049 = vpop.f32.mrb[0].mxu0
  %v1050 = vadd.f32 0.0, %v1049
  %v1051 = vpop.f32.mrb[0].mxu0
  %v1052 = vpop.f32.mrb[0].mxu0
  %v1053 = vpop.f32.mrb[0].mxu0
  %1054 = vdwg.mxu0
  %v1055 = vlaneseq
  %v1056 = vand.u32 %v1055, 127
  %1057 = vset.pattern.permute.xlu0 0
  %1058 = vperm.xlu0 %1057, %v33
  %v1059 = vpop.permute.xlu0 %1058
  %vm1060 = vcmp.eq.s32.totalorder %v1059, %v1056
  %v1061 = vsel %vm1060, 1, 0
  %v1062 = vcvt.s32.f32 %v1061
  %v1063 = vpack.c.bf16 %v1062, %v1062
  %v1064 = vpack.c.bf16 %v1050, %v1050
  %vm1065 = vcmask 64512
  %v1067 = vsel %vm1065, %v1063, 0
  %vm1069 = vcmask 1043456
  %v1071 = vsel %vm1069, %v1064, 0
  %1073 = vmatprep.subr.bf16.mxu0 0
  %1074 = vmatpush1.bf16.msra.mxu0 %v1071
  %1075 = vmatprep.subr.bf16.mxu0 0
  %1076 = vmatpush1.bf16.msra.mxu0 0
  %1077 = vmatprep.subr.bf16.mxu0 0
  %1078 = vmatpush1.bf16.msra.mxu0 0
  %1079 = vmatprep.subr.bf16.mxu0 0
  %1080 = vmatpush1.bf16.msra.mxu0 0
  %1081 = vmatprep.subr.bf16.mxu0 0
  %1082 = vmatpush1.bf16.msra.mxu0 0
  %1083 = vmatprep.subr.bf16.mxu0 0
  %1084 = vmatpush1.bf16.msra.mxu0 0
  %1085 = vmatprep.subr.bf16.mxu0 0
  %1086 = vmatpush1.bf16.msra.mxu0 0
  %1087 = vmatprep.subr.bf16.mxu0 0
  %1088 = vmatpush1.bf16.msra.mxu0 0
  %1089 = vmatprep.subr.bf16.mxu0 0
  %1090 = vmatpush1.bf16.msra.mxu0 0
  %1091 = vmatprep.subr.bf16.mxu0 0
  %1092 = vmatpush1.bf16.msra.mxu0 0
  %1093 = vmatprep.subr.bf16.mxu0 0
  %1094 = vmatpush1.bf16.msra.mxu0 0
  %1095 = vmatprep.subr.bf16.mxu0 0
  %1096 = vmatpush1.bf16.msra.mxu0 0
  %1097 = vmatprep.subr.bf16.mxu0 0
  %1098 = vmatpush1.bf16.msra.mxu0 0
  %1099 = vmatprep.subr.bf16.mxu0 0
  %1100 = vmatpush1.bf16.msra.mxu0 0
  %1101 = vmatprep.subr.bf16.mxu0 0
  %1102 = vmatpush1.bf16.msra.mxu0 0
  %1103 = vmatprep.subr.bf16.mxu0 0
  %1104 = vmatpush1.bf16.msra.mxu0 0
  %1105 = vmatprep.mubr.bf16.mxu0 0
  %1106 = vmatmul.mubr.bf16.gmra.mrb[0].mxu0 %v1067
  %v1107 = vpop.f32.mrb[0].mxu0
  %v1108 = vadd.f32 0.0, %v1107
  %v1109 = vpop.f32.mrb[0].mxu0
  %v1110 = vpop.f32.mrb[0].mxu0
  %v1111 = vpop.f32.mrb[0].mxu0
  %1112 = vdwg.mxu0
  %v1113 = vld [vmem:[%s2] sm:$0xf]
  %v1114 = vld [vmem:[%s2 + $0x4] sm:$0xf]
  %v1115 = vld [vmem:[%s2 + $0x8] sm:$0xf]
  %v1116 = vld [vmem:[%s2 + $0xc] sm:$0xf]
  %v1117 = vld [vmem:[%s2 + $0x10] sm:$0xf]
  %v1118 = vld [vmem:[%s2 + $0x14] sm:$0xf]
  %v1119 = vld [vmem:[%s2 + $0x18] sm:$0xf]
  %v1120 = vld [vmem:[%s2 + $0x1c] sm:$0xf]
  %v1121 = vld [vmem:[%s2 + $0x20] sm:$0xf]
  %v1122 = vld [vmem:[%s2 + $0x24] sm:$0xf]
  %v1123 = vld [vmem:[%s2 + $0x28] sm:$0xf]
  %v1124 = vld [vmem:[%s2 + $0x2c] sm:$0xf]
  %v1125 = vld [vmem:[%s2 + $0x30] sm:$0xf]
  %v1126 = vld [vmem:[%s2 + $0x34] sm:$0xf]
  %v1127 = vld [vmem:[%s2 + $0x38] sm:$0xf]
  %v1128 = vld [vmem:[%s2 + $0x3c] sm:$0xf]
  %v1129 = vld [vmem:[%s3] sm:$0x1]
  %v1130 = vld [vmem:[%s3 + $0x8] sm:$0x1]
  %1131 = vset.pattern.permute.xlu0 0
  %1132 = vperm.xlu0 %1131, %v24
  %v1133 = vpop.permute.xlu0 %1132
  %1134 = vset.pattern.permute.xlu0 0
  %1135 = vperm.xlu0 %1134, %v25
  %v1136 = vpop.permute.xlu0 %1135
  %1137 = vset.pattern.permute.xlu0 0
  %1138 = vperm.xlu0 %1137, %v26
  %v1139 = vpop.permute.xlu0 %1138
  %1140 = vset.pattern.permute.xlu0 0
  %1141 = vperm.xlu0 %1140, %v27
  %v1142 = vpop.permute.xlu0 %1141
  %1143 = vset.pattern.permute.xlu0 0
  %1144 = vperm.xlu0 %1143, %v28
  %v1145 = vpop.permute.xlu0 %1144
  %1146 = vset.pattern.permute.xlu0 0
  %1147 = vperm.xlu0 %1146, %v29
  %v1148 = vpop.permute.xlu0 %1147
  %1149 = vset.pattern.permute.xlu0 0
  %1150 = vperm.xlu0 %1149, %v30
  %v1151 = vpop.permute.xlu0 %1150
  %1152 = vset.pattern.permute.xlu0 0
  %1153 = vperm.xlu0 %1152, %v31
  %v1154 = vpop.permute.xlu0 %1153
  %vm1155 = vcmp.eq.s32.totalorder %v1133, %v1056
  %vm1156 = vcmp.eq.s32.totalorder %v1136, %v1056
  %vm1157 = vcmp.eq.s32.totalorder %v1139, %v1056
  %vm1158 = vcmp.eq.s32.totalorder %v1142, %v1056
  %vm1159 = vcmp.eq.s32.totalorder %v1145, %v1056
  %vm1160 = vcmp.eq.s32.totalorder %v1148, %v1056
  %vm1161 = vcmp.eq.s32.totalorder %v1151, %v1056
  %vm1162 = vcmp.eq.s32.totalorder %v1154, %v1056
  %v1163 = vsel %vm1155, 1, 0
  %v1164 = vsel %vm1156, 1, 0
  %v1165 = vsel %vm1157, 1, 0
  %v1166 = vsel %vm1158, 1, 0
  %v1167 = vsel %vm1159, 1, 0
  %v1168 = vsel %vm1160, 1, 0
  %v1169 = vsel %vm1161, 1, 0
  %v1170 = vsel %vm1162, 1, 0
  %v1171 = vcvt.s32.f32 %v1163
  %v1172 = vcvt.s32.f32 %v1164
  %v1173 = vcvt.s32.f32 %v1165
  %v1174 = vcvt.s32.f32 %v1166
  %v1175 = vcvt.s32.f32 %v1167
  %v1176 = vcvt.s32.f32 %v1168
  %v1177 = vcvt.s32.f32 %v1169
  %v1178 = vcvt.s32.f32 %v1170
  %v1179 = vpack.c.bf16 %v1172, %v1171
  %v1180 = vpack.c.bf16 %v1174, %v1173
  %v1181 = vpack.c.bf16 %v1176, %v1175
  %v1182 = vpack.c.bf16 %v1178, %v1177
  %v1183 = vlaneseq
  %v1184 = vshrl.u32 %v1183, 7
  %v1185 = vsub.s32 0, %v1184
  %v1186 = vrot.slane %v1129, %v1185
  %v1191 = vunpack.c.l.b16 %v1113
  %v1192 = vunpack.c.l.b16 %v1114
  %v1193 = vunpack.c.l.b16 %v1115
  %v1194 = vunpack.c.l.b16 %v1116
  %v1195 = vpack.c.b16 %v1192, %v1191
  %v1196 = vpack.c.b16 %v1194, %v1193
  %v1200 = vsel %vm183, %v1179, 0
  %v1203 = vsel %vm183, %v1180, 0
  %v1206 = vsel %vm183, %v1181, 0
  %v1209 = vsel %vm183, %v1182, 0
  %1211 = vmatprep.subr.bf16.mxu0 0
  %1212 = vmatpush1.bf16.msra.mxu0 %v1195
  %1213 = vmatprep.subr.bf16.mxu0 0
  %1214 = vmatpush1.bf16.msra.mxu0 %v1196
  %1215 = vmatprep.subr.bf16.mxu0 0
  %1216 = vmatpush1.bf16.msra.mxu0 0
  %1217 = vmatprep.subr.bf16.mxu0 0
  %1218 = vmatpush1.bf16.msra.mxu0 0
  %1219 = vmatprep.subr.bf16.mxu0 0
  %1220 = vmatpush1.bf16.msra.mxu0 0
  %1221 = vmatprep.subr.bf16.mxu0 0
  %1222 = vmatpush1.bf16.msra.mxu0 0
  %1223 = vmatprep.subr.bf16.mxu0 0
  %1224 = vmatpush1.bf16.msra.mxu0 0
  %1225 = vmatprep.subr.bf16.mxu0 0
  %1226 = vmatpush1.bf16.msra.mxu0 0
  %1227 = vmatprep.subr.bf16.mxu0 0
  %1228 = vmatpush1.bf16.msra.mxu0 0
  %1229 = vmatprep.subr.bf16.mxu0 0
  %1230 = vmatpush1.bf16.msra.mxu0 0
  %1231 = vmatprep.subr.bf16.mxu0 0
  %1232 = vmatpush1.bf16.msra.mxu0 0
  %1233 = vmatprep.subr.bf16.mxu0 0
  %1234 = vmatpush1.bf16.msra.mxu0 0
  %1235 = vmatprep.subr.bf16.mxu0 0
  %1236 = vmatpush1.bf16.msra.mxu0 0
  %1237 = vmatprep.subr.bf16.mxu0 0
  %1238 = vmatpush1.bf16.msra.mxu0 0
  %1239 = vmatprep.subr.bf16.mxu0 0
  %1240 = vmatpush1.bf16.msra.mxu0 0
  %1241 = vmatprep.subr.bf16.mxu0 0
  %1242 = vmatpush1.bf16.msra.mxu0 0
  %1243 = vmatprep.mubr.bf16.mxu0 0
  %1244 = vmatmul.mubr.bf16.gmra.mrb[0].mxu0 %v1200
  %v1245 = vpop.f32.mrb[0].mxu0
  %v1246 = vadd.f32 %v1186, %v1245
  %v1247 = vpop.f32.mrb[0].mxu0
  %v1248 = vpop.f32.mrb[0].mxu0
  %v1249 = vadd.f32 %v1186, %v1248
  %v1250 = vpop.f32.mrb[0].mxu0
  %1251 = vmatprep.mubr.bf16.mxu0 0
  %1252 = vmatmul.mubr.bf16.gmra.mrb[0].mxu0 %v1203
  %v1253 = vpop.f32.mrb[0].mxu0
  %v1254 = vadd.f32 %v1186, %v1253
  %v1255 = vpop.f32.mrb[0].mxu0
  %v1256 = vpop.f32.mrb[0].mxu0
  %v1257 = vadd.f32 %v1186, %v1256
  %v1258 = vpop.f32.mrb[0].mxu0
  %1259 = vmatprep.mubr.bf16.mxu0 0
  %1260 = vmatmul.mubr.bf16.gmra.mrb[0].mxu0 %v1206
  %v1261 = vpop.f32.mrb[0].mxu0
  %v1262 = vadd.f32 %v1186, %v1261
  %v1263 = vpop.f32.mrb[0].mxu0
  %v1264 = vpop.f32.mrb[0].mxu0
  %v1265 = vadd.f32 %v1186, %v1264
  %v1266 = vpop.f32.mrb[0].mxu0
  %1267 = vmatprep.mubr.bf16.mxu0 0
  %1268 = vmatmul.mubr.bf16.gmra.mrb[0].mxu0 %v1209
  %v1269 = vpop.f32.mrb[0].mxu0
  %v1270 = vadd.f32 %v1186, %v1269
  %v1271 = vpop.f32.mrb[0].mxu0
  %v1272 = vpop.f32.mrb[0].mxu0
  %v1273 = vadd.f32 %v1186, %v1272
  %v1274 = vpop.f32.mrb[0].mxu0
  %1275 = vdwg.mxu0
  %vm1276 = vcmp.ge.s32.totalorder %v1056, 64
  %vm1277 = vcmp.lt.s32.totalorder %v1056, 96
  %vm1278 = vmand %vm1276, %vm1277
  %v1279 = vsel %vm1278, 1.0, 0.5
  %v1280 = vsel %vm1278, 0.0, 0.5
  %v1285 = vunpack.c.l.b16 %v1117
  %v1286 = vunpack.c.l.b16 %v1118
  %v1287 = vunpack.c.l.b16 %v1119
  %v1288 = vunpack.c.l.b16 %v1120
  %v1289 = vpack.c.b16 %v1286, %v1285
  %v1290 = vpack.c.b16 %v1288, %v1287
  %v1294 = vsel %vm183, 0, 0
  %1296 = vmatprep.subr.bf16.mxu0 0
  %1297 = vmatpush1.bf16.msra.mxu0 %v1289
  %1298 = vmatprep.subr.bf16.mxu0 0
  %1299 = vmatpush1.bf16.msra.mxu0 %v1290
  %1300 = vmatprep.subr.bf16.mxu0 0
  %1301 = vmatpush1.bf16.msra.mxu0 0
  %1302 = vmatprep.subr.bf16.mxu0 0
  %1303 = vmatpush1.bf16.msra.mxu0 0
  %1304 = vmatprep.subr.bf16.mxu0 0
  %1305 = vmatpush1.bf16.msra.mxu0 0
  %1306 = vmatprep.subr.bf16.mxu0 0
  %1307 = vmatpush1.bf16.msra.mxu0 0
  %1308 = vmatprep.subr.bf16.mxu0 0
  %1309 = vmatpush1.bf16.msra.mxu0 0
  %1310 = vmatprep.subr.bf16.mxu0 0
  %1311 = vmatpush1.bf16.msra.mxu0 0
  %1312 = vmatprep.subr.bf16.mxu0 0
  %1313 = vmatpush1.bf16.msra.mxu0 0
  %1314 = vmatprep.subr.bf16.mxu0 0
  %1315 = vmatpush1.bf16.msra.mxu0 0
  %1316 = vmatprep.subr.bf16.mxu0 0
  %1317 = vmatpush1.bf16.msra.mxu0 0
  %1318 = vmatprep.subr.bf16.mxu0 0
  %1319 = vmatpush1.bf16.msra.mxu0 0
  %1320 = vmatprep.subr.bf16.mxu0 0
  %1321 = vmatpush1.bf16.msra.mxu0 0
  %1322 = vmatprep.subr.bf16.mxu0 0
  %1323 = vmatpush1.bf16.msra.mxu0 0
  %1324 = vmatprep.subr.bf16.mxu0 0
  %1325 = vmatpush1.bf16.msra.mxu0 0
  %1326 = vmatprep.subr.bf16.mxu0 0
  %1327 = vmatpush1.bf16.msra.mxu0 0
  %1328 = vmatprep.mubr.bf16.mxu0 0
  %1329 = vmatmul.mubr.bf16.gmra.mrb[0].mxu0 %v1294
  %v1330 = vpop.f32.mrb[0].mxu0
  %v1331 = vadd.f32 0.0, %v1330
  %v1332 = vpop.f32.mrb[0].mxu0
  %v1333 = vpop.f32.mrb[0].mxu0
  %v1334 = vpop.f32.mrb[0].mxu0
  %1335 = vdwg.mxu0
  %v1336 = vadd.f32 %v1246, %v1331
  %v1337 = vmul.f32 %v1279, %v1336
  %v1338 = vtanh.pop %v1337
  %v1339 = vmul.f32 %v1279, %v1338
  %v1340 = vadd.f32 %v1339, %v1280
  %v1341 = vmul.f32 %v1340, 0.0
  %1343 = vrot.lane.b32.xlu0 %v1340, 64
  %v1344 = vpop.permute.xlu0 %1343
  %v1346 = vmul.f32 %v1340, %v1344
  %1348 = vrot.lane.b32.xlu0 %v1346, 32
  %v1349 = vpop.permute.xlu0 %1348
  %v1351 = vadd.f32 %v1341, %v1349
  %v1352 = vtanh.pop %v1351
  %1354 = vrot.lane.b32.xlu0 %v1352, 64
  %v1355 = vpop.permute.xlu0 %1354
  %v1357 = vmul.f32 %v1340, %v1355
  %1359 = vrot.lane.b32.xlu0 %v1357, 32
  %v1360 = vpop.permute.xlu0 %1359
  %v1362 = vsel %vm183, %v1360, 0.0
  %v1363 = vpack.c.bf16 %v1362, %v1362
  %v1364 = vlaneseq
  %v1365 = vshrl.u32 %v1364, 7
  %v1366 = vsub.s32 0, %v1365
  %v1367 = vrot.slane %v1130, %v1366
  %v1376 = vunpack.c.l.b16 %v1121
  %v1377 = vunpack.c.l.b16 %v1122
  %v1378 = vunpack.c.l.b16 %v1123
  %v1379 = vunpack.c.l.b16 %v1124
  %v1380 = vunpack.c.l.b16 %v1125
  %v1381 = vunpack.c.l.b16 %v1126
  %v1382 = vunpack.c.l.b16 %v1127
  %v1383 = vunpack.c.l.b16 %v1128
  %v1384 = vpack.c.b16 %v1377, %v1376
  %v1385 = vpack.c.b16 %v1379, %v1378
  %v1386 = vpack.c.b16 %v1381, %v1380
  %v1387 = vpack.c.b16 %v1383, %v1382
  %vm1392 = vcmask 523264
  %v1394 = vsel %vm1392, %v1363, 0
  %1396 = vmatprep.subr.bf16.mxu0 0
  %1397 = vmatpush1.bf16.msra.mxu0 %v1384
  %1398 = vmatprep.subr.bf16.mxu0 0
  %1399 = vmatpush1.bf16.msra.mxu0 %v1385
  %1400 = vmatprep.subr.bf16.mxu0 0
  %1401 = vmatpush1.bf16.msra.mxu0 %v1386
  %1402 = vmatprep.subr.bf16.mxu0 0
  %1403 = vmatpush1.bf16.msra.mxu0 %v1387
  %1404 = vmatprep.subr.bf16.mxu0 0
  %1405 = vmatpush1.bf16.msra.mxu0 0
  %1406 = vmatprep.subr.bf16.mxu0 0
  %1407 = vmatpush1.bf16.msra.mxu0 0
  %1408 = vmatprep.subr.bf16.mxu0 0
  %1409 = vmatpush1.bf16.msra.mxu0 0
  %1410 = vmatprep.subr.bf16.mxu0 0
  %1411 = vmatpush1.bf16.msra.mxu0 0
  %1412 = vmatprep.subr.bf16.mxu0 0
  %1413 = vmatpush1.bf16.msra.mxu0 0
  %1414 = vmatprep.subr.bf16.mxu0 0
  %1415 = vmatpush1.bf16.msra.mxu0 0
  %1416 = vmatprep.subr.bf16.mxu0 0
  %1417 = vmatpush1.bf16.msra.mxu0 0
  %1418 = vmatprep.subr.bf16.mxu0 0
  %1419 = vmatpush1.bf16.msra.mxu0 0
  %1420 = vmatprep.subr.bf16.mxu0 0
  %1421 = vmatpush1.bf16.msra.mxu0 0
  %1422 = vmatprep.subr.bf16.mxu0 0
  %1423 = vmatpush1.bf16.msra.mxu0 0
  %1424 = vmatprep.subr.bf16.mxu0 0
  %1425 = vmatpush1.bf16.msra.mxu0 0
  %1426 = vmatprep.subr.bf16.mxu0 0
  %1427 = vmatpush1.bf16.msra.mxu0 0
  %1428 = vmatprep.mubr.bf16.mxu0 0
  %1429 = vmatmul.mubr.bf16.gmra.mrb[0].mxu0 %v1394
  %v1430 = vpop.f32.mrb[0].mxu0
  %v1431 = vadd.f32 %v1367, %v1430
  %v1432 = vpop.f32.mrb[0].mxu0
  %v1433 = vpop.f32.mrb[0].mxu0
  %v1434 = vpop.f32.mrb[0].mxu0
  %1435 = vdwg.mxu0
  %v1436 = vmul.f32 %v1279, %v1431
  %v1437 = vtanh.pop %v1436
  %v1438 = vmul.f32 %v1279, %v1437
  %v1439 = vadd.f32 %v1438, %v1280
  %v1440 = vmul.f32 %v1439, 0.0
  %1442 = vrot.lane.b32.xlu0 %v1439, 64
  %v1443 = vpop.permute.xlu0 %1442
  %v1445 = vmul.f32 %v1439, %v1443
  %1447 = vrot.lane.b32.xlu0 %v1445, 32
  %v1448 = vpop.permute.xlu0 %1447
  %v1450 = vadd.f32 %v1440, %v1448
  %v1451 = vtanh.pop %v1450
  %1453 = vrot.lane.b32.xlu0 %v1451, 64
  %v1454 = vpop.permute.xlu0 %1453
  %v1456 = vmul.f32 %v1439, %v1454
  %vm1457 = vcmp.eq.s32.totalorder %v34, 1
  %v1458 = vsel %vm1457, 1, 0
  %v1459 = vcvt.s32.f32 %v1458
  %s1461 = vtos %v1459
  %v1462 = vstv %s1461
  %v1464 = vmul.f32 %v1462, %v1456
  %v1465 = vsub.f32 1.0, %v1459
  %s1467 = vtos %v1465
  %v1468 = vstv %s1467
  %v1470 = vmul.f32 %v1468, 0.0
  %v1471 = vadd.f32 %v1464, %v1470
  %v1472 = vpack.c.bf16 %v1357, %v1357
  %1474 = vrot.lane.b32.xlu0 %v1472, 32
  %v1475 = vpop.permute.xlu0 %1474
  %v1477 = vsel %vm183, %v1475, 0
  %1479 = vmatprep.subr.bf16.mxu0 0
  %1480 = vmatpush1.bf16.msra.mxu0 %v1289
  %1481 = vmatprep.subr.bf16.mxu0 0
  %1482 = vmatpush1.bf16.msra.mxu0 %v1290
  %1483 = vmatprep.subr.bf16.mxu0 0
  %1484 = vmatpush1.bf16.msra.mxu0 0
  %1485 = vmatprep.subr.bf16.mxu0 0
  %1486 = vmatpush1.bf16.msra.mxu0 0
  %1487 = vmatprep.subr.bf16.mxu0 0
  %1488 = vmatpush1.bf16.msra.mxu0 0
  %1489 = vmatprep.subr.bf16.mxu0 0
  %1490 = vmatpush1.bf16.msra.mxu0 0
  %1491 = vmatprep.subr.bf16.mxu0 0
  %1492 = vmatpush1.bf16.msra.mxu0 0
  %1493 = vmatprep.subr.bf16.mxu0 0
  %1494 = vmatpush1.bf16.msra.mxu0 0
  %1495 = vmatprep.subr.bf16.mxu0 0
  %1496 = vmatpush1.bf16.msra.mxu0 0
  %1497 = vmatprep.subr.bf16.mxu0 0
  %1498 = vmatpush1.bf16.msra.mxu0 0
  %1499 = vmatprep.subr.bf16.mxu0 0
  %1500 = vmatpush1.bf16.msra.mxu0 0
  %1501 = vmatprep.subr.bf16.mxu0 0
  %1502 = vmatpush1.bf16.msra.mxu0 0
  %1503 = vmatprep.subr.bf16.mxu0 0
  %1504 = vmatpush1.bf16.msra.mxu0 0
  %1505 = vmatprep.subr.bf16.mxu0 0
  %1506 = vmatpush1.bf16.msra.mxu0 0
  %1507 = vmatprep.subr.bf16.mxu0 0
  %1508 = vmatpush1.bf16.msra.mxu0 0
  %1509 = vmatprep.subr.bf16.mxu0 0
  %1510 = vmatpush1.bf16.msra.mxu0 0
  %1511 = vmatprep.mubr.bf16.mxu0 0
  %1512 = vmatmul.mubr.bf16.gmra.mrb[0].mxu0 %v1477
  %v1513 = vpop.f32.mrb[0].mxu0
  %v1514 = vadd.f32 0.0, %v1513
  %v1515 = vpop.f32.mrb[0].mxu0
  %v1516 = vpop.f32.mrb[0].mxu0
  %v1517 = vpop.f32.mrb[0].mxu0
  %1518 = vdwg.mxu0
  %v1519 = vadd.f32 %v1249, %v1514
  %v1520 = vmul.f32 %v1279, %v1519
  %v1521 = vtanh.pop %v1520
  %v1522 = vmul.f32 %v1279, %v1521
  %v1523 = vadd.f32 %v1522, %v1280
  %v1524 = vmul.f32 %v1523, %v1351
  %1526 = vrot.lane.b32.xlu0 %v1523, 64
  %v1527 = vpop.permute.xlu0 %1526
  %v1529 = vmul.f32 %v1523, %v1527
  %1531 = vrot.lane.b32.xlu0 %v1529, 32
  %v1532 = vpop.permute.xlu0 %1531
  %v1534 = vadd.f32 %v1524, %v1532
  %v1535 = vtanh.pop %v1534
  %1537 = vrot.lane.b32.xlu0 %v1535, 64
  %v1538 = vpop.permute.xlu0 %1537
  %v1540 = vmul.f32 %v1523, %v1538
  %1542 = vrot.lane.b32.xlu0 %v1540, 32
  %v1543 = vpop.permute.xlu0 %1542
  %1546 = vrot.lane.b32.xlu0 %v1456, 64
  %v1547 = vpop.permute.xlu0 %1546
  %v1549 = vsel %vm183, %v1543, %v1547
  %v1550 = vpack.c.bf16 %v1549, %v1549
  %v1552 = vsel %vm1392, %v1550, 0
  %1554 = vmatprep.subr.bf16.mxu0 0
  %1555 = vmatpush1.bf16.msra.mxu0 %v1384
  %1556 = vmatprep.subr.bf16.mxu0 0
  %1557 = vmatpush1.bf16.msra.mxu0 %v1385
  %1558 = vmatprep.subr.bf16.mxu0 0
  %1559 = vmatpush1.bf16.msra.mxu0 %v1386
  %1560 = vmatprep.subr.bf16.mxu0 0
  %1561 = vmatpush1.bf16.msra.mxu0 %v1387
  %1562 = vmatprep.subr.bf16.mxu0 0
  %1563 = vmatpush1.bf16.msra.mxu0 0
  %1564 = vmatprep.subr.bf16.mxu0 0
  %1565 = vmatpush1.bf16.msra.mxu0 0
  %1566 = vmatprep.subr.bf16.mxu0 0
  %1567 = vmatpush1.bf16.msra.mxu0 0
  %1568 = vmatprep.subr.bf16.mxu0 0
  %1569 = vmatpush1.bf16.msra.mxu0 0
  %1570 = vmatprep.subr.bf16.mxu0 0
  %1571 = vmatpush1.bf16.msra.mxu0 0
  %1572 = vmatprep.subr.bf16.mxu0 0
  %1573 = vmatpush1.bf16.msra.mxu0 0
  %1574 = vmatprep.subr.bf16.mxu0 0
  %1575 = vmatpush1.bf16.msra.mxu0 0
  %1576 = vmatprep.subr.bf16.mxu0 0
  %1577 = vmatpush1.bf16.msra.mxu0 0
  %1578 = vmatprep.subr.bf16.mxu0 0
  %1579 = vmatpush1.bf16.msra.mxu0 0
  %1580 = vmatprep.subr.bf16.mxu0 0
  %1581 = vmatpush1.bf16.msra.mxu0 0
  %1582 = vmatprep.subr.bf16.mxu0 0
  %1583 = vmatpush1.bf16.msra.mxu0 0
  %1584 = vmatprep.subr.bf16.mxu0 0
  %1585 = vmatpush1.bf16.msra.mxu0 0
  %1586 = vmatprep.mubr.bf16.mxu0 0
  %1587 = vmatmul.mubr.bf16.gmra.mrb[0].mxu0 %v1552
  %v1588 = vpop.f32.mrb[0].mxu0
  %v1589 = vadd.f32 %v1367, %v1588
  %v1590 = vpop.f32.mrb[0].mxu0
  %v1591 = vpop.f32.mrb[0].mxu0
  %v1592 = vpop.f32.mrb[0].mxu0
  %1593 = vdwg.mxu0
  %v1594 = vmul.f32 %v1279, %v1589
  %v1595 = vtanh.pop %v1594
  %v1596 = vmul.f32 %v1279, %v1595
  %v1597 = vadd.f32 %v1596, %v1280
  %v1598 = vmul.f32 %v1597, %v1450
  %1600 = vrot.lane.b32.xlu0 %v1597, 64
  %v1601 = vpop.permute.xlu0 %1600
  %v1603 = vmul.f32 %v1597, %v1601
  %1605 = vrot.lane.b32.xlu0 %v1603, 32
  %v1606 = vpop.permute.xlu0 %1605
  %v1608 = vadd.f32 %v1598, %v1606
  %v1609 = vtanh.pop %v1608
  %1611 = vrot.lane.b32.xlu0 %v1609, 64
  %v1612 = vpop.permute.xlu0 %1611
  %v1614 = vmul.f32 %v1597, %v1612
  %vm1615 = vcmp.eq.s32.totalorder %v34, 2
  %v1616 = vsel %vm1615, 1, 0
  %v1617 = vcvt.s32.f32 %v1616
  %s1619 = vtos %v1617
  %v1620 = vstv %s1619
  %v1622 = vmul.f32 %v1620, %v1614
  %v1623 = vsub.f32 1.0, %v1617
  %s1625 = vtos %v1623
  %v1626 = vstv %s1625
  %v1628 = vmul.f32 %v1626, %v1471
  %v1629 = vadd.f32 %v1622, %v1628
  %v1630 = vpack.c.bf16 %v1540, %v1540
  %1632 = vrot.lane.b32.xlu0 %v1630, 32
  %v1633 = vpop.permute.xlu0 %1632
  %v1635 = vsel %vm183, %v1633, 0
  %1637 = vmatprep.subr.bf16.mxu0 0
  %1638 = vmatpush1.bf16.msra.mxu0 %v1289
  %1639 = vmatprep.subr.bf16.mxu0 0
  %1640 = vmatpush1.bf16.msra.mxu0 %v1290
  %1641 = vmatprep.subr.bf16.mxu0 0
  %1642 = vmatpush1.bf16.msra.mxu0 0
  %1643 = vmatprep.subr.bf16.mxu0 0
  %1644 = vmatpush1.bf16.msra.mxu0 0
  %1645 = vmatprep.subr.bf16.mxu0 0
  %1646 = vmatpush1.bf16.msra.mxu0 0
  %1647 = vmatprep.subr.bf16.mxu0 0
  %1648 = vmatpush1.bf16.msra.mxu0 0
  %1649 = vmatprep.subr.bf16.mxu0 0
  %1650 = vmatpush1.bf16.msra.mxu0 0
  %1651 = vmatprep.subr.bf16.mxu0 0
  %1652 = vmatpush1.bf16.msra.mxu0 0
  %1653 = vmatprep.subr.bf16.mxu0 0
  %1654 = vmatpush1.bf16.msra.mxu0 0
  %1655 = vmatprep.subr.bf16.mxu0 0
  %1656 = vmatpush1.bf16.msra.mxu0 0
  %1657 = vmatprep.subr.bf16.mxu0 0
  %1658 = vmatpush1.bf16.msra.mxu0 0
  %1659 = vmatprep.subr.bf16.mxu0 0
  %1660 = vmatpush1.bf16.msra.mxu0 0
  %1661 = vmatprep.subr.bf16.mxu0 0
  %1662 = vmatpush1.bf16.msra.mxu0 0
  %1663 = vmatprep.subr.bf16.mxu0 0
  %1664 = vmatpush1.bf16.msra.mxu0 0
  %1665 = vmatprep.subr.bf16.mxu0 0
  %1666 = vmatpush1.bf16.msra.mxu0 0
  %1667 = vmatprep.subr.bf16.mxu0 0
  %1668 = vmatpush1.bf16.msra.mxu0 0
  %1669 = vmatprep.mubr.bf16.mxu0 0
  %1670 = vmatmul.mubr.bf16.gmra.mrb[0].mxu0 %v1635
  %v1671 = vpop.f32.mrb[0].mxu0
  %v1672 = vadd.f32 0.0, %v1671
  %v1673 = vpop.f32.mrb[0].mxu0
  %v1674 = vpop.f32.mrb[0].mxu0
  %v1675 = vpop.f32.mrb[0].mxu0
  %1676 = vdwg.mxu0
  %v1677 = vadd.f32 %v1254, %v1672
  %v1678 = vmul.f32 %v1279, %v1677
  %v1679 = vtanh.pop %v1678
  %v1680 = vmul.f32 %v1279, %v1679
  %v1681 = vadd.f32 %v1680, %v1280
  %v1682 = vmul.f32 %v1681, %v1534
  %1684 = vrot.lane.b32.xlu0 %v1681, 64
  %v1685 = vpop.permute.xlu0 %1684
  %v1687 = vmul.f32 %v1681, %v1685
  %1689 = vrot.lane.b32.xlu0 %v1687, 32
  %v1690 = vpop.permute.xlu0 %1689
  %v1692 = vadd.f32 %v1682, %v1690
  %v1693 = vtanh.pop %v1692
  %1695 = vrot.lane.b32.xlu0 %v1693, 64
  %v1696 = vpop.permute.xlu0 %1695
  %v1698 = vmul.f32 %v1681, %v1696
  %1700 = vrot.lane.b32.xlu0 %v1698, 32
  %v1701 = vpop.permute.xlu0 %1700
  %1704 = vrot.lane.b32.xlu0 %v1614, 64
  %v1705 = vpop.permute.xlu0 %1704
  %v1707 = vsel %vm183, %v1701, %v1705
  %v1708 = vpack.c.bf16 %v1707, %v1707
  %v1710 = vsel %vm1392, %v1708, 0
  %1712 = vmatprep.subr.bf16.mxu0 0
  %1713 = vmatpush1.bf16.msra.mxu0 %v1384
  %1714 = vmatprep.subr.bf16.mxu0 0
  %1715 = vmatpush1.bf16.msra.mxu0 %v1385
  %1716 = vmatprep.subr.bf16.mxu0 0
  %1717 = vmatpush1.bf16.msra.mxu0 %v1386
  %1718 = vmatprep.subr.bf16.mxu0 0
  %1719 = vmatpush1.bf16.msra.mxu0 %v1387
  %1720 = vmatprep.subr.bf16.mxu0 0
  %1721 = vmatpush1.bf16.msra.mxu0 0
  %1722 = vmatprep.subr.bf16.mxu0 0
  %1723 = vmatpush1.bf16.msra.mxu0 0
  %1724 = vmatprep.subr.bf16.mxu0 0
  %1725 = vmatpush1.bf16.msra.mxu0 0
  %1726 = vmatprep.subr.bf16.mxu0 0
  %1727 = vmatpush1.bf16.msra.mxu0 0
  %1728 = vmatprep.subr.bf16.mxu0 0
  %1729 = vmatpush1.bf16.msra.mxu0 0
  %1730 = vmatprep.subr.bf16.mxu0 0
  %1731 = vmatpush1.bf16.msra.mxu0 0
  %1732 = vmatprep.subr.bf16.mxu0 0
  %1733 = vmatpush1.bf16.msra.mxu0 0
  %1734 = vmatprep.subr.bf16.mxu0 0
  %1735 = vmatpush1.bf16.msra.mxu0 0
  %1736 = vmatprep.subr.bf16.mxu0 0
  %1737 = vmatpush1.bf16.msra.mxu0 0
  %1738 = vmatprep.subr.bf16.mxu0 0
  %1739 = vmatpush1.bf16.msra.mxu0 0
  %1740 = vmatprep.subr.bf16.mxu0 0
  %1741 = vmatpush1.bf16.msra.mxu0 0
  %1742 = vmatprep.subr.bf16.mxu0 0
  %1743 = vmatpush1.bf16.msra.mxu0 0
  %1744 = vmatprep.mubr.bf16.mxu0 0
  %1745 = vmatmul.mubr.bf16.gmra.mrb[0].mxu0 %v1710
  %v1746 = vpop.f32.mrb[0].mxu0
  %v1747 = vadd.f32 %v1367, %v1746
  %v1748 = vpop.f32.mrb[0].mxu0
  %v1749 = vpop.f32.mrb[0].mxu0
  %v1750 = vpop.f32.mrb[0].mxu0
  %1751 = vdwg.mxu0
  %v1752 = vmul.f32 %v1279, %v1747
  %v1753 = vtanh.pop %v1752
  %v1754 = vmul.f32 %v1279, %v1753
  %v1755 = vadd.f32 %v1754, %v1280
  %v1756 = vmul.f32 %v1755, %v1608
  %1758 = vrot.lane.b32.xlu0 %v1755, 64
  %v1759 = vpop.permute.xlu0 %1758
  %v1761 = vmul.f32 %v1755, %v1759
  %1763 = vrot.lane.b32.xlu0 %v1761, 32
  %v1764 = vpop.permute.xlu0 %1763
  %v1766 = vadd.f32 %v1756, %v1764
  %v1767 = vtanh.pop %v1766
  %1769 = vrot.lane.b32.xlu0 %v1767, 64
  %v1770 = vpop.permute.xlu0 %1769
  %v1772 = vmul.f32 %v1755, %v1770
  %vm1773 = vcmp.eq.s32.totalorder %v34, 3
  %v1774 = vsel %vm1773, 1, 0
  %v1775 = vcvt.s32.f32 %v1774
  %s1777 = vtos %v1775
  %v1778 = vstv %s1777
  %v1780 = vmul.f32 %v1778, %v1772
  %v1781 = vsub.f32 1.0, %v1775
  %s1783 = vtos %v1781
  %v1784 = vstv %s1783
  %v1786 = vmul.f32 %v1784, %v1629
  %v1787 = vadd.f32 %v1780, %v1786
  %v1788 = vpack.c.bf16 %v1698, %v1698
  %1790 = vrot.lane.b32.xlu0 %v1788, 32
  %v1791 = vpop.permute.xlu0 %1790
  %v1793 = vsel %vm183, %v1791, 0
  %1795 = vmatprep.subr.bf16.mxu0 0
  %1796 = vmatpush1.bf16.msra.mxu0 %v1289
  %1797 = vmatprep.subr.bf16.mxu0 0
  %1798 = vmatpush1.bf16.msra.mxu0 %v1290
  %1799 = vmatprep.subr.bf16.mxu0 0
  %1800 = vmatpush1.bf16.msra.mxu0 0
  %1801 = vmatprep.subr.bf16.mxu0 0
  %1802 = vmatpush1.bf16.msra.mxu0 0
  %1803 = vmatprep.subr.bf16.mxu0 0
  %1804 = vmatpush1.bf16.msra.mxu0 0
  %1805 = vmatprep.subr.bf16.mxu0 0
  %1806 = vmatpush1.bf16.msra.mxu0 0
  %1807 = vmatprep.subr.bf16.mxu0 0
  %1808 = vmatpush1.bf16.msra.mxu0 0
  %1809 = vmatprep.subr.bf16.mxu0 0
  %1810 = vmatpush1.bf16.msra.mxu0 0
  %1811 = vmatprep.subr.bf16.mxu0 0
  %1812 = vmatpush1.bf16.msra.mxu0 0
  %1813 = vmatprep.subr.bf16.mxu0 0
  %1814 = vmatpush1.bf16.msra.mxu0 0
  %1815 = vmatprep.subr.bf16.mxu0 0
  %1816 = vmatpush1.bf16.msra.mxu0 0
  %1817 = vmatprep.subr.bf16.mxu0 0
  %1818 = vmatpush1.bf16.msra.mxu0 0
  %1819 = vmatprep.subr.bf16.mxu0 0
  %1820 = vmatpush1.bf16.msra.mxu0 0
  %1821 = vmatprep.subr.bf16.mxu0 0
  %1822 = vmatpush1.bf16.msra.mxu0 0
  %1823 = vmatprep.subr.bf16.mxu0 0
  %1824 = vmatpush1.bf16.msra.mxu0 0
  %1825 = vmatprep.subr.bf16.mxu0 0
  %1826 = vmatpush1.bf16.msra.mxu0 0
  %1827 = vmatprep.mubr.bf16.mxu0 0
  %1828 = vmatmul.mubr.bf16.gmra.mrb[0].mxu0 %v1793
  %v1829 = vpop.f32.mrb[0].mxu0
  %v1830 = vadd.f32 0.0, %v1829
  %v1831 = vpop.f32.mrb[0].mxu0
  %v1832 = vpop.f32.mrb[0].mxu0
  %v1833 = vpop.f32.mrb[0].mxu0
  %1834 = vdwg.mxu0
  %v1835 = vadd.f32 %v1257, %v1830
  %v1836 = vmul.f32 %v1279, %v1835
  %v1837 = vtanh.pop %v1836
  %v1838 = vmul.f32 %v1279, %v1837
  %v1839 = vadd.f32 %v1838, %v1280
  %v1840 = vmul.f32 %v1839, %v1692
  %1842 = vrot.lane.b32.xlu0 %v1839, 64
  %v1843 = vpop.permute.xlu0 %1842
  %v1845 = vmul.f32 %v1839, %v1843
  %1847 = vrot.lane.b32.xlu0 %v1845, 32
  %v1848 = vpop.permute.xlu0 %1847
  %v1850 = vadd.f32 %v1840, %v1848
  %v1851 = vtanh.pop %v1850
  %1853 = vrot.lane.b32.xlu0 %v1851, 64
  %v1854 = vpop.permute.xlu0 %1853
  %v1856 = vmul.f32 %v1839, %v1854
  %1858 = vrot.lane.b32.xlu0 %v1856, 32
  %v1859 = vpop.permute.xlu0 %1858
  %1862 = vrot.lane.b32.xlu0 %v1772, 64
  %v1863 = vpop.permute.xlu0 %1862
  %v1865 = vsel %vm183, %v1859, %v1863
  %v1866 = vpack.c.bf16 %v1865, %v1865
  %v1868 = vsel %vm1392, %v1866, 0
  %1870 = vmatprep.subr.bf16.mxu0 0
  %1871 = vmatpush1.bf16.msra.mxu0 %v1384
  %1872 = vmatprep.subr.bf16.mxu0 0
  %1873 = vmatpush1.bf16.msra.mxu0 %v1385
  %1874 = vmatprep.subr.bf16.mxu0 0
  %1875 = vmatpush1.bf16.msra.mxu0 %v1386
  %1876 = vmatprep.subr.bf16.mxu0 0
  %1877 = vmatpush1.bf16.msra.mxu0 %v1387
  %1878 = vmatprep.subr.bf16.mxu0 0
  %1879 = vmatpush1.bf16.msra.mxu0 0
  %1880 = vmatprep.subr.bf16.mxu0 0
  %1881 = vmatpush1.bf16.msra.mxu0 0
  %1882 = vmatprep.subr.bf16.mxu0 0
  %1883 = vmatpush1.bf16.msra.mxu0 0
  %1884 = vmatprep.subr.bf16.mxu0 0
  %1885 = vmatpush1.bf16.msra.mxu0 0
  %1886 = vmatprep.subr.bf16.mxu0 0
  %1887 = vmatpush1.bf16.msra.mxu0 0
  %1888 = vmatprep.subr.bf16.mxu0 0
  %1889 = vmatpush1.bf16.msra.mxu0 0
  %1890 = vmatprep.subr.bf16.mxu0 0
  %1891 = vmatpush1.bf16.msra.mxu0 0
  %1892 = vmatprep.subr.bf16.mxu0 0
  %1893 = vmatpush1.bf16.msra.mxu0 0
  %1894 = vmatprep.subr.bf16.mxu0 0
  %1895 = vmatpush1.bf16.msra.mxu0 0
  %1896 = vmatprep.subr.bf16.mxu0 0
  %1897 = vmatpush1.bf16.msra.mxu0 0
  %1898 = vmatprep.subr.bf16.mxu0 0
  %1899 = vmatpush1.bf16.msra.mxu0 0
  %1900 = vmatprep.subr.bf16.mxu0 0
  %1901 = vmatpush1.bf16.msra.mxu0 0
  %1902 = vmatprep.mubr.bf16.mxu0 0
  %1903 = vmatmul.mubr.bf16.gmra.mrb[0].mxu0 %v1868
  %v1904 = vpop.f32.mrb[0].mxu0
  %v1905 = vadd.f32 %v1367, %v1904
  %v1906 = vpop.f32.mrb[0].mxu0
  %v1907 = vpop.f32.mrb[0].mxu0
  %v1908 = vpop.f32.mrb[0].mxu0
  %1909 = vdwg.mxu0
  %v1910 = vmul.f32 %v1279, %v1905
  %v1911 = vtanh.pop %v1910
  %v1912 = vmul.f32 %v1279, %v1911
  %v1913 = vadd.f32 %v1912, %v1280
  %v1914 = vmul.f32 %v1913, %v1766
  %1916 = vrot.lane.b32.xlu0 %v1913, 64
  %v1917 = vpop.permute.xlu0 %1916
  %v1919 = vmul.f32 %v1913, %v1917
  %1921 = vrot.lane.b32.xlu0 %v1919, 32
  %v1922 = vpop.permute.xlu0 %1921
  %v1924 = vadd.f32 %v1914, %v1922
  %v1925 = vtanh.pop %v1924
  %1927 = vrot.lane.b32.xlu0 %v1925, 64
  %v1928 = vpop.permute.xlu0 %1927
  %v1930 = vmul.f32 %v1913, %v1928
  %vm1931 = vcmp.eq.s32.totalorder %v34, 4
  %v1932 = vsel %vm1931, 1, 0
  %v1933 = vcvt.s32.f32 %v1932
  %s1935 = vtos %v1933
  %v1936 = vstv %s1935
  %v1938 = vmul.f32 %v1936, %v1930
  %v1939 = vsub.f32 1.0, %v1933
  %s1941 = vtos %v1939
  %v1942 = vstv %s1941
  %v1944 = vmul.f32 %v1942, %v1787
  %v1945 = vadd.f32 %v1938, %v1944
  %v1946 = vpack.c.bf16 %v1856, %v1856
  %1948 = vrot.lane.b32.xlu0 %v1946, 32
  %v1949 = vpop.permute.xlu0 %1948
  %v1951 = vsel %vm183, %v1949, 0
  %1953 = vmatprep.subr.bf16.mxu0 0
  %1954 = vmatpush1.bf16.msra.mxu0 %v1289
  %1955 = vmatprep.subr.bf16.mxu0 0
  %1956 = vmatpush1.bf16.msra.mxu0 %v1290
  %1957 = vmatprep.subr.bf16.mxu0 0
  %1958 = vmatpush1.bf16.msra.mxu0 0
  %1959 = vmatprep.subr.bf16.mxu0 0
  %1960 = vmatpush1.bf16.msra.mxu0 0
  %1961 = vmatprep.subr.bf16.mxu0 0
  %1962 = vmatpush1.bf16.msra.mxu0 0
  %1963 = vmatprep.subr.bf16.mxu0 0
  %1964 = vmatpush1.bf16.msra.mxu0 0
  %1965 = vmatprep.subr.bf16.mxu0 0
  %1966 = vmatpush1.bf16.msra.mxu0 0
  %1967 = vmatprep.subr.bf16.mxu0 0
  %1968 = vmatpush1.bf16.msra.mxu0 0
  %1969 = vmatprep.subr.bf16.mxu0 0
  %1970 = vmatpush1.bf16.msra.mxu0 0
  %1971 = vmatprep.subr.bf16.mxu0 0
  %1972 = vmatpush1.bf16.msra.mxu0 0
  %1973 = vmatprep.subr.bf16.mxu0 0
  %1974 = vmatpush1.bf16.msra.mxu0 0
  %1975 = vmatprep.subr.bf16.mxu0 0
  %1976 = vmatpush1.bf16.msra.mxu0 0
  %1977 = vmatprep.subr.bf16.mxu0 0
  %1978 = vmatpush1.bf16.msra.mxu0 0
  %1979 = vmatprep.subr.bf16.mxu0 0
  %1980 = vmatpush1.bf16.msra.mxu0 0
  %1981 = vmatprep.subr.bf16.mxu0 0
  %1982 = vmatpush1.bf16.msra.mxu0 0
  %1983 = vmatprep.subr.bf16.mxu0 0
  %1984 = vmatpush1.bf16.msra.mxu0 0
  %1985 = vmatprep.mubr.bf16.mxu0 0
  %1986 = vmatmul.mubr.bf16.gmra.mrb[0].mxu0 %v1951
  %v1987 = vpop.f32.mrb[0].mxu0
  %v1988 = vadd.f32 0.0, %v1987
  %v1989 = vpop.f32.mrb[0].mxu0
  %v1990 = vpop.f32.mrb[0].mxu0
  %v1991 = vpop.f32.mrb[0].mxu0
  %1992 = vdwg.mxu0
  %v1993 = vadd.f32 %v1262, %v1988
  %v1994 = vmul.f32 %v1279, %v1993
  %v1995 = vtanh.pop %v1994
  %v1996 = vmul.f32 %v1279, %v1995
  %v1997 = vadd.f32 %v1996, %v1280
  %v1998 = vmul.f32 %v1997, %v1850
  %2000 = vrot.lane.b32.xlu0 %v1997, 64
  %v2001 = vpop.permute.xlu0 %2000
  %v2003 = vmul.f32 %v1997, %v2001
  %2005 = vrot.lane.b32.xlu0 %v2003, 32
  %v2006 = vpop.permute.xlu0 %2005
  %v2008 = vadd.f32 %v1998, %v2006
  %v2009 = vtanh.pop %v2008
  %2011 = vrot.lane.b32.xlu0 %v2009, 64
  %v2012 = vpop.permute.xlu0 %2011
  %v2014 = vmul.f32 %v1997, %v2012
  %2016 = vrot.lane.b32.xlu0 %v2014, 32
  %v2017 = vpop.permute.xlu0 %2016
  %2020 = vrot.lane.b32.xlu0 %v1930, 64
  %v2021 = vpop.permute.xlu0 %2020
  %v2023 = vsel %vm183, %v2017, %v2021
  %v2024 = vpack.c.bf16 %v2023, %v2023
  %v2026 = vsel %vm1392, %v2024, 0
  %2028 = vmatprep.subr.bf16.mxu0 0
  %2029 = vmatpush1.bf16.msra.mxu0 %v1384
  %2030 = vmatprep.subr.bf16.mxu0 0
  %2031 = vmatpush1.bf16.msra.mxu0 %v1385
  %2032 = vmatprep.subr.bf16.mxu0 0
  %2033 = vmatpush1.bf16.msra.mxu0 %v1386
  %2034 = vmatprep.subr.bf16.mxu0 0
  %2035 = vmatpush1.bf16.msra.mxu0 %v1387
  %2036 = vmatprep.subr.bf16.mxu0 0
  %2037 = vmatpush1.bf16.msra.mxu0 0
  %2038 = vmatprep.subr.bf16.mxu0 0
  %2039 = vmatpush1.bf16.msra.mxu0 0
  %2040 = vmatprep.subr.bf16.mxu0 0
  %2041 = vmatpush1.bf16.msra.mxu0 0
  %2042 = vmatprep.subr.bf16.mxu0 0
  %2043 = vmatpush1.bf16.msra.mxu0 0
  %2044 = vmatprep.subr.bf16.mxu0 0
  %2045 = vmatpush1.bf16.msra.mxu0 0
  %2046 = vmatprep.subr.bf16.mxu0 0
  %2047 = vmatpush1.bf16.msra.mxu0 0
  %2048 = vmatprep.subr.bf16.mxu0 0
  %2049 = vmatpush1.bf16.msra.mxu0 0
  %2050 = vmatprep.subr.bf16.mxu0 0
  %2051 = vmatpush1.bf16.msra.mxu0 0
  %2052 = vmatprep.subr.bf16.mxu0 0
  %2053 = vmatpush1.bf16.msra.mxu0 0
  %2054 = vmatprep.subr.bf16.mxu0 0
  %2055 = vmatpush1.bf16.msra.mxu0 0
  %2056 = vmatprep.subr.bf16.mxu0 0
  %2057 = vmatpush1.bf16.msra.mxu0 0
  %2058 = vmatprep.subr.bf16.mxu0 0
  %2059 = vmatpush1.bf16.msra.mxu0 0
  %2060 = vmatprep.mubr.bf16.mxu0 0
  %2061 = vmatmul.mubr.bf16.gmra.mrb[0].mxu0 %v2026
  %v2062 = vpop.f32.mrb[0].mxu0
  %v2063 = vadd.f32 %v1367, %v2062
  %v2064 = vpop.f32.mrb[0].mxu0
  %v2065 = vpop.f32.mrb[0].mxu0
  %v2066 = vpop.f32.mrb[0].mxu0
  %2067 = vdwg.mxu0
  %v2068 = vmul.f32 %v1279, %v2063
  %v2069 = vtanh.pop %v2068
  %v2070 = vmul.f32 %v1279, %v2069
  %v2071 = vadd.f32 %v2070, %v1280
  %v2072 = vmul.f32 %v2071, %v1924
  %2074 = vrot.lane.b32.xlu0 %v2071, 64
  %v2075 = vpop.permute.xlu0 %2074
  %v2077 = vmul.f32 %v2071, %v2075
  %2079 = vrot.lane.b32.xlu0 %v2077, 32
  %v2080 = vpop.permute.xlu0 %2079
  %v2082 = vadd.f32 %v2072, %v2080
  %v2083 = vtanh.pop %v2082
  %2085 = vrot.lane.b32.xlu0 %v2083, 64
  %v2086 = vpop.permute.xlu0 %2085
  %v2088 = vmul.f32 %v2071, %v2086
  %vm2089 = vcmp.eq.s32.totalorder %v34, 5
  %v2090 = vsel %vm2089, 1, 0
  %v2091 = vcvt.s32.f32 %v2090
  %s2093 = vtos %v2091
  %v2094 = vstv %s2093
  %v2096 = vmul.f32 %v2094, %v2088
  %v2097 = vsub.f32 1.0, %v2091
  %s2099 = vtos %v2097
  %v2100 = vstv %s2099
  %v2102 = vmul.f32 %v2100, %v1945
  %v2103 = vadd.f32 %v2096, %v2102
  %v2104 = vpack.c.bf16 %v2014, %v2014
  %2106 = vrot.lane.b32.xlu0 %v2104, 32
  %v2107 = vpop.permute.xlu0 %2106
  %v2109 = vsel %vm183, %v2107, 0
  %2111 = vmatprep.subr.bf16.mxu0 0
  %2112 = vmatpush1.bf16.msra.mxu0 %v1289
  %2113 = vmatprep.subr.bf16.mxu0 0
  %2114 = vmatpush1.bf16.msra.mxu0 %v1290
  %2115 = vmatprep.subr.bf16.mxu0 0
  %2116 = vmatpush1.bf16.msra.mxu0 0
  %2117 = vmatprep.subr.bf16.mxu0 0
  %2118 = vmatpush1.bf16.msra.mxu0 0
  %2119 = vmatprep.subr.bf16.mxu0 0
  %2120 = vmatpush1.bf16.msra.mxu0 0
  %2121 = vmatprep.subr.bf16.mxu0 0
  %2122 = vmatpush1.bf16.msra.mxu0 0
  %2123 = vmatprep.subr.bf16.mxu0 0
  %2124 = vmatpush1.bf16.msra.mxu0 0
  %2125 = vmatprep.subr.bf16.mxu0 0
  %2126 = vmatpush1.bf16.msra.mxu0 0
  %2127 = vmatprep.subr.bf16.mxu0 0
  %2128 = vmatpush1.bf16.msra.mxu0 0
  %2129 = vmatprep.subr.bf16.mxu0 0
  %2130 = vmatpush1.bf16.msra.mxu0 0
  %2131 = vmatprep.subr.bf16.mxu0 0
  %2132 = vmatpush1.bf16.msra.mxu0 0
  %2133 = vmatprep.subr.bf16.mxu0 0
  %2134 = vmatpush1.bf16.msra.mxu0 0
  %2135 = vmatprep.subr.bf16.mxu0 0
  %2136 = vmatpush1.bf16.msra.mxu0 0
  %2137 = vmatprep.subr.bf16.mxu0 0
  %2138 = vmatpush1.bf16.msra.mxu0 0
  %2139 = vmatprep.subr.bf16.mxu0 0
  %2140 = vmatpush1.bf16.msra.mxu0 0
  %2141 = vmatprep.subr.bf16.mxu0 0
  %2142 = vmatpush1.bf16.msra.mxu0 0
  %2143 = vmatprep.mubr.bf16.mxu0 0
  %2144 = vmatmul.mubr.bf16.gmra.mrb[0].mxu0 %v2109
  %v2145 = vpop.f32.mrb[0].mxu0
  %v2146 = vadd.f32 0.0, %v2145
  %v2147 = vpop.f32.mrb[0].mxu0
  %v2148 = vpop.f32.mrb[0].mxu0
  %v2149 = vpop.f32.mrb[0].mxu0
  %2150 = vdwg.mxu0
  %v2151 = vadd.f32 %v1265, %v2146
  %v2152 = vmul.f32 %v1279, %v2151
  %v2153 = vtanh.pop %v2152
  %v2154 = vmul.f32 %v1279, %v2153
  %v2155 = vadd.f32 %v2154, %v1280
  %v2156 = vmul.f32 %v2155, %v2008
  %2158 = vrot.lane.b32.xlu0 %v2155, 64
  %v2159 = vpop.permute.xlu0 %2158
  %v2161 = vmul.f32 %v2155, %v2159
  %2163 = vrot.lane.b32.xlu0 %v2161, 32
  %v2164 = vpop.permute.xlu0 %2163
  %v2166 = vadd.f32 %v2156, %v2164
  %v2167 = vtanh.pop %v2166
  %2169 = vrot.lane.b32.xlu0 %v2167, 64
  %v2170 = vpop.permute.xlu0 %2169
  %v2172 = vmul.f32 %v2155, %v2170
  %2174 = vrot.lane.b32.xlu0 %v2172, 32
  %v2175 = vpop.permute.xlu0 %2174
  %2178 = vrot.lane.b32.xlu0 %v2088, 64
  %v2179 = vpop.permute.xlu0 %2178
  %v2181 = vsel %vm183, %v2175, %v2179
  %v2182 = vpack.c.bf16 %v2181, %v2181
  %v2184 = vsel %vm1392, %v2182, 0
  %2186 = vmatprep.subr.bf16.mxu0 0
  %2187 = vmatpush1.bf16.msra.mxu0 %v1384
  %2188 = vmatprep.subr.bf16.mxu0 0
  %2189 = vmatpush1.bf16.msra.mxu0 %v1385
  %2190 = vmatprep.subr.bf16.mxu0 0
  %2191 = vmatpush1.bf16.msra.mxu0 %v1386
  %2192 = vmatprep.subr.bf16.mxu0 0
  %2193 = vmatpush1.bf16.msra.mxu0 %v1387
  %2194 = vmatprep.subr.bf16.mxu0 0
  %2195 = vmatpush1.bf16.msra.mxu0 0
  %2196 = vmatprep.subr.bf16.mxu0 0
  %2197 = vmatpush1.bf16.msra.mxu0 0
  %2198 = vmatprep.subr.bf16.mxu0 0
  %2199 = vmatpush1.bf16.msra.mxu0 0
  %2200 = vmatprep.subr.bf16.mxu0 0
  %2201 = vmatpush1.bf16.msra.mxu0 0
  %2202 = vmatprep.subr.bf16.mxu0 0
  %2203 = vmatpush1.bf16.msra.mxu0 0
  %2204 = vmatprep.subr.bf16.mxu0 0
  %2205 = vmatpush1.bf16.msra.mxu0 0
  %2206 = vmatprep.subr.bf16.mxu0 0
  %2207 = vmatpush1.bf16.msra.mxu0 0
  %2208 = vmatprep.subr.bf16.mxu0 0
  %2209 = vmatpush1.bf16.msra.mxu0 0
  %2210 = vmatprep.subr.bf16.mxu0 0
  %2211 = vmatpush1.bf16.msra.mxu0 0
  %2212 = vmatprep.subr.bf16.mxu0 0
  %2213 = vmatpush1.bf16.msra.mxu0 0
  %2214 = vmatprep.subr.bf16.mxu0 0
  %2215 = vmatpush1.bf16.msra.mxu0 0
  %2216 = vmatprep.subr.bf16.mxu0 0
  %2217 = vmatpush1.bf16.msra.mxu0 0
  %2218 = vmatprep.mubr.bf16.mxu0 0
  %2219 = vmatmul.mubr.bf16.gmra.mrb[0].mxu0 %v2184
  %v2220 = vpop.f32.mrb[0].mxu0
  %v2221 = vadd.f32 %v1367, %v2220
  %v2222 = vpop.f32.mrb[0].mxu0
  %v2223 = vpop.f32.mrb[0].mxu0
  %v2224 = vpop.f32.mrb[0].mxu0
  %2225 = vdwg.mxu0
  %v2226 = vmul.f32 %v1279, %v2221
  %v2227 = vtanh.pop %v2226
  %v2228 = vmul.f32 %v1279, %v2227
  %v2229 = vadd.f32 %v2228, %v1280
  %v2230 = vmul.f32 %v2229, %v2082
  %2232 = vrot.lane.b32.xlu0 %v2229, 64
  %v2233 = vpop.permute.xlu0 %2232
  %v2235 = vmul.f32 %v2229, %v2233
  %2237 = vrot.lane.b32.xlu0 %v2235, 32
  %v2238 = vpop.permute.xlu0 %2237
  %v2240 = vadd.f32 %v2230, %v2238
  %v2241 = vtanh.pop %v2240
  %2243 = vrot.lane.b32.xlu0 %v2241, 64
  %v2244 = vpop.permute.xlu0 %2243
  %v2246 = vmul.f32 %v2229, %v2244
  %vm2247 = vcmp.eq.s32.totalorder %v34, 6
  %v2248 = vsel %vm2247, 1, 0
  %v2249 = vcvt.s32.f32 %v2248
  %s2251 = vtos %v2249
  %v2252 = vstv %s2251
  %v2254 = vmul.f32 %v2252, %v2246
  %v2255 = vsub.f32 1.0, %v2249
  %s2257 = vtos %v2255
  %v2258 = vstv %s2257
  %v2260 = vmul.f32 %v2258, %v2103
  %v2261 = vadd.f32 %v2254, %v2260
  %v2262 = vpack.c.bf16 %v2172, %v2172
  %2264 = vrot.lane.b32.xlu0 %v2262, 32
  %v2265 = vpop.permute.xlu0 %2264
  %v2267 = vsel %vm183, %v2265, 0
  %2269 = vmatprep.subr.bf16.mxu0 0
  %2270 = vmatpush1.bf16.msra.mxu0 %v1289
  %2271 = vmatprep.subr.bf16.mxu0 0
  %2272 = vmatpush1.bf16.msra.mxu0 %v1290
  %2273 = vmatprep.subr.bf16.mxu0 0
  %2274 = vmatpush1.bf16.msra.mxu0 0
  %2275 = vmatprep.subr.bf16.mxu0 0
  %2276 = vmatpush1.bf16.msra.mxu0 0
  %2277 = vmatprep.subr.bf16.mxu0 0
  %2278 = vmatpush1.bf16.msra.mxu0 0
  %2279 = vmatprep.subr.bf16.mxu0 0
  %2280 = vmatpush1.bf16.msra.mxu0 0
  %2281 = vmatprep.subr.bf16.mxu0 0
  %2282 = vmatpush1.bf16.msra.mxu0 0
  %2283 = vmatprep.subr.bf16.mxu0 0
  %2284 = vmatpush1.bf16.msra.mxu0 0
  %2285 = vmatprep.subr.bf16.mxu0 0
  %2286 = vmatpush1.bf16.msra.mxu0 0
  %2287 = vmatprep.subr.bf16.mxu0 0
  %2288 = vmatpush1.bf16.msra.mxu0 0
  %2289 = vmatprep.subr.bf16.mxu0 0
  %2290 = vmatpush1.bf16.msra.mxu0 0
  %2291 = vmatprep.subr.bf16.mxu0 0
  %2292 = vmatpush1.bf16.msra.mxu0 0
  %2293 = vmatprep.subr.bf16.mxu0 0
  %2294 = vmatpush1.bf16.msra.mxu0 0
  %2295 = vmatprep.subr.bf16.mxu0 0
  %2296 = vmatpush1.bf16.msra.mxu0 0
  %2297 = vmatprep.subr.bf16.mxu0 0
  %2298 = vmatpush1.bf16.msra.mxu0 0
  %2299 = vmatprep.subr.bf16.mxu0 0
  %2300 = vmatpush1.bf16.msra.mxu0 0
  %2301 = vmatprep.mubr.bf16.mxu0 0
  %2302 = vmatmul.mubr.bf16.gmra.mrb[0].mxu0 %v2267
  %v2303 = vpop.f32.mrb[0].mxu0
  %v2304 = vadd.f32 0.0, %v2303
  %v2305 = vpop.f32.mrb[0].mxu0
  %v2306 = vpop.f32.mrb[0].mxu0
  %v2307 = vpop.f32.mrb[0].mxu0
  %2308 = vdwg.mxu0
  %v2309 = vadd.f32 %v1270, %v2304
  %v2310 = vmul.f32 %v1279, %v2309
  %v2311 = vtanh.pop %v2310
  %v2312 = vmul.f32 %v1279, %v2311
  %v2313 = vadd.f32 %v2312, %v1280
  %v2314 = vmul.f32 %v2313, %v2166
  %2316 = vrot.lane.b32.xlu0 %v2313, 64
  %v2317 = vpop.permute.xlu0 %2316
  %v2319 = vmul.f32 %v2313, %v2317
  %2321 = vrot.lane.b32.xlu0 %v2319, 32
  %v2322 = vpop.permute.xlu0 %2321
  %v2324 = vadd.f32 %v2314, %v2322
  %v2325 = vtanh.pop %v2324
  %2327 = vrot.lane.b32.xlu0 %v2325, 64
  %v2328 = vpop.permute.xlu0 %2327
  %v2330 = vmul.f32 %v2313, %v2328
  %2332 = vrot.lane.b32.xlu0 %v2330, 32
  %v2333 = vpop.permute.xlu0 %2332
  %2336 = vrot.lane.b32.xlu0 %v2246, 64
  %v2337 = vpop.permute.xlu0 %2336
  %v2339 = vsel %vm183, %v2333, %v2337
  %v2340 = vpack.c.bf16 %v2339, %v2339
  %v2342 = vsel %vm1392, %v2340, 0
  %2344 = vmatprep.subr.bf16.mxu0 0
  %2345 = vmatpush1.bf16.msra.mxu0 %v1384
  %2346 = vmatprep.subr.bf16.mxu0 0
  %2347 = vmatpush1.bf16.msra.mxu0 %v1385
  %2348 = vmatprep.subr.bf16.mxu0 0
  %2349 = vmatpush1.bf16.msra.mxu0 %v1386
  %2350 = vmatprep.subr.bf16.mxu0 0
  %2351 = vmatpush1.bf16.msra.mxu0 %v1387
  %2352 = vmatprep.subr.bf16.mxu0 0
  %2353 = vmatpush1.bf16.msra.mxu0 0
  %2354 = vmatprep.subr.bf16.mxu0 0
  %2355 = vmatpush1.bf16.msra.mxu0 0
  %2356 = vmatprep.subr.bf16.mxu0 0
  %2357 = vmatpush1.bf16.msra.mxu0 0
  %2358 = vmatprep.subr.bf16.mxu0 0
  %2359 = vmatpush1.bf16.msra.mxu0 0
  %2360 = vmatprep.subr.bf16.mxu0 0
  %2361 = vmatpush1.bf16.msra.mxu0 0
  %2362 = vmatprep.subr.bf16.mxu0 0
  %2363 = vmatpush1.bf16.msra.mxu0 0
  %2364 = vmatprep.subr.bf16.mxu0 0
  %2365 = vmatpush1.bf16.msra.mxu0 0
  %2366 = vmatprep.subr.bf16.mxu0 0
  %2367 = vmatpush1.bf16.msra.mxu0 0
  %2368 = vmatprep.subr.bf16.mxu0 0
  %2369 = vmatpush1.bf16.msra.mxu0 0
  %2370 = vmatprep.subr.bf16.mxu0 0
  %2371 = vmatpush1.bf16.msra.mxu0 0
  %2372 = vmatprep.subr.bf16.mxu0 0
  %2373 = vmatpush1.bf16.msra.mxu0 0
  %2374 = vmatprep.subr.bf16.mxu0 0
  %2375 = vmatpush1.bf16.msra.mxu0 0
  %2376 = vmatprep.mubr.bf16.mxu0 0
  %2377 = vmatmul.mubr.bf16.gmra.mrb[0].mxu0 %v2342
  %v2378 = vpop.f32.mrb[0].mxu0
  %v2379 = vadd.f32 %v1367, %v2378
  %v2380 = vpop.f32.mrb[0].mxu0
  %v2381 = vpop.f32.mrb[0].mxu0
  %v2382 = vpop.f32.mrb[0].mxu0
  %2383 = vdwg.mxu0
  %v2384 = vmul.f32 %v1279, %v2379
  %v2385 = vtanh.pop %v2384
  %v2386 = vmul.f32 %v1279, %v2385
  %v2387 = vadd.f32 %v2386, %v1280
  %v2388 = vmul.f32 %v2387, %v2240
  %2390 = vrot.lane.b32.xlu0 %v2387, 64
  %v2391 = vpop.permute.xlu0 %2390
  %v2393 = vmul.f32 %v2387, %v2391
  %2395 = vrot.lane.b32.xlu0 %v2393, 32
  %v2396 = vpop.permute.xlu0 %2395
  %v2398 = vadd.f32 %v2388, %v2396
  %v2399 = vtanh.pop %v2398
  %2401 = vrot.lane.b32.xlu0 %v2399, 64
  %v2402 = vpop.permute.xlu0 %2401
  %v2404 = vmul.f32 %v2387, %v2402
  %vm2405 = vcmp.eq.s32.totalorder %v34, 7
  %v2406 = vsel %vm2405, 1, 0
  %v2407 = vcvt.s32.f32 %v2406
  %s2409 = vtos %v2407
  %v2410 = vstv %s2409
  %v2412 = vmul.f32 %v2410, %v2404
  %v2413 = vsub.f32 1.0, %v2407
  %s2415 = vtos %v2413
  %v2416 = vstv %s2415
  %v2418 = vmul.f32 %v2416, %v2261
  %v2419 = vadd.f32 %v2412, %v2418
  %v2420 = vpack.c.bf16 %v2330, %v2330
  %2422 = vrot.lane.b32.xlu0 %v2420, 32
  %v2423 = vpop.permute.xlu0 %2422
  %v2425 = vsel %vm183, %v2423, 0
  %2427 = vmatprep.subr.bf16.mxu0 0
  %2428 = vmatpush1.bf16.msra.mxu0 %v1289
  %2429 = vmatprep.subr.bf16.mxu0 0
  %2430 = vmatpush1.bf16.msra.mxu0 %v1290
  %2431 = vmatprep.subr.bf16.mxu0 0
  %2432 = vmatpush1.bf16.msra.mxu0 0
  %2433 = vmatprep.subr.bf16.mxu0 0
  %2434 = vmatpush1.bf16.msra.mxu0 0
  %2435 = vmatprep.subr.bf16.mxu0 0
  %2436 = vmatpush1.bf16.msra.mxu0 0
  %2437 = vmatprep.subr.bf16.mxu0 0
  %2438 = vmatpush1.bf16.msra.mxu0 0
  %2439 = vmatprep.subr.bf16.mxu0 0
  %2440 = vmatpush1.bf16.msra.mxu0 0
  %2441 = vmatprep.subr.bf16.mxu0 0
  %2442 = vmatpush1.bf16.msra.mxu0 0
  %2443 = vmatprep.subr.bf16.mxu0 0
  %2444 = vmatpush1.bf16.msra.mxu0 0
  %2445 = vmatprep.subr.bf16.mxu0 0
  %2446 = vmatpush1.bf16.msra.mxu0 0
  %2447 = vmatprep.subr.bf16.mxu0 0
  %2448 = vmatpush1.bf16.msra.mxu0 0
  %2449 = vmatprep.subr.bf16.mxu0 0
  %2450 = vmatpush1.bf16.msra.mxu0 0
  %2451 = vmatprep.subr.bf16.mxu0 0
  %2452 = vmatpush1.bf16.msra.mxu0 0
  %2453 = vmatprep.subr.bf16.mxu0 0
  %2454 = vmatpush1.bf16.msra.mxu0 0
  %2455 = vmatprep.subr.bf16.mxu0 0
  %2456 = vmatpush1.bf16.msra.mxu0 0
  %2457 = vmatprep.subr.bf16.mxu0 0
  %2458 = vmatpush1.bf16.msra.mxu0 0
  %2459 = vmatprep.mubr.bf16.mxu0 0
  %2460 = vmatmul.mubr.bf16.gmra.mrb[0].mxu0 %v2425
  %v2461 = vpop.f32.mrb[0].mxu0
  %v2462 = vadd.f32 0.0, %v2461
  %v2463 = vpop.f32.mrb[0].mxu0
  %v2464 = vpop.f32.mrb[0].mxu0
  %v2465 = vpop.f32.mrb[0].mxu0
  %2466 = vdwg.mxu0
  %v2467 = vadd.f32 %v1273, %v2462
  %v2468 = vmul.f32 %v1279, %v2467
  %v2469 = vtanh.pop %v2468
  %v2470 = vmul.f32 %v1279, %v2469
  %v2471 = vadd.f32 %v2470, %v1280
  %v2472 = vmul.f32 %v2471, %v2324
  %2474 = vrot.lane.b32.xlu0 %v2471, 64
  %v2475 = vpop.permute.xlu0 %2474
  %v2477 = vmul.f32 %v2471, %v2475
  %2479 = vrot.lane.b32.xlu0 %v2477, 32
  %v2480 = vpop.permute.xlu0 %2479
  %v2482 = vadd.f32 %v2472, %v2480
  %v2483 = vtanh.pop %v2482
  %2485 = vrot.lane.b32.xlu0 %v2483, 64
  %v2486 = vpop.permute.xlu0 %2485
  %v2488 = vmul.f32 %v2471, %v2486
  %2490 = vrot.lane.b32.xlu0 %v2488, 32
  %v2491 = vpop.permute.xlu0 %2490
  %2494 = vrot.lane.b32.xlu0 %v2404, 64
  %v2495 = vpop.permute.xlu0 %2494
  %v2497 = vsel %vm183, %v2491, %v2495
  %v2498 = vpack.c.bf16 %v2497, %v2497
  %v2500 = vsel %vm1392, %v2498, 0
  %2502 = vmatprep.subr.bf16.mxu0 0
  %2503 = vmatpush1.bf16.msra.mxu0 %v1384
  %2504 = vmatprep.subr.bf16.mxu0 0
  %2505 = vmatpush1.bf16.msra.mxu0 %v1385
  %2506 = vmatprep.subr.bf16.mxu0 0
  %2507 = vmatpush1.bf16.msra.mxu0 %v1386
  %2508 = vmatprep.subr.bf16.mxu0 0
  %2509 = vmatpush1.bf16.msra.mxu0 %v1387
  %2510 = vmatprep.subr.bf16.mxu0 0
  %2511 = vmatpush1.bf16.msra.mxu0 0
  %2512 = vmatprep.subr.bf16.mxu0 0
  %2513 = vmatpush1.bf16.msra.mxu0 0
  %2514 = vmatprep.subr.bf16.mxu0 0
  %2515 = vmatpush1.bf16.msra.mxu0 0
  %2516 = vmatprep.subr.bf16.mxu0 0
  %2517 = vmatpush1.bf16.msra.mxu0 0
  %2518 = vmatprep.subr.bf16.mxu0 0
  %2519 = vmatpush1.bf16.msra.mxu0 0
  %2520 = vmatprep.subr.bf16.mxu0 0
  %2521 = vmatpush1.bf16.msra.mxu0 0
  %2522 = vmatprep.subr.bf16.mxu0 0
  %2523 = vmatpush1.bf16.msra.mxu0 0
  %2524 = vmatprep.subr.bf16.mxu0 0
  %2525 = vmatpush1.bf16.msra.mxu0 0
  %2526 = vmatprep.subr.bf16.mxu0 0
  %2527 = vmatpush1.bf16.msra.mxu0 0
  %2528 = vmatprep.subr.bf16.mxu0 0
  %2529 = vmatpush1.bf16.msra.mxu0 0
  %2530 = vmatprep.subr.bf16.mxu0 0
  %2531 = vmatpush1.bf16.msra.mxu0 0
  %2532 = vmatprep.subr.bf16.mxu0 0
  %2533 = vmatpush1.bf16.msra.mxu0 0
  %2534 = vmatprep.mubr.bf16.mxu0 0
  %2535 = vmatmul.mubr.bf16.gmra.mrb[0].mxu0 %v2500
  %v2536 = vpop.f32.mrb[0].mxu0
  %v2537 = vadd.f32 %v1367, %v2536
  %v2538 = vpop.f32.mrb[0].mxu0
  %v2539 = vpop.f32.mrb[0].mxu0
  %v2540 = vpop.f32.mrb[0].mxu0
  %2541 = vdwg.mxu0
  %v2542 = vmul.f32 %v1279, %v2537
  %v2543 = vtanh.pop %v2542
  %v2544 = vmul.f32 %v1279, %v2543
  %v2545 = vadd.f32 %v2544, %v1280
  %v2546 = vmul.f32 %v2545, %v2398
  %2548 = vrot.lane.b32.xlu0 %v2545, 64
  %v2549 = vpop.permute.xlu0 %2548
  %v2551 = vmul.f32 %v2545, %v2549
  %2553 = vrot.lane.b32.xlu0 %v2551, 32
  %v2554 = vpop.permute.xlu0 %2553
  %v2556 = vadd.f32 %v2546, %v2554
  %v2557 = vtanh.pop %v2556
  %2559 = vrot.lane.b32.xlu0 %v2557, 64
  %v2560 = vpop.permute.xlu0 %2559
  %v2562 = vmul.f32 %v2545, %v2560
  %vm2563 = vcmp.eq.s32.totalorder %v34, 8
  %v2564 = vsel %vm2563, 1, 0
  %v2565 = vcvt.s32.f32 %v2564
  %s2567 = vtos %v2565
  %v2568 = vstv %s2567
  %v2570 = vmul.f32 %v2568, %v2562
  %v2571 = vsub.f32 1.0, %v2565
  %s2573 = vtos %v2571
  %v2574 = vstv %s2573
  %v2576 = vmul.f32 %v2574, %v2419
  %v2577 = vadd.f32 %v2570, %v2576
  %v2578 = vlaneseq
  %v2579 = vshrl.u32 %v2578, 7
  %v2580 = vsub.s32 0, %v2579
  %v2581 = vrot.slane %v34, %v2580
  %vm2582 = vcmp.eq.s32.totalorder %v32, %v2581
  %v2583 = vsel %vm2582, 1, 0
  %v2584 = vcvt.s32.f32 %v2583
  %2586 = vset.pattern.permute.xlu0 0
  %2587 = vperm.xlu0 %2586, %v2584
  %v2588 = vpop.permute.xlu0 %2587
  %v2590 = vmul.f32 %v2588, %v2577
  %v2591 = vld [vmem:[%s4] sm:$0xf]
  %v2592 = vld [vmem:[%s4 + $0x4] sm:$0xf]
  %v2593 = vld [vmem:[%s4 + $0x8] sm:$0xf]
  %v2594 = vld [vmem:[%s4 + $0xc] sm:$0xf]
  %v2595 = vld [vmem:[%s4 + $0x10] sm:$0xf]
  %v2596 = vld [vmem:[%s4 + $0x14] sm:$0xf]
  %v2597 = vld [vmem:[%s4 + $0x18] sm:$0xf]
  %v2598 = vld [vmem:[%s4 + $0x1c] sm:$0xf]
  %v2599 = vld [vmem:[%s4 + $0x20] sm:$0xf]
  %v2600 = vld [vmem:[%s4 + $0x24] sm:$0xf]
  %v2601 = vld [vmem:[%s4 + $0x28] sm:$0xf]
  %v2602 = vld [vmem:[%s4 + $0x2c] sm:$0xf]
  %v2603 = vld [vmem:[%s4 + $0x30] sm:$0xf]
  %v2604 = vld [vmem:[%s4 + $0x34] sm:$0xf]
  %v2605 = vld [vmem:[%s4 + $0x38] sm:$0xf]
  %v2606 = vld [vmem:[%s4 + $0x3c] sm:$0xf]
  %v2607 = vld [vmem:[%s4 + $0x40] sm:$0xf]
  %v2608 = vld [vmem:[%s4 + $0x44] sm:$0xf]
  %v2609 = vld [vmem:[%s4 + $0x48] sm:$0xf]
  %v2610 = vld [vmem:[%s4 + $0x4c] sm:$0xf]
  %v2611 = vld [vmem:[%s4 + $0x50] sm:$0xf]
  %v2612 = vld [vmem:[%s4 + $0x54] sm:$0xf]
  %v2613 = vld [vmem:[%s4 + $0x58] sm:$0xf]
  %v2614 = vld [vmem:[%s4 + $0x5c] sm:$0xf]
  %v2615 = vld [vmem:[%s4 + $0x60] sm:$0xf]
  %v2616 = vld [vmem:[%s4 + $0x64] sm:$0xf]
  %v2617 = vld [vmem:[%s4 + $0x68] sm:$0xf]
  %v2618 = vld [vmem:[%s4 + $0x6c] sm:$0xf]
  %v2619 = vld [vmem:[%s4 + $0x70] sm:$0xf]
  %v2620 = vld [vmem:[%s4 + $0x74] sm:$0xf]
  %v2621 = vld [vmem:[%s4 + $0x78] sm:$0xf]
  %v2622 = vld [vmem:[%s4 + $0x7c] sm:$0xf]
  %v2623 = vld [vmem:[%s4 + $0x80] sm:$0xf]
  %v2624 = vld [vmem:[%s4 + $0x84] sm:$0xf]
  %v2625 = vld [vmem:[%s4 + $0x88] sm:$0xf]
  %v2626 = vld [vmem:[%s4 + $0x8c] sm:$0xf]
  %v2627 = vld [vmem:[%s4 + $0x90] sm:$0xf]
  %v2628 = vld [vmem:[%s4 + $0x94] sm:$0xf]
  %v2629 = vld [vmem:[%s4 + $0x98] sm:$0xf]
  %v2630 = vld [vmem:[%s4 + $0x9c] sm:$0xf]
  %v2631 = vld [vmem:[%s3 + $0x10] sm:$0x1]
  %v2632 = vld [vmem:[%s3 + $0x18] sm:$0x1]
  %v2633 = vld [vmem:[%s3 + $0x20] sm:$0x1]
  %v2634 = vld [vmem:[%s3 + $0x28] sm:$0x1]
  %v2635 = vld [vmem:[%s3 + $0x30] sm:$0x1]
  %v2636 = vld [vmem:[%s3 + $0x38] sm:$0x1]
  %v2637 = vld [vmem:[%s3 + $0x40] sm:$0x1]
  %2639 = vrot.lane.b32.xlu0 %v2590, 32
  %v2640 = vpop.permute.xlu0 %2639
  %2643 = vrot.lane.b32.xlu0 %v1108, 32
  %v2644 = vpop.permute.xlu0 %2643
  %v2646 = vsel %vm183, %v2640, %v2644
  %v2647 = vpack.c.bf16 %v2646, %v2646
  %v2648 = vlaneseq
  %v2649 = vshrl.u32 %v2648, 7
  %v2650 = vsub.s32 0, %v2649
  %v2651 = vrot.slane %v2631, %v2650
  %v2660 = vunpack.c.l.b16 %v2591
  %v2661 = vunpack.c.l.b16 %v2592
  %v2662 = vunpack.c.l.b16 %v2593
  %v2663 = vunpack.c.l.b16 %v2594
  %v2664 = vunpack.c.l.b16 %v2595
  %v2665 = vunpack.c.l.b16 %v2596
  %v2666 = vunpack.c.l.b16 %v2597
  %v2667 = vunpack.c.l.b16 %v2598
  %v2668 = vpack.c.b16 %v2661, %v2660
  %v2669 = vpack.c.b16 %v2663, %v2662
  %v2670 = vpack.c.b16 %v2665, %v2664
  %v2671 = vpack.c.b16 %v2667, %v2666
  %v2677 = vsel %vm1392, %v2647, 0
  %2679 = vmatprep.subr.bf16.mxu0 0
  %2680 = vmatpush1.bf16.msra.mxu0 %v2668
  %2681 = vmatprep.subr.bf16.mxu0 0
  %2682 = vmatpush1.bf16.msra.mxu0 %v2669
  %2683 = vmatprep.subr.bf16.mxu0 0
  %2684 = vmatpush1.bf16.msra.mxu0 %v2670
  %2685 = vmatprep.subr.bf16.mxu0 0
  %2686 = vmatpush1.bf16.msra.mxu0 %v2671
  %2687 = vmatprep.subr.bf16.mxu0 0
  %2688 = vmatpush1.bf16.msra.mxu0 0
  %2689 = vmatprep.subr.bf16.mxu0 0
  %2690 = vmatpush1.bf16.msra.mxu0 0
  %2691 = vmatprep.subr.bf16.mxu0 0
  %2692 = vmatpush1.bf16.msra.mxu0 0
  %2693 = vmatprep.subr.bf16.mxu0 0
  %2694 = vmatpush1.bf16.msra.mxu0 0
  %2695 = vmatprep.subr.bf16.mxu0 0
  %2696 = vmatpush1.bf16.msra.mxu0 0
  %2697 = vmatprep.subr.bf16.mxu0 0
  %2698 = vmatpush1.bf16.msra.mxu0 0
  %2699 = vmatprep.subr.bf16.mxu0 0
  %2700 = vmatpush1.bf16.msra.mxu0 0
  %2701 = vmatprep.subr.bf16.mxu0 0
  %2702 = vmatpush1.bf16.msra.mxu0 0
  %2703 = vmatprep.subr.bf16.mxu0 0
  %2704 = vmatpush1.bf16.msra.mxu0 0
  %2705 = vmatprep.subr.bf16.mxu0 0
  %2706 = vmatpush1.bf16.msra.mxu0 0
  %2707 = vmatprep.subr.bf16.mxu0 0
  %2708 = vmatpush1.bf16.msra.mxu0 0
  %2709 = vmatprep.subr.bf16.mxu0 0
  %2710 = vmatpush1.bf16.msra.mxu0 0
  %2711 = vmatprep.mubr.bf16.mxu0 0
  %2712 = vmatmul.mubr.bf16.gmra.mrb[0].mxu0 %v2677
  %v2713 = vpop.f32.mrb[0].mxu0
  %v2714 = vadd.f32 %v2651, %v2713
  %v2715 = vpop.f32.mrb[0].mxu0
  %v2716 = vpop.f32.mrb[0].mxu0
  %v2717 = vpop.f32.mrb[0].mxu0
  %2718 = vdwg.mxu0
  %v2719 = vmax.f32 %v2714, 0.0
  %v2720 = vlaneseq
  %v2721 = vshrl.u32 %v2720, 7
  %v2722 = vsub.s32 0, %v2721
  %v2723 = vrot.slane %v2632, %v2722
  %v2724 = vmul.f32 %v2719, %v2723
  %v2725 = vlaneseq
  %v2726 = vshrl.u32 %v2725, 7
  %v2727 = vsub.s32 0, %v2726
  %v2728 = vrot.slane %v2633, %v2727
  %v2729 = vadd.f32 %v2724, %v2728
  %v2730 = vpack.c.bf16 %v2729, %v2729
  %v2731 = vlaneseq
  %v2732 = vshrl.u32 %v2731, 7
  %v2733 = vsub.s32 0, %v2732
  %v2734 = vrot.slane %v2634, %v2733
  %v2751 = vunpack.c.l.b16 %v2599
  %v2752 = vunpack.c.l.b16 %v2600
  %v2753 = vunpack.c.l.b16 %v2601
  %v2754 = vunpack.c.l.b16 %v2602
  %v2755 = vunpack.c.l.b16 %v2603
  %v2756 = vunpack.c.l.b16 %v2604
  %v2757 = vunpack.c.l.b16 %v2605
  %v2758 = vunpack.c.l.b16 %v2606
  %v2759 = vunpack.c.l.b16 %v2607
  %v2760 = vunpack.c.l.b16 %v2608
  %v2761 = vunpack.c.l.b16 %v2609
  %v2762 = vunpack.c.l.b16 %v2610
  %v2763 = vunpack.c.l.b16 %v2611
  %v2764 = vunpack.c.l.b16 %v2612
  %v2765 = vunpack.c.l.b16 %v2613
  %v2766 = vunpack.c.l.b16 %v2614
  %v2767 = vpack.c.b16 %v2752, %v2751
  %v2768 = vpack.c.b16 %v2754, %v2753
  %v2769 = vpack.c.b16 %v2756, %v2755
  %v2770 = vpack.c.b16 %v2758, %v2757
  %v2771 = vpack.c.b16 %v2760, %v2759
  %v2772 = vpack.c.b16 %v2762, %v2761
  %v2773 = vpack.c.b16 %v2764, %v2763
  %v2774 = vpack.c.b16 %v2766, %v2765
  %2783 = vmatprep.subr.bf16.mxu0 0
  %2784 = vmatpush1.bf16.msra.mxu0 %v2767
  %2785 = vmatprep.subr.bf16.mxu0 0
  %2786 = vmatpush1.bf16.msra.mxu0 %v2768
  %2787 = vmatprep.subr.bf16.mxu0 0
  %2788 = vmatpush1.bf16.msra.mxu0 %v2769
  %2789 = vmatprep.subr.bf16.mxu0 0
  %2790 = vmatpush1.bf16.msra.mxu0 %v2770
  %2791 = vmatprep.subr.bf16.mxu0 0
  %2792 = vmatpush1.bf16.msra.mxu0 %v2771
  %2793 = vmatprep.subr.bf16.mxu0 0
  %2794 = vmatpush1.bf16.msra.mxu0 %v2772
  %2795 = vmatprep.subr.bf16.mxu0 0
  %2796 = vmatpush1.bf16.msra.mxu0 %v2773
  %2797 = vmatprep.subr.bf16.mxu0 0
  %2798 = vmatpush1.bf16.msra.mxu0 %v2774
  %2799 = vmatprep.subr.bf16.mxu0 0
  %2800 = vmatpush1.bf16.msra.mxu0 0
  %2801 = vmatprep.subr.bf16.mxu0 0
  %2802 = vmatpush1.bf16.msra.mxu0 0
  %2803 = vmatprep.subr.bf16.mxu0 0
  %2804 = vmatpush1.bf16.msra.mxu0 0
  %2805 = vmatprep.subr.bf16.mxu0 0
  %2806 = vmatpush1.bf16.msra.mxu0 0
  %2807 = vmatprep.subr.bf16.mxu0 0
  %2808 = vmatpush1.bf16.msra.mxu0 0
  %2809 = vmatprep.subr.bf16.mxu0 0
  %2810 = vmatpush1.bf16.msra.mxu0 0
  %2811 = vmatprep.subr.bf16.mxu0 0
  %2812 = vmatpush1.bf16.msra.mxu0 0
  %2813 = vmatprep.subr.bf16.mxu0 0
  %2814 = vmatpush1.bf16.msra.mxu0 0
  %2815 = vmatprep.mubr.bf16.mxu0 0
  %2816 = vmatmul.mubr.bf16.gmra.mrb[0].mxu0 %v2730
  %v2817 = vpop.f32.mrb[0].mxu0
  %v2818 = vadd.f32 %v2734, %v2817
  %v2819 = vpop.f32.mrb[0].mxu0
  %v2820 = vpop.f32.mrb[0].mxu0
  %v2821 = vpop.f32.mrb[0].mxu0
  %2822 = vdwg.mxu0
  %v2823 = vmax.f32 %v2818, 0.0
  %v2824 = vlaneseq
  %v2825 = vshrl.u32 %v2824, 7
  %v2826 = vsub.s32 0, %v2825
  %v2827 = vrot.slane %v2635, %v2826
  %v2828 = vmul.f32 %v2823, %v2827
  %v2829 = vlaneseq
  %v2830 = vshrl.u32 %v2829, 7
  %v2831 = vsub.s32 0, %v2830
  %v2832 = vrot.slane %v2636, %v2831
  %v2833 = vadd.f32 %v2828, %v2832
  %v2834 = vpack.c.bf16 %v2833, %v2833
  %v2835 = vlaneseq
  %v2836 = vshrl.u32 %v2835, 7
  %v2837 = vsub.s32 0, %v2836
  %v2838 = vrot.slane %v2637, %v2837
  %v2855 = vunpack.c.l.b16 %v2615
  %v2856 = vunpack.c.l.b16 %v2616
  %v2857 = vunpack.c.l.b16 %v2617
  %v2858 = vunpack.c.l.b16 %v2618
  %v2859 = vunpack.c.l.b16 %v2619
  %v2860 = vunpack.c.l.b16 %v2620
  %v2861 = vunpack.c.l.b16 %v2621
  %v2862 = vunpack.c.l.b16 %v2622
  %v2863 = vunpack.c.l.b16 %v2623
  %v2864 = vunpack.c.l.b16 %v2624
  %v2865 = vunpack.c.l.b16 %v2625
  %v2866 = vunpack.c.l.b16 %v2626
  %v2867 = vunpack.c.l.b16 %v2627
  %v2868 = vunpack.c.l.b16 %v2628
  %v2869 = vunpack.c.l.b16 %v2629
  %v2870 = vunpack.c.l.b16 %v2630
  %v2871 = vpack.c.b16 %v2856, %v2855
  %v2872 = vpack.c.b16 %v2858, %v2857
  %v2873 = vpack.c.b16 %v2860, %v2859
  %v2874 = vpack.c.b16 %v2862, %v2861
  %v2875 = vpack.c.b16 %v2864, %v2863
  %v2876 = vpack.c.b16 %v2866, %v2865
  %v2877 = vpack.c.b16 %v2868, %v2867
  %v2878 = vpack.c.b16 %v2870, %v2869
  %2887 = vmatprep.subr.bf16.mxu0 0
  %2888 = vmatpush1.bf16.msra.mxu0 %v2871
  %2889 = vmatprep.subr.bf16.mxu0 0
  %2890 = vmatpush1.bf16.msra.mxu0 %v2872
  %2891 = vmatprep.subr.bf16.mxu0 0
  %2892 = vmatpush1.bf16.msra.mxu0 %v2873
  %2893 = vmatprep.subr.bf16.mxu0 0
  %2894 = vmatpush1.bf16.msra.mxu0 %v2874
  %2895 = vmatprep.subr.bf16.mxu0 0
  %2896 = vmatpush1.bf16.msra.mxu0 %v2875
  %2897 = vmatprep.subr.bf16.mxu0 0
  %2898 = vmatpush1.bf16.msra.mxu0 %v2876
  %2899 = vmatprep.subr.bf16.mxu0 0
  %2900 = vmatpush1.bf16.msra.mxu0 %v2877
  %2901 = vmatprep.subr.bf16.mxu0 0
  %2902 = vmatpush1.bf16.msra.mxu0 %v2878
  %2903 = vmatprep.subr.bf16.mxu0 0
  %2904 = vmatpush1.bf16.msra.mxu0 0
  %2905 = vmatprep.subr.bf16.mxu0 0
  %2906 = vmatpush1.bf16.msra.mxu0 0
  %2907 = vmatprep.subr.bf16.mxu0 0
  %2908 = vmatpush1.bf16.msra.mxu0 0
  %2909 = vmatprep.subr.bf16.mxu0 0
  %2910 = vmatpush1.bf16.msra.mxu0 0
  %2911 = vmatprep.subr.bf16.mxu0 0
  %2912 = vmatpush1.bf16.msra.mxu0 0
  %2913 = vmatprep.subr.bf16.mxu0 0
  %2914 = vmatpush1.bf16.msra.mxu0 0
  %2915 = vmatprep.subr.bf16.mxu0 0
  %2916 = vmatpush1.bf16.msra.mxu0 0
  %2917 = vmatprep.subr.bf16.mxu0 0
  %2918 = vmatpush1.bf16.msra.mxu0 0
  %2919 = vmatprep.mubr.bf16.mxu0 0
  %2920 = vmatmul.mubr.bf16.gmra.mrb[0].mxu0 %v2834
  %v2921 = vpop.f32.mrb[0].mxu0
  %v2922 = vadd.f32 %v2838, %v2921
  %v2923 = vpop.f32.mrb[0].mxu0
  %v2924 = vpop.f32.mrb[0].mxu0
  %v2925 = vpop.f32.mrb[0].mxu0
  %2926 = vdwg.mxu0
  %2927 = vst [vmem:[%s6] sm:$0xff] %v2922
  // Predicated region
  $region26: #{hybridmodel_forward.1} parent=0 // pred_check
    _
  $region27: #{hybridmodel_forward.1} parent=0 // pred_check_branch
    %2929 = sbr.rel (0) target = $region29
  $region28: #{hybridmodel_forward.1} parent=0 // pred_region
    _
  $region29: #{hybridmodel_forward.1} parent=0 // pred_fallthru
    _
  // Predicated region
  $region30: #{hybridmodel_forward.1} parent=0 // pred_check
    _
  $region31: #{hybridmodel_forward.1} parent=0 // pred_check_branch
    %2931 = sbr.rel (0) target = $region33
  $region32: #{hybridmodel_forward.1} parent=0 // pred_region
    _
  $region33: #{hybridmodel_forward.1} parent=0 // pred_fallthru
    _

</llo_original>
